<compile_context>
chip_gen: v5e
topology: v5e:2x2
jax: 0.10.0
libtpu: 0.0.40
codegen_flags: <defaults>
</compile_context>

<pallas_src>
import functools

import jax
import jax.numpy as jnp
import numpy as np
from jax.experimental import pallas as pl
from jax.experimental.pallas import tpu as pltpu

# ----- DescriptorLoss / DualSoftMaxMatcher "parameters" (deterministic) -----
NLL_LOSS_FACTOR = 1.0
AFFINE_LOSS_FACTOR = 1.0     # affine_loss == 0.0 in the default config
EQUIV_LOSS_FACTOR = 1.0      # equiv_loss  == 0.0 in the default config
INV_TEMP = 20.0              # matcher.inv_temp (DeDoDe-style DualSoftMaxMatcher)
MATCH_DIST_THRESH = 0.01     # hard-coded 0.01 in supervised_loss


# ----------------------------- Pallas kernel --------------------------------
def _nll_kernel(kcol_ref, krow_ref, dA_ref, dB_ref, out_ref, *, inv_temp):
    """One grid step = BBLK image pairs, fused:
       squared-cdist -> mutual-NN mask -> dual-softmax NLL lane-partials.

    kcol_ref : (BBLK, N, 4) f32   lanes  = [kA_x, kA_y, kA->B_x, kA->B_y]
    krow_ref : (BBLK, 4, N) f32   rows   = [kB_x, kB_y, kB->A_x, kB->A_y]
    dA_ref   : (BBLK, N, C) bf16  descriptors A at keypoints
    dB_ref   : (BBLK, N, C) bf16  descriptors B at keypoints
    out_ref  : (1, 8, N)    f32   row 0 = lane-partials of sum(mask * logP),
                                  row 1 = lane-partials of sum(mask), rest 0
    """
    bblk, n, _ = kcol_ref.shape
    thresh2 = MATCH_DIST_THRESH * MATCH_DIST_THRESH

    def body(bi, carry):
        acc_s, acc_c = carry
        kc = kcol_ref[bi]                                  # (N, 4)
        kr = krow_ref[bi]                                  # (4, N)

        # Squared distances (min/threshold are monotone under squaring).
        dxB = kc[:, 2:3] - kr[0:1, :]                      # kA->B_x - kB_x
        dyB = kc[:, 3:4] - kr[1:2, :]
        D2_B = dxB * dxB + dyB * dyB                       # (N, N)
        dxA = kc[:, 0:1] - kr[2:3, :]                      # kA_x - kB->A_x
        dyA = kc[:, 1:2] - kr[3:4, :]
        D2_A = dxA * dxA + dyA * dyA                       # (N, N)

        min_B = jnp.min(D2_B, axis=-1, keepdims=True)
        min_A = jnp.min(D2_A, axis=-2, keepdims=True)
        mask = ((D2_B == min_B) & (D2_A == min_A)
                & (D2_B < thresh2) & (D2_A < thresh2))
        maskf = mask.astype(jnp.float32)

        # Dual-softmax matcher: L2-normalize in f32 (eps-guarded), fold inv_temp
        # into the A-side scale, run the matmul in bf16 with f32 accumulation.
        dA = dA_ref[bi].astype(jnp.float32)                # (N, C)
        dB = dB_ref[bi].astype(jnp.float32)                # (N, C)
        sA = inv_temp * jax.lax.rsqrt(
            jnp.sum(dA * dA, axis=-1, keepdims=True) + 1e-12)
        sB = jax.lax.rsqrt(jnp.sum(dB * dB, axis=-1, keepdims=True) + 1e-12)
        a16 = (dA * sA).astype(jnp.bfloat16)
        b16 = (dB * sB).astype(jnp.bfloat16)
        corr = jax.lax.dot_general(a16, b16, (((1,), (1,)), ((), ())),
                                   preferred_element_type=jnp.float32)  # (N, N)

        # logP = log_softmax(corr, dim=-2) + log_softmax(corr, dim=-1)
        m_col = jnp.max(corr, axis=0, keepdims=True)
        lse_col = m_col + jnp.log(jnp.sum(jnp.exp(corr - m_col), axis=0,
                                          keepdims=True))
        m_row = jnp.max(corr, axis=1, keepdims=True)
        lse_row = m_row + jnp.log(jnp.sum(jnp.exp(corr - m_row), axis=1,
                                          keepdims=True))
        logP = (corr - lse_col) + (corr - lse_row)

        acc_s = acc_s + jnp.sum(maskf * logP, axis=0, keepdims=True)  # (1, N)
        acc_c = acc_c + jnp.sum(maskf, axis=0, keepdims=True)         # (1, N)
        return acc_s, acc_c

    acc0 = (jnp.zeros((1, n), jnp.float32), jnp.zeros((1, n), jnp.float32))
    acc_s, acc_c = jax.lax.fori_loop(0, bblk, body, acc0, unroll=True)

    # Single lane-dense full-tile store per block; rows 2..7 are padding.
    row = jax.lax.broadcasted_iota(jnp.int32, (8, n), 0)
    out_ref[0] = jnp.where(row == 0, acc_s, jnp.where(row == 1, acc_c, 0.0))


def _pick_batch_block(B, max_blk=8):
    """Largest divisor of B that is <= max_blk (keeps VMEM use bounded)."""
    for cand in range(min(B, max_blk), 0, -1):
        if B % cand == 0:
            return cand
    return 1


def dual_softmax_nll(kpts_A, kpts_B, kpts_A_to_B, kpts_B_to_A, desc_A, desc_B,
                     inv_temp=INV_TEMP):
    B, N, C = desc_A.shape
    bblk = _pick_batch_block(B)
    G = B // bblk

    # Pack the four tiny keypoint tensors into two arrays:
    #   kcol (B, N, 4): column-role coords (sublane = keypoint index n)
    #   krow (B, 4, N): row-role coords, lane-dense (lane = keypoint index m)
    kcol = jnp.concatenate([kpts_A, kpts_A_to_B], axis=-1).astype(jnp.float32)
    krow = jnp.swapaxes(
        jnp.concatenate([kpts_B, kpts_B_to_A], axis=-1), -1, -2
    ).astype(jnp.float32)

    parts = pl.pallas_call(
        functools.partial(_nll_kernel, inv_temp=inv_temp),
        out_shape=jax.ShapeDtypeStruct((G, 8, N), jnp.float32),
        grid_spec=pltpu.PrefetchScalarGridSpec(
            num_scalar_prefetch=0,
            grid=(G,),
            in_specs=[
                pl.BlockSpec((bblk, N, 4), lambda g: (g, 0, 0)),  # kcol
                pl.BlockSpec((bblk, 4, N), lambda g: (g, 0, 0)),  # krow
                pl.BlockSpec((bblk, N, C), lambda g: (g, 0, 0)),  # desc_A (bf16)
                pl.BlockSpec((bblk, N, C), lambda g: (g, 0, 0)),  # desc_B (bf16)
            ],
            out_specs=pl.BlockSpec((1, 8, N), lambda g: (g, 0, 0)),
        ),
        # Per-block independent outputs -> batch-block axis can shard across
        # TensorCores (v7x); for larger N re-derive bblk against the 64 MiB VMEM.
        compiler_params=pltpu.CompilerParams(
            dimension_semantics=("parallel",)),
    )(kcol, krow, desc_A.astype(jnp.bfloat16), desc_B.astype(jnp.bfloat16))

    masked_sum = jnp.sum(parts[:, 0, :])
    count = jnp.sum(parts[:, 1, :])
    # torch would give NaN (mean of empty) when no inliers; guard the 0/0 case.
    return -masked_sum / jnp.maximum(count, 1.0)


# ------------------------------ JAX glue -------------------------------------
def grid_sample_bilinear(img, coords):
    """F.grid_sample(img, coords[:, None], mode='bilinear', align_corners=False,
    padding_mode='zeros')[:, :, 0].mT   -> (B, N, C)."""
    B, C, H, W = img.shape
    x = coords[..., 0]
    y = coords[..., 1]
    ix = (x + 1.0) * W / 2.0 - 0.5
    iy = (y + 1.0) * H / 2.0 - 0.5
    ix0 = jnp.floor(ix)
    iy0 = jnp.floor(iy)
    ix1 = ix0 + 1.0
    iy1 = iy0 + 1.0
    wx1 = ix - ix0
    wx0 = 1.0 - wx1
    wy1 = iy - iy0
    wy0 = 1.0 - wy1

    def gather(ixx, iyy):
        valid = ((ixx >= 0) & (ixx <= W - 1) & (iyy >= 0) & (iyy <= H - 1))
        ixc = jnp.clip(ixx, 0, W - 1).astype(jnp.int32)
        iyc = jnp.clip(iyy, 0, H - 1).astype(jnp.int32)
        vals = jax.vmap(lambda im, yy, xx: im[:, yy, xx].T)(img, iyc, ixc)  # (B,N,C)
        return vals * valid[..., None].astype(img.dtype)

    v00 = gather(ix0, iy0)
    v01 = gather(ix1, iy0)
    v10 = gather(ix0, iy1)
    v11 = gather(ix1, iy1)
    out = (v00 * (wx0 * wy0)[..., None] + v01 * (wx1 * wy0)[..., None]
           + v10 * (wx0 * wy1)[..., None] + v11 * (wx1 * wy1)[..., None])
    return out  # (B, N, C)


def homog_transform(Homog, kpts):
    ones = jnp.ones_like(kpts[..., :1])
    k = jnp.concatenate([kpts, ones], axis=-1)          # (B, N, 3)
    w = jnp.einsum('bij,bnj->bni', Homog, k)
    return w[..., :2] / w[..., 2:3]


def descriptor_loss_forward(description_grid, kpts_A, kpts_B, Homog_A_to_B):
    """DescriptorLoss.forward for the default config, homography supervision."""
    # outputs['description_grid'].chunk(2)
    desc_grid_A, desc_grid_B = jnp.split(description_grid, 2, axis=0)
    desc_A = grid_sample_bilinear(desc_grid_A.astype(jnp.float32), kpts_A)
    desc_B = grid_sample_bilinear(desc_grid_B.astype(jnp.float32), kpts_B)

    # warp_from_homog
    kpts_A_to_B = homog_transform(Homog_A_to_B, kpts_A)
    kpts_B_to_A = homog_transform(jnp.linalg.inv(Homog_A_to_B), kpts_B)

    nll = dual_softmax_nll(kpts_A, kpts_B, kpts_A_to_B, kpts_B_to_A,
                           desc_A, desc_B)
    # TODO(synk): tracked_metrics EMA bookkeeping / random prints are host-side
    # stateful side effects and are not part of the numerical forward output.
    loss = NLL_LOSS_FACTOR * nll + AFFINE_LOSS_FACTOR * 0.0 + EQUIV_LOSS_FACTOR * 0.0
    return loss


# ----------------------------- reference (pure JAX, f32) ---------------------
def _ref_loss(kpts_A, kpts_B, kpts_A_to_B, kpts_B_to_A, desc_A, desc_B):
    D_B = jnp.sqrt(jnp.sum((kpts_A_to_B[:, :, None, :] - kpts_B[:, None, :, :]) ** 2, -1))
    D_A = jnp.sqrt(jnp.sum((kpts_A[:, :, None, :] - kpts_B_to_A[:, None, :, :]) ** 2, -1))
    mask = ((D_B == D_B.min(-1, keepdims=True)) & (D_A == D_A.min(-2, keepdims=True))
            & (D_B < MATCH_DIST_THRESH) & (D_A < MATCH_DIST_THRESH))
    dA = desc_A / jnp.linalg.norm(desc_A, axis=-1, keepdims=True)
    dB = desc_B / jnp.linalg.norm(desc_B, axis=-1, keepdims=True)
    corr = INV_TEMP * jnp.einsum('bnc,bmc->bnm', dA, dB)
    logP = jax.nn.log_softmax(corr, axis=-2) + jax.nn.log_softmax(corr, axis=-1)
    m = mask.astype(jnp.float32)
    return NLL_LOSS_FACTOR * (-(m * logP).sum() / m.sum())


# --------------------------------- main --------------------------------------
if __name__ == "__main__":
    B, C, H, W, N = 2, 64, 16, 16, 128   # B image pairs, C desc channels, N keypoints

    key = jax.random.PRNGKey(0)
    k1, k2, k3 = jax.random.split(key, 3)

    # outputs['description_grid'] holds both images stacked: (2*B, C, H, W)
    description_grid = jax.random.normal(k1, (2 * B, C, H, W), jnp.float32)
    # "detected" keypoints in normalized [-1, 1] coords (detector is external)
    kpts_A = jax.random.uniform(k2, (B, N, 2), jnp.float32, minval=-0.95, maxval=0.95)
    perm = jax.random.permutation(k3, N)
    kpts_B = kpts_A[:, perm]                                  # same points, shuffled
    Homog_A_to_B = jnp.tile(jnp.eye(3, dtype=jnp.float32)[None], (B, 1, 1))

    loss = jax.jit(descriptor_loss_forward)(description_grid, kpts_A, kpts_B,
                                            Homog_A_to_B)
    jax.block_until_ready(loss)

    # correctness check vs pure-JAX f32 reference of the same default path
    # (kernel uses bf16 descriptors on the MXU -> slightly looser tolerance)
    desc_grid_A, desc_grid_B = jnp.split(description_grid, 2, axis=0)
    desc_A = grid_sample_bilinear(desc_grid_A, kpts_A)
    desc_B = grid_sample_bilinear(desc_grid_B, kpts_B)
    kAB = homog_transform(Homog_A_to_B, kpts_A)
    kBA = homog_transform(jnp.linalg.inv(Homog_A_to_B), kpts_B)
    ref = _ref_loss(kpts_A, kpts_B, kAB, kBA, desc_A, desc_B)

    np.testing.assert_allclose(np.asarray(loss), np.asarray(ref), rtol=2e-2, atol=2e-2)
    print("KERNEL_OK")
</pallas_src>

<mosaic_0001>
module attributes {stable_mosaic.version = 11 : i64} {
  func.func @_nll_kernel(%arg0: i32, %arg1: memref<2x128x4xf32, #tpu.memory_space<vmem>>, %arg2: memref<2x4x128xf32, #tpu.memory_space<vmem>>, %arg3: memref<2x128x64xbf16, #tpu.memory_space<vmem>>, %arg4: memref<2x128x64xbf16, #tpu.memory_space<vmem>>, %arg5: memref<1x8x128xf32, #tpu.memory_space<vmem>>) attributes {dimension_semantics = [#tpu.dimension_semantics<parallel>], iteration_bounds = array<i64: 1>, scalar_prefetch = 0 : i64, scratch_operands = 0 : i64, tpu.core_type = #tpu.core_type<tc>, window_params = [{transform_indices = @transform_0, window_bounds = array<i64: 2, 128, 4>}, {transform_indices = @transform_1, window_bounds = array<i64: 2, 4, 128>}, {transform_indices = @transform_2, window_bounds = array<i64: 2, 128, 64>}, {transform_indices = @transform_3, window_bounds = array<i64: 2, 128, 64>}, {transform_indices = @transform_4, window_bounds = array<i64: 1, 8, 128>}]} {
    %cst = arith.constant 0.000000e+00 : f32
    %0 = vector.broadcast %cst : f32 to vector<1x128xf32>
    %cst_0 = arith.constant 0.000000e+00 : f32
    %1 = vector.broadcast %cst_0 : f32 to vector<1x128xf32>
    %c0_i32 = arith.constant 0 : i32
    %2 = arith.index_cast %c0_i32 : i32 to index
    %c0 = arith.constant 0 : index
    %c0_1 = arith.constant 0 : index
    %3 = vector.load %arg1[%2, %c0, %c0_1] : memref<2x128x4xf32, #tpu.memory_space<vmem>>, vector<1x128x4xf32>
    %4 = vector.shape_cast %3 : vector<1x128x4xf32> to vector<128x4xf32>
    %5 = arith.index_cast %c0_i32 : i32 to index
    %c0_2 = arith.constant 0 : index
    %c0_3 = arith.constant 0 : index
    %6 = vector.load %arg2[%5, %c0_2, %c0_3] : memref<2x4x128xf32, #tpu.memory_space<vmem>>, vector<1x4x128xf32>
    %7 = vector.shape_cast %6 : vector<1x4x128xf32> to vector<4x128xf32>
    %8 = vector.extract_strided_slice %4 {offsets = [0, 2], sizes = [128, 1], strides = [1, 1]} : vector<128x4xf32> to vector<128x1xf32>
    %9 = vector.extract_strided_slice %7 {offsets = [0, 0], sizes = [1, 128], strides = [1, 1]} : vector<4x128xf32> to vector<1x128xf32>
    %10 = vector.broadcast %8 : vector<128x1xf32> to vector<128x128xf32>
    %11 = vector.broadcast %9 : vector<1x128xf32> to vector<128x128xf32>
    %12 = arith.subf %10, %11 : vector<128x128xf32>
    %13 = vector.extract_strided_slice %4 {offsets = [0, 3], sizes = [128, 1], strides = [1, 1]} : vector<128x4xf32> to vector<128x1xf32>
    %14 = vector.extract_strided_slice %7 {offsets = [1, 0], sizes = [1, 128], strides = [1, 1]} : vector<4x128xf32> to vector<1x128xf32>
    %15 = vector.broadcast %13 : vector<128x1xf32> to vector<128x128xf32>
    %16 = vector.broadcast %14 : vector<1x128xf32> to vector<128x128xf32>
    %17 = arith.subf %15, %16 : vector<128x128xf32>
    %18 = arith.mulf %12, %12 : vector<128x128xf32>
    %19 = arith.mulf %17, %17 : vector<128x128xf32>
    %20 = arith.addf %18, %19 : vector<128x128xf32>
    %21 = vector.extract_strided_slice %4 {offsets = [0, 0], sizes = [128, 1], strides = [1, 1]} : vector<128x4xf32> to vector<128x1xf32>
    %22 = vector.extract_strided_slice %7 {offsets = [2, 0], sizes = [1, 128], strides = [1, 1]} : vector<4x128xf32> to vector<1x128xf32>
    %23 = vector.broadcast %21 : vector<128x1xf32> to vector<128x128xf32>
    %24 = vector.broadcast %22 : vector<1x128xf32> to vector<128x128xf32>
    %25 = arith.subf %23, %24 : vector<128x128xf32>
    %26 = vector.extract_strided_slice %4 {offsets = [0, 1], sizes = [128, 1], strides = [1, 1]} : vector<128x4xf32> to vector<128x1xf32>
    %27 = vector.extract_strided_slice %7 {offsets = [3, 0], sizes = [1, 128], strides = [1, 1]} : vector<4x128xf32> to vector<1x128xf32>
    %28 = vector.broadcast %26 : vector<128x1xf32> to vector<128x128xf32>
    %29 = vector.broadcast %27 : vector<1x128xf32> to vector<128x128xf32>
    %30 = arith.subf %28, %29 : vector<128x128xf32>
    %31 = arith.mulf %25, %25 : vector<128x128xf32>
    %32 = arith.mulf %30, %30 : vector<128x128xf32>
    %33 = arith.addf %31, %32 : vector<128x128xf32>
    %cst_4 = arith.constant dense<0x7F800000> : vector<128xf32>
    %34 = vector.multi_reduction <minimumf>, %20, %cst_4 [1] : vector<128x128xf32> to vector<128xf32>
    %35 = vector.shape_cast %34 : vector<128xf32> to vector<128x1xf32>
    %cst_5 = arith.constant dense<0x7F800000> : vector<128xf32>
    %36 = vector.multi_reduction <minimumf>, %33, %cst_5 [0] : vector<128x128xf32> to vector<128xf32>
    %37 = vector.shape_cast %36 : vector<128xf32> to vector<1x128xf32>
    %38 = vector.broadcast %35 : vector<128x1xf32> to vector<128x128xf32>
    %39 = arith.cmpf oeq, %20, %38 : vector<128x128xf32>
    %40 = vector.broadcast %37 : vector<1x128xf32> to vector<128x128xf32>
    %41 = arith.cmpf oeq, %33, %40 : vector<128x128xf32>
    %42 = arith.andi %39, %41 : vector<128x128xi1>
    %cst_6 = arith.constant 9.99999974E-5 : f32
    %43 = vector.broadcast %cst_6 : f32 to vector<128x128xf32>
    %44 = arith.cmpf olt, %20, %43 : vector<128x128xf32>
    %45 = arith.andi %42, %44 : vector<128x128xi1>
    %cst_7 = arith.constant 9.99999974E-5 : f32
    %46 = vector.broadcast %cst_7 : f32 to vector<128x128xf32>
    %47 = arith.cmpf olt, %33, %46 : vector<128x128xf32>
    %48 = arith.andi %45, %47 : vector<128x128xi1>
    %49 = arith.extui %48 : vector<128x128xi1> to vector<128x128xi32>
    %50 = arith.sitofp %49 : vector<128x128xi32> to vector<128x128xf32>
    %51 = arith.index_cast %c0_i32 : i32 to index
    %c0_8 = arith.constant 0 : index
    %c0_9 = arith.constant 0 : index
    %52 = vector.load %arg3[%51, %c0_8, %c0_9] : memref<2x128x64xbf16, #tpu.memory_space<vmem>>, vector<1x128x64xbf16>
    %53 = vector.shape_cast %52 : vector<1x128x64xbf16> to vector<128x64xbf16>
    %54 = arith.extf %53 : vector<128x64xbf16> to vector<128x64xf32>
    %55 = arith.index_cast %c0_i32 : i32 to index
    %c0_10 = arith.constant 0 : index
    %c0_11 = arith.constant 0 : index
    %56 = vector.load %arg4[%55, %c0_10, %c0_11] : memref<2x128x64xbf16, #tpu.memory_space<vmem>>, vector<1x128x64xbf16>
    %57 = vector.shape_cast %56 : vector<1x128x64xbf16> to vector<128x64xbf16>
    %58 = arith.extf %57 : vector<128x64xbf16> to vector<128x64xf32>
    %59 = arith.mulf %54, %54 : vector<128x64xf32>
    %cst_12 = arith.constant dense<0.000000e+00> : vector<128xf32>
    %60 = vector.multi_reduction <add>, %59, %cst_12 [1] : vector<128x64xf32> to vector<128xf32>
    %61 = vector.shape_cast %60 : vector<128xf32> to vector<128x1xf32>
    %cst_13 = arith.constant 9.99999996E-13 : f32
    %62 = vector.broadcast %cst_13 : f32 to vector<128x1xf32>
    %63 = arith.addf %61, %62 : vector<128x1xf32>
    %64 = math.rsqrt %63 : vector<128x1xf32>
    %cst_14 = arith.constant 2.000000e+01 : f32
    %65 = vector.broadcast %cst_14 : f32 to vector<128x1xf32>
    %66 = arith.mulf %65, %64 : vector<128x1xf32>
    %67 = arith.mulf %58, %58 : vector<128x64xf32>
    %cst_15 = arith.constant dense<0.000000e+00> : vector<128xf32>
    %68 = vector.multi_reduction <add>, %67, %cst_15 [1] : vector<128x64xf32> to vector<128xf32>
    %69 = vector.shape_cast %68 : vector<128xf32> to vector<128x1xf32>
    %cst_16 = arith.constant 9.99999996E-13 : f32
    %70 = vector.broadcast %cst_16 : f32 to vector<128x1xf32>
    %71 = arith.addf %69, %70 : vector<128x1xf32>
    %72 = math.rsqrt %71 : vector<128x1xf32>
    %73 = vector.broadcast %66 : vector<128x1xf32> to vector<128x64xf32>
    %74 = arith.mulf %54, %73 : vector<128x64xf32>
    %75 = arith.truncf %74 : vector<128x64xf32> to vector<128x64xbf16>
    %76 = vector.broadcast %72 : vector<128x1xf32> to vector<128x64xf32>
    %77 = arith.mulf %58, %76 : vector<128x64xf32>
    %78 = arith.truncf %77 : vector<128x64xf32> to vector<128x64xbf16>
    %cst_17 = arith.constant dense<0.000000e+00> : vector<128x128xf32>
    %79 = tpu.matmul %75, %78, %cst_17 {dimension_numbers = #tpu.dot_dimension_numbers<[1], [1], [0], [0], [0, 0, 1, 0], [], []>} : vector<128x64xbf16>, vector<128x64xbf16>, vector<128x128xf32> -> vector<128x128xf32>
    %cst_18 = arith.constant dense<0xFF800000> : vector<128xf32>
    %80 = vector.multi_reduction <maximumf>, %79, %cst_18 [0] : vector<128x128xf32> to vector<128xf32>
    %81 = vector.shape_cast %80 : vector<128xf32> to vector<1x128xf32>
    %82 = vector.broadcast %81 : vector<1x128xf32> to vector<128x128xf32>
    %83 = arith.subf %79, %82 : vector<128x128xf32>
    %84 = math.exp %83 : vector<128x128xf32>
    %cst_19 = arith.constant dense<0.000000e+00> : vector<128xf32>
    %85 = vector.multi_reduction <add>, %84, %cst_19 [0] : vector<128x128xf32> to vector<128xf32>
    %86 = vector.shape_cast %85 : vector<128xf32> to vector<1x128xf32>
    %87 = math.log %86 : vector<1x128xf32>
    %88 = arith.addf %81, %87 : vector<1x128xf32>
    %cst_20 = arith.constant dense<0xFF800000> : vector<128xf32>
    %89 = vector.multi_reduction <maximumf>, %79, %cst_20 [1] : vector<128x128xf32> to vector<128xf32>
    %90 = vector.shape_cast %89 : vector<128xf32> to vector<128x1xf32>
    %91 = vector.broadcast %90 : vector<128x1xf32> to vector<128x128xf32>
    %92 = arith.subf %79, %91 : vector<128x128xf32>
    %93 = math.exp %92 : vector<128x128xf32>
    %cst_21 = arith.constant dense<0.000000e+00> : vector<128xf32>
    %94 = vector.multi_reduction <add>, %93, %cst_21 [1] : vector<128x128xf32> to vector<128xf32>
    %95 = vector.shape_cast %94 : vector<128xf32> to vector<128x1xf32>
    %96 = math.log %95 : vector<128x1xf32>
    %97 = arith.addf %90, %96 : vector<128x1xf32>
    %98 = vector.broadcast %88 : vector<1x128xf32> to vector<128x128xf32>
    %99 = arith.subf %79, %98 : vector<128x128xf32>
    %100 = vector.broadcast %97 : vector<128x1xf32> to vector<128x128xf32>
    %101 = arith.subf %79, %100 : vector<128x128xf32>
    %102 = arith.addf %99, %101 : vector<128x128xf32>
    %103 = arith.mulf %50, %102 : vector<128x128xf32>
    %cst_22 = arith.constant dense<0.000000e+00> : vector<128xf32>
    %104 = vector.multi_reduction <add>, %103, %cst_22 [0] : vector<128x128xf32> to vector<128xf32>
    %105 = vector.shape_cast %104 : vector<128xf32> to vector<1x128xf32>
    %106 = arith.addf %0, %105 : vector<1x128xf32>
    %cst_23 = arith.constant dense<0.000000e+00> : vector<128xf32>
    %107 = vector.multi_reduction <add>, %50, %cst_23 [0] : vector<128x128xf32> to vector<128xf32>
    %108 = vector.shape_cast %107 : vector<128xf32> to vector<1x128xf32>
    %109 = arith.addf %1, %108 : vector<1x128xf32>
    %c1_i32 = arith.constant 1 : i32
    %110 = arith.index_cast %c1_i32 : i32 to index
    %c0_24 = arith.constant 0 : index
    %c0_25 = arith.constant 0 : index
    %111 = vector.load %arg1[%110, %c0_24, %c0_25] : memref<2x128x4xf32, #tpu.memory_space<vmem>>, vector<1x128x4xf32>
    %112 = vector.shape_cast %111 : vector<1x128x4xf32> to vector<128x4xf32>
    %113 = arith.index_cast %c1_i32 : i32 to index
    %c0_26 = arith.constant 0 : index
    %c0_27 = arith.constant 0 : index
    %114 = vector.load %arg2[%113, %c0_26, %c0_27] : memref<2x4x128xf32, #tpu.memory_space<vmem>>, vector<1x4x128xf32>
    %115 = vector.shape_cast %114 : vector<1x4x128xf32> to vector<4x128xf32>
    %116 = vector.extract_strided_slice %112 {offsets = [0, 2], sizes = [128, 1], strides = [1, 1]} : vector<128x4xf32> to vector<128x1xf32>
    %117 = vector.extract_strided_slice %115 {offsets = [0, 0], sizes = [1, 128], strides = [1, 1]} : vector<4x128xf32> to vector<1x128xf32>
    %118 = vector.broadcast %116 : vector<128x1xf32> to vector<128x128xf32>
    %119 = vector.broadcast %117 : vector<1x128xf32> to vector<128x128xf32>
    %120 = arith.subf %118, %119 : vector<128x128xf32>
    %121 = vector.extract_strided_slice %112 {offsets = [0, 3], sizes = [128, 1], strides = [1, 1]} : vector<128x4xf32> to vector<128x1xf32>
    %122 = vector.extract_strided_slice %115 {offsets = [1, 0], sizes = [1, 128], strides = [1, 1]} : vector<4x128xf32> to vector<1x128xf32>
    %123 = vector.broadcast %121 : vector<128x1xf32> to vector<128x128xf32>
    %124 = vector.broadcast %122 : vector<1x128xf32> to vector<128x128xf32>
    %125 = arith.subf %123, %124 : vector<128x128xf32>
    %126 = arith.mulf %120, %120 : vector<128x128xf32>
    %127 = arith.mulf %125, %125 : vector<128x128xf32>
    %128 = arith.addf %126, %127 : vector<128x128xf32>
    %129 = vector.extract_strided_slice %112 {offsets = [0, 0], sizes = [128, 1], strides = [1, 1]} : vector<128x4xf32> to vector<128x1xf32>
    %130 = vector.extract_strided_slice %115 {offsets = [2, 0], sizes = [1, 128], strides = [1, 1]} : vector<4x128xf32> to vector<1x128xf32>
    %131 = vector.broadcast %129 : vector<128x1xf32> to vector<128x128xf32>
    %132 = vector.broadcast %130 : vector<1x128xf32> to vector<128x128xf32>
    %133 = arith.subf %131, %132 : vector<128x128xf32>
    %134 = vector.extract_strided_slice %112 {offsets = [0, 1], sizes = [128, 1], strides = [1, 1]} : vector<128x4xf32> to vector<128x1xf32>
    %135 = vector.extract_strided_slice %115 {offsets = [3, 0], sizes = [1, 128], strides = [1, 1]} : vector<4x128xf32> to vector<1x128xf32>
    %136 = vector.broadcast %134 : vector<128x1xf32> to vector<128x128xf32>
    %137 = vector.broadcast %135 : vector<1x128xf32> to vector<128x128xf32>
    %138 = arith.subf %136, %137 : vector<128x128xf32>
    %139 = arith.mulf %133, %133 : vector<128x128xf32>
    %140 = arith.mulf %138, %138 : vector<128x128xf32>
    %141 = arith.addf %139, %140 : vector<128x128xf32>
    %cst_28 = arith.constant dense<0x7F800000> : vector<128xf32>
    %142 = vector.multi_reduction <minimumf>, %128, %cst_28 [1] : vector<128x128xf32> to vector<128xf32>
    %143 = vector.shape_cast %142 : vector<128xf32> to vector<128x1xf32>
    %cst_29 = arith.constant dense<0x7F800000> : vector<128xf32>
    %144 = vector.multi_reduction <minimumf>, %141, %cst_29 [0] : vector<128x128xf32> to vector<128xf32>
    %145 = vector.shape_cast %144 : vector<128xf32> to vector<1x128xf32>
    %146 = vector.broadcast %143 : vector<128x1xf32> to vector<128x128xf32>
    %147 = arith.cmpf oeq, %128, %146 : vector<128x128xf32>
    %148 = vector.broadcast %145 : vector<1x128xf32> to vector<128x128xf32>
    %149 = arith.cmpf oeq, %141, %148 : vector<128x128xf32>
    %150 = arith.andi %147, %149 : vector<128x128xi1>
    %cst_30 = arith.constant 9.99999974E-5 : f32
    %151 = vector.broadcast %cst_30 : f32 to vector<128x128xf32>
    %152 = arith.cmpf olt, %128, %151 : vector<128x128xf32>
    %153 = arith.andi %150, %152 : vector<128x128xi1>
    %cst_31 = arith.constant 9.99999974E-5 : f32
    %154 = vector.broadcast %cst_31 : f32 to vector<128x128xf32>
    %155 = arith.cmpf olt, %141, %154 : vector<128x128xf32>
    %156 = arith.andi %153, %155 : vector<128x128xi1>
    %157 = arith.extui %156 : vector<128x128xi1> to vector<128x128xi32>
    %158 = arith.sitofp %157 : vector<128x128xi32> to vector<128x128xf32>
    %159 = arith.index_cast %c1_i32 : i32 to index
    %c0_32 = arith.constant 0 : index
    %c0_33 = arith.constant 0 : index
    %160 = vector.load %arg3[%159, %c0_32, %c0_33] : memref<2x128x64xbf16, #tpu.memory_space<vmem>>, vector<1x128x64xbf16>
    %161 = vector.shape_cast %160 : vector<1x128x64xbf16> to vector<128x64xbf16>
    %162 = arith.extf %161 : vector<128x64xbf16> to vector<128x64xf32>
    %163 = arith.index_cast %c1_i32 : i32 to index
    %c0_34 = arith.constant 0 : index
    %c0_35 = arith.constant 0 : index
    %164 = vector.load %arg4[%163, %c0_34, %c0_35] : memref<2x128x64xbf16, #tpu.memory_space<vmem>>, vector<1x128x64xbf16>
    %165 = vector.shape_cast %164 : vector<1x128x64xbf16> to vector<128x64xbf16>
    %166 = arith.extf %165 : vector<128x64xbf16> to vector<128x64xf32>
    %167 = arith.mulf %162, %162 : vector<128x64xf32>
    %cst_36 = arith.constant dense<0.000000e+00> : vector<128xf32>
    %168 = vector.multi_reduction <add>, %167, %cst_36 [1] : vector<128x64xf32> to vector<128xf32>
    %169 = vector.shape_cast %168 : vector<128xf32> to vector<128x1xf32>
    %cst_37 = arith.constant 9.99999996E-13 : f32
    %170 = vector.broadcast %cst_37 : f32 to vector<128x1xf32>
    %171 = arith.addf %169, %170 : vector<128x1xf32>
    %172 = math.rsqrt %171 : vector<128x1xf32>
    %cst_38 = arith.constant 2.000000e+01 : f32
    %173 = vector.broadcast %cst_38 : f32 to vector<128x1xf32>
    %174 = arith.mulf %173, %172 : vector<128x1xf32>
    %175 = arith.mulf %166, %166 : vector<128x64xf32>
    %cst_39 = arith.constant dense<0.000000e+00> : vector<128xf32>
    %176 = vector.multi_reduction <add>, %175, %cst_39 [1] : vector<128x64xf32> to vector<128xf32>
    %177 = vector.shape_cast %176 : vector<128xf32> to vector<128x1xf32>
    %cst_40 = arith.constant 9.99999996E-13 : f32
    %178 = vector.broadcast %cst_40 : f32 to vector<128x1xf32>
    %179 = arith.addf %177, %178 : vector<128x1xf32>
    %180 = math.rsqrt %179 : vector<128x1xf32>
    %181 = vector.broadcast %174 : vector<128x1xf32> to vector<128x64xf32>
    %182 = arith.mulf %162, %181 : vector<128x64xf32>
    %183 = arith.truncf %182 : vector<128x64xf32> to vector<128x64xbf16>
    %184 = vector.broadcast %180 : vector<128x1xf32> to vector<128x64xf32>
    %185 = arith.mulf %166, %184 : vector<128x64xf32>
    %186 = arith.truncf %185 : vector<128x64xf32> to vector<128x64xbf16>
    %cst_41 = arith.constant dense<0.000000e+00> : vector<128x128xf32>
    %187 = tpu.matmul %183, %186, %cst_41 {dimension_numbers = #tpu.dot_dimension_numbers<[1], [1], [0], [0], [0, 0, 1, 0], [], []>} : vector<128x64xbf16>, vector<128x64xbf16>, vector<128x128xf32> -> vector<128x128xf32>
    %cst_42 = arith.constant dense<0xFF800000> : vector<128xf32>
    %188 = vector.multi_reduction <maximumf>, %187, %cst_42 [0] : vector<128x128xf32> to vector<128xf32>
    %189 = vector.shape_cast %188 : vector<128xf32> to vector<1x128xf32>
    %190 = vector.broadcast %189 : vector<1x128xf32> to vector<128x128xf32>
    %191 = arith.subf %187, %190 : vector<128x128xf32>
    %192 = math.exp %191 : vector<128x128xf32>
    %cst_43 = arith.constant dense<0.000000e+00> : vector<128xf32>
    %193 = vector.multi_reduction <add>, %192, %cst_43 [0] : vector<128x128xf32> to vector<128xf32>
    %194 = vector.shape_cast %193 : vector<128xf32> to vector<1x128xf32>
    %195 = math.log %194 : vector<1x128xf32>
    %196 = arith.addf %189, %195 : vector<1x128xf32>
    %cst_44 = arith.constant dense<0xFF800000> : vector<128xf32>
    %197 = vector.multi_reduction <maximumf>, %187, %cst_44 [1] : vector<128x128xf32> to vector<128xf32>
    %198 = vector.shape_cast %197 : vector<128xf32> to vector<128x1xf32>
    %199 = vector.broadcast %198 : vector<128x1xf32> to vector<128x128xf32>
    %200 = arith.subf %187, %199 : vector<128x128xf32>
    %201 = math.exp %200 : vector<128x128xf32>
    %cst_45 = arith.constant dense<0.000000e+00> : vector<128xf32>
    %202 = vector.multi_reduction <add>, %201, %cst_45 [1] : vector<128x128xf32> to vector<128xf32>
    %203 = vector.shape_cast %202 : vector<128xf32> to vector<128x1xf32>
    %204 = math.log %203 : vector<128x1xf32>
    %205 = arith.addf %198, %204 : vector<128x1xf32>
    %206 = vector.broadcast %196 : vector<1x128xf32> to vector<128x128xf32>
    %207 = arith.subf %187, %206 : vector<128x128xf32>
    %208 = vector.broadcast %205 : vector<128x1xf32> to vector<128x128xf32>
    %209 = arith.subf %187, %208 : vector<128x128xf32>
    %210 = arith.addf %207, %209 : vector<128x128xf32>
    %211 = arith.mulf %158, %210 : vector<128x128xf32>
    %cst_46 = arith.constant dense<0.000000e+00> : vector<128xf32>
    %212 = vector.multi_reduction <add>, %211, %cst_46 [0] : vector<128x128xf32> to vector<128xf32>
    %213 = vector.shape_cast %212 : vector<128xf32> to vector<1x128xf32>
    %214 = arith.addf %106, %213 : vector<1x128xf32>
    %cst_47 = arith.constant dense<0.000000e+00> : vector<128xf32>
    %215 = vector.multi_reduction <add>, %158, %cst_47 [0] : vector<128x128xf32> to vector<128xf32>
    %216 = vector.shape_cast %215 : vector<128xf32> to vector<1x128xf32>
    %217 = arith.addf %109, %216 : vector<1x128xf32>
    %c2_i32 = arith.constant 2 : i32
    %218 = tpu.iota {dimensions = array<i32: 0>} : vector<8x128xi32>
    %c0_i32_48 = arith.constant 0 : i32
    %219 = vector.broadcast %c0_i32_48 : i32 to vector<8x128xi32>
    %220 = arith.cmpi eq, %218, %219 : vector<8x128xi32>
    %c1_i32_49 = arith.constant 1 : i32
    %221 = vector.broadcast %c1_i32_49 : i32 to vector<8x128xi32>
    %222 = arith.cmpi eq, %218, %221 : vector<8x128xi32>
    %cst_50 = arith.constant 0.000000e+00 : f32
    %223 = vector.shape_cast %217 : vector<1x128xf32> to vector<1x128xf32>
    %224 = vector.broadcast %223 : vector<1x128xf32> to vector<8x128xf32>
    %225 = vector.broadcast %cst_50 : f32 to vector<8x128xf32>
    %226 = arith.select %222, %224, %225 : vector<8x128xi1>, vector<8x128xf32>
    %227 = vector.shape_cast %214 : vector<1x128xf32> to vector<1x128xf32>
    %228 = vector.broadcast %227 : vector<1x128xf32> to vector<8x128xf32>
    %229 = arith.select %220, %228, %226 : vector<8x128xi1>, vector<8x128xf32>
    %c0_51 = arith.constant 0 : index
    %c0_52 = arith.constant 0 : index
    %c0_53 = arith.constant 0 : index
    %230 = vector.load %arg5[%c0_51, %c0_52, %c0_53] : memref<1x8x128xf32, #tpu.memory_space<vmem>>, vector<1x8x128xf32>
    %231 = vector.shape_cast %230 : vector<1x8x128xf32> to vector<8x128xf32>
    %232 = vector.shape_cast %229 : vector<8x128xf32> to vector<1x8x128xf32>
    tpu.vector_store %arg5[%c0_51, %c0_52, %c0_53], %232 {strides = array<i32>} : memref<1x8x128xf32, #tpu.memory_space<vmem>>, vector<1x8x128xf32>,
    return
  }
  func.func @transform_0(%arg0: i32) -> (i32, i32, i32) {
    %c0_i32 = arith.constant 0 : i32
    %c0_i32_0 = arith.constant 0 : i32
    %c0_i32_1 = arith.constant 0 : i32
    return %arg0, %c0_i32, %c0_i32_0 : i32, i32, i32
  }
  func.func @transform_1(%arg0: i32) -> (i32, i32, i32) {
    %c0_i32 = arith.constant 0 : i32
    %c0_i32_0 = arith.constant 0 : i32
    %c0_i32_1 = arith.constant 0 : i32
    return %arg0, %c0_i32, %c0_i32_0 : i32, i32, i32
  }
  func.func @transform_2(%arg0: i32) -> (i32, i32, i32) {
    %c0_i32 = arith.constant 0 : i32
    %c0_i32_0 = arith.constant 0 : i32
    %c0_i32_1 = arith.constant 0 : i32
    return %arg0, %c0_i32, %c0_i32_0 : i32, i32, i32
  }
  func.func @transform_3(%arg0: i32) -> (i32, i32, i32) {
    %c0_i32 = arith.constant 0 : i32
    %c0_i32_0 = arith.constant 0 : i32
    %c0_i32_1 = arith.constant 0 : i32
    return %arg0, %c0_i32, %c0_i32_0 : i32, i32, i32
  }
  func.func @transform_4(%arg0: i32) -> (i32, i32, i32) {
    %c0_i32 = arith.constant 0 : i32
    %c0_i32_0 = arith.constant 0 : i32
    %c0_i32_1 = arith.constant 0 : i32
    return %arg0, %c0_i32, %c0_i32_0 : i32, i32, i32
  }
}

</mosaic_0001>

<llo_original>
// kernel: custom-call.11
$region0: #{custom-call.11}
  %s0 = inlined_call_operand.vmem [shape: f32[2,3,3], index: 0, kind: input, shape index: {}]
  %s1 = inlined_call_operand.vmem [shape: f32[2,3,3], index: 1, kind: output, shape index: {0}]
  %s2 = inlined_call_operand.hbm [shape: s32[2,3], index: 2, kind: output, shape index: {1}]
  %s3 = inlined_call_operand.vmem [shape: s32[2,3], index: 3, kind: output, shape index: {2}]
  %4 = xla_tuple %s1, %s2, %s3
  $region1: #{custom-call.11} parent=0
    #allocation0 [shape = 'u8[4096]{0}', space=vmem, size = 0x1000, scoped, tag = 'operand span for operand 0']
    #allocation1 [shape = 'u8[4096]{0}', space=vmem, size = 0x1000, scoped, tag = 'packed  for operand 0']
    #allocation2 [shape = 'u8[4096]{0}', space=vmem, size = 0x1000, scoped, tag = 'operand span for operand 1']
    #allocation3 [shape = 'u8[4096]{0}', space=vmem, size = 0x1000, scoped, tag = 'packed  for operand 1']
    #allocation4 [shape = 'u8[4096]{0}', space=vmem, size = 0x1000, scoped, tag = 'operand span for operand 2']
    #allocation5 [shape = 'u8[2048]{0}', space=vmem, size = 0x800, scoped, tag = 'packed  for operand 2']
    #allocation6 [shape = 's32[2]{0}', space=sflag, size = 0x8, scoped, tag = 'scoped memory for custom-call.11']
    #allocation7 [shape = 'u8[4096]{0}', space=vmem, size = 0x1000, scoped, tag = 'operand span for operand 3']
    #allocation8 [shape = 'u8[2048]{0}', space=vmem, size = 0x800, scoped, tag = 'packed  for operand 3']
    %5 = vsyncpa [#allocation6], 0
    %s6 = scalar_lea.sflag [#allocation6], 1
    %7 = vsyncpa %s6, 0
    loop: start=0, step=1, limit=4
    $region2: #{custom-call.11} parent=1 // loop_pre_header
      _
    $region3: #{custom-call.11} parent=1 // loop_header
      %s9 = sphi 0, %s13
      %p10 = scmp.ge.s32.totalorder %s9, 4
      %s21 = sphi 0, %s23
      %s24 = sphi 0, %s21
      %s25 = sphi 0, %s24
      %s41 = sphi 0, %s25
      %s49 = sphi 0, %s51
      %s52 = sphi 0, %s49
      %s53 = sphi 0, %s52
      %s69 = sphi 0, %s53
    $region4: #{custom-call.11} parent=1 // loop_header_branch
      %12 = sbr.rel (%p10) target = $region8
    $region5: #{custom-call.11} parent=1 // loop_body
      %s14 = ssub.s32 %s9, 1
      %s15 = ssub.s32 %s9, 2
      %s16 = sadd.s32 %s9, 1
      %s17 = sshrl.u32 %s9, 3
      %s18 = sshrl.u32 %s16, 3
      %s19 = ssub.s32 %s17, %s18
      %p20 = scmp.eq.s32.totalorder %s19, 0
      %s22 = sadd.s32 %s21, 1
      %s23 = scalar_select %p20, %s21, %s22
      %p26 = pneg %p20
      %p27 = scmp.eq.s32.totalorder %s9, 1
      %p28 = por %p26, %p27
      %p29 = scmp.ne.s32.totalorder %s21, %s24
      %p30 = scmp.eq.s32.totalorder %s9, 0
      %p31 = por %p29, %p30
      %p32 = scmp.ne.s32.totalorder %s21, %s24
      %p33 = scmp.eq.s32.totalorder %s14, 1
      %p34 = por %p32, %p33
      %p35 = scmp.ne.s32.totalorder %s24, %s25
      %p36 = scmp.eq.s32.totalorder %s14, 0
      %p37 = por %p35, %p36
      %p38 = scmp.ne.s32.totalorder %s24, %s25
      %p39 = scmp.eq.s32.totalorder %s15, 1
      %p40 = por %p38, %p39
      %p42 = scmp.ne.s32.totalorder %s25, %s41
      %p43 = scmp.eq.s32.totalorder %s15, 0
      %p44 = por %p42, %p43
      %s45 = sshrl.u32 %s9, 3
      %s46 = sshrl.u32 %s16, 3
      %s47 = ssub.s32 %s45, %s46
      %p48 = scmp.eq.s32.totalorder %s47, 0
      %s50 = sadd.s32 %s49, 1
      %s51 = scalar_select %p48, %s49, %s50
      %p54 = pneg %p48
      %p55 = scmp.eq.s32.totalorder %s9, 1
      %p56 = por %p54, %p55
      %p57 = scmp.ne.s32.totalorder %s49, %s52
      %p58 = scmp.eq.s32.totalorder %s9, 0
      %p59 = por %p57, %p58
      %p60 = scmp.ne.s32.totalorder %s49, %s52
      %p61 = scmp.eq.s32.totalorder %s14, 1
      %p62 = por %p60, %p61
      %p63 = scmp.ne.s32.totalorder %s52, %s53
      %p64 = scmp.eq.s32.totalorder %s14, 0
      %p65 = por %p63, %p64
      %p66 = scmp.ne.s32.totalorder %s52, %s53
      %p67 = scmp.eq.s32.totalorder %s15, 1
      %p68 = por %p66, %p67
      %p70 = scmp.ne.s32.totalorder %s53, %s69
      %p71 = scmp.eq.s32.totalorder %s15, 0
      %p72 = por %p70, %p71
      %p73 = scmp.le.s32.totalorder 1, %s9
      %p74 = scmp.lt.s32.totalorder %s9, 3
      %p75 = pnand %p73, %p74
      %p76 = pneg %p75
      // Predicated region
      $region9: #{custom-call.11} parent=5 // pred_check
        _
      $region10: #{custom-call.11} parent=5 // pred_check_branch
        %78 = sbr.rel (%p75) target = $region12
      $region11: #{custom-call.11} parent=5 // pred_region
        %s79 = ssub.s32 %s9, 1
      $region12: #{custom-call.11} parent=5 // pred_fallthru
        _
      %p80 = scmp.lt.s32.totalorder %s9, 2
      // Predicated region
      $region13: #{custom-call.11} parent=5 // pred_check
        %p81 = pneg %p80
      $region14: #{custom-call.11} parent=5 // pred_check_branch
        %83 = sbr.rel (%p81) target = $region16
      $region15: #{custom-call.11} parent=5 // pred_region
        %s84 = sand.u32 %s9, 1
        %s85 = sand.u32 %s9, 1
        %s86 = smul.addr %s85, 4
        %s87 = scalar_lea.vmem [#allocation1], %s86
        %s88 = smul.addr %s9, 4
        %s89 = scalar_lea.vmem %s0, %s88
        // Predicated region
        $region17: #{custom-call.11} parent=15 // pred_check
          _
        $region18: #{custom-call.11} parent=15 // pred_check_branch
          %91 = sbr.rel (0) target = $region20
        $region19: #{custom-call.11} parent=15 // pred_region
          // Predicated region
          $region21: #{custom-call.11} parent=19 // pred_check
            _
          $region22: #{custom-call.11} parent=19 // pred_check_branch
            %93 = sbr.rel target = $region24
          $region23: #{custom-call.11} parent=19 // pred_region
            // Predicated region
            $region36: #{custom-call.11} parent=23 // pred_check
              _
            $region37: #{custom-call.11} parent=23 // pred_check_branch
              %109 = sbr.rel (0) target = $region39
            $region38: #{custom-call.11} parent=23 // pred_region
              %s111 = ssub.s32 16, 1
              loop: start=0, step=1, limit=1
              $region40: #{custom-call.11} parent=38 // loop_pre_header
                _
              $region41: #{custom-call.11} parent=38 // loop_header
                %s113 = sphi 0, %s117
                %p114 = scmp.ge.s32.totalorder %s113, 1
                %s118 = sphi %s89, %s89
                %s119 = sphi %s87, %s87
              $region42: #{custom-call.11} parent=38 // loop_header_branch
                %116 = sbr.rel (%p114) target = $region46
              $region43: #{custom-call.11} parent=38 // loop_body
                %v120 = vld [vmem:[%s118] sm:%s111]
                %121 = vst [vmem:[%s119] sm:%s111] %v120
              $region44: #{custom-call.11} parent=38 // loop_footer
                %s117 = sadd.s32 1, %s113
              $region45: #{custom-call.11} parent=38 // loop_footer_branch
                %112 = sbr.rel target = $region41
              $region46: #{custom-call.11} parent=38 // loop_exit
                _
            $region39: #{custom-call.11} parent=23 // pred_fallthru
              _
          $region24: #{custom-call.11} parent=19 // pred_fallthru
            _
          // Predicated region
          $region25: #{custom-call.11} parent=19 // pred_check
            _
          $region26: #{custom-call.11} parent=19 // pred_check_branch
            %95 = sbr.rel (0) target = $region28
          $region27: #{custom-call.11} parent=19 // pred_region
            %s97 = ssub.s32 16, 1
            loop: start=0, step=1, limit=1
            $region29: #{custom-call.11} parent=27 // loop_pre_header
              _
            $region30: #{custom-call.11} parent=27 // loop_header
              %s99 = sphi 0, %s103
              %p100 = scmp.ge.s32.totalorder %s99, 1
              %s104 = sphi %s89, %s89
              %s105 = sphi %s87, %s87
            $region31: #{custom-call.11} parent=27 // loop_header_branch
              %102 = sbr.rel (%p100) target = $region35
            $region32: #{custom-call.11} parent=27 // loop_body
              %v106 = vld [vmem:[%s104] sm:%s97]
              %107 = vst [vmem:[%s105] sm:%s97] %v106
            $region33: #{custom-call.11} parent=27 // loop_footer
              %s103 = sadd.s32 1, %s99
            $region34: #{custom-call.11} parent=27 // loop_footer_branch
              %98 = sbr.rel target = $region30
            $region35: #{custom-call.11} parent=27 // loop_exit
              _
          $region28: #{custom-call.11} parent=19 // pred_fallthru
            _
        $region20: #{custom-call.11} parent=15 // pred_fallthru
          _
        %122 = vnop
      $region16: #{custom-call.11} parent=5 // pred_fallthru
        _
      %p123 = scmp.le.s32.totalorder 1, %s9
      %p124 = scmp.lt.s32.totalorder %s9, 3
      %p125 = pnand %p123, %p124
      %p126 = pneg %p125
      // Predicated region
      $region47: #{custom-call.11} parent=5 // pred_check
        _
      $region48: #{custom-call.11} parent=5 // pred_check_branch
        %128 = sbr.rel (%p125) target = $region50
      $region49: #{custom-call.11} parent=5 // pred_region
        #allocation9 [shape = 's32[3,128]{1,0}', space=vmem, size = 0x1000, scoped, tag = 'scratch for permutations']
        %s129 = ssub.s32 %s9, 1
        %s130 = sand.u32 %s14, 1
        %s131 = sand.u32 %s14, 1
        %s132 = smul.addr %s131, 4
        %s133 = scalar_lea.vmem [#allocation1], %s132
        %s134 = sand.u32 %s14, 1
        %s135 = sand.u32 %s14, 1
        %s136 = smul.addr %s135, 4
        %s137 = scalar_lea.vmem [#allocation1], %s136
        %s138 = sand.u32 %s14, 1
        %s139 = sand.u32 %s14, 1
        %s140 = smul.addr %s139, 4
        %s141 = scalar_lea.vmem [#allocation3], %s140
        %p142 = pneg %p37
        %p143 = pneg %p34
        %s144 = sand.u32 %s24, 1
        %s145 = scalar_lea.sflag [#allocation6], %s144
        %s146 = sand.u32 %s24, 1
        %s147 = smul.addr %s146, 2
        %s148 = scalar_lea.vmem [#allocation5], %s147
        %p149 = pneg %p65
        %p150 = pneg %p62
        %s151 = sand.u32 %s52, 1
        %s152 = sand.u32 %s52, 1
        %s153 = smul.addr %s152, 2
        %s154 = scalar_lea.vmem [#allocation8], %s153
        %s156 = ssub.s32 16, 1
        %v157 = vld [vmem:[%s137] sm:%s156]
        %158 = vst [vmem:[#allocation0] sm:%s156] %v157
        %s159 = sshrl.u32 %s14, 3
        %s160 = sshrl.u32 %s14, 3
        %v161 = vld [vmem:[#allocation0] sm:$0xff]
        %162 = vst [vmem:[#allocation2] sm:$0xff] %v161
        %s163 = sand.u32 %s14, 7
        %s164 = scalar_lea.vmem [#allocation4], %s163
        %s165 = sand.u32 %s14, 7
        %s166 = scalar_lea.vmem [#allocation7], %s165
        %167 = vst [vmem:[%s164] sm:$0x1] 0
        %v168 = vlaneseq
        %v169 = vshrl.u32 %v168, 7
        %v170 = vmov %v169
        %172 = vst [vmem:[#allocation9] sm:$0xff] %v170
        loop: start=0, step=1, limit=3
        $region52: #{custom-call.11} parent=49 // loop_pre_header
          _
        $region53: #{custom-call.11} parent=49 // loop_header
          %s174 = sphi 0, %s178
          %p175 = scmp.ge.s32.totalorder %s174, 3
        $region54: #{custom-call.11} parent=49 // loop_header_branch
          %177 = sbr.rel (%p175) target = $region58
        $region55: #{custom-call.11} parent=49 // loop_body
          %v179 = vstv %s174
          %v180 = vlaneseq
          %v181 = vshrl.u32 %v180, 7
          %v182 = vmov %v181
          %v183 = vld [vmem:[#allocation2] sm:$0xff]
          %v184 = vand.u32 2147483647, %v183
          %v186 = vstv %s174
          %vm187 = vcmp.ge.s32.totalorder %v182, %v186
          %vm188 = vcmp.lt.s32.totalorder %v182, 3
          %vm189 = vmand %vm187, %vm188
          %vm190 = vcmp.lt.f32.partialorder -inf, %v184
          %vm191 = vmand %vm189, %vm190
          %v192 = vsel %vm191, %v182, %v179
          %v193 = vsel %vm191, %v184, -inf
          %v194 = vrot.slane %v193, 1
          %v195 = vrot.slane %v192, 1
          %vm196 = vcmp.ge.f32.partialorder %v194, %v193
          %v197 = vsel %vm196, %v194, %v193
          %v198 = vsel %vm196, %v195, %v192
          %v199 = vrot.slane %v194, 1
          %v200 = vrot.slane %v195, 1
          %vm201 = vcmp.ge.f32.partialorder %v199, %v197
          %v202 = vsel %vm201, %v199, %v197
          %v203 = vsel %vm201, %v200, %v198
          %v204 = vrot.slane %v199, 1
          %v205 = vrot.slane %v200, 1
          %vm206 = vcmp.ge.f32.partialorder %v204, %v202
          %v207 = vsel %vm206, %v204, %v202
          %v208 = vsel %vm206, %v205, %v203
          %v209 = vrot.slane %v204, 1
          %v210 = vrot.slane %v205, 1
          %vm211 = vcmp.ge.f32.partialorder %v209, %v207
          %v212 = vsel %vm211, %v209, %v207
          %v213 = vsel %vm211, %v210, %v208
          %v214 = vrot.slane %v209, 1
          %v215 = vrot.slane %v210, 1
          %vm216 = vcmp.ge.f32.partialorder %v214, %v212
          %v217 = vsel %vm216, %v214, %v212
          %v218 = vsel %vm216, %v215, %v213
          %v219 = vrot.slane %v214, 1
          %v220 = vrot.slane %v215, 1
          %vm221 = vcmp.ge.f32.partialorder %v219, %v217
          %v222 = vsel %vm221, %v219, %v217
          %v223 = vsel %vm221, %v220, %v218
          %v224 = vrot.slane %v219, 1
          %v225 = vrot.slane %v220, 1
          %vm226 = vcmp.ge.f32.partialorder %v224, %v222
          %v227 = vsel %vm226, %v224, %v222
          %v228 = vsel %vm226, %v225, %v223
          %s229 = ssub.s32 128, %s174
          %230 = vrot.lane.b32.xlu0 %v228, %s229
          %v231 = vpop.permute.xlu0 %230
          %s232 = vtos %v231
          %v233 = vstv %s174
          %v234 = vlaneseq
          %v235 = vand.u32 %v234, 127
          %vm236 = vcmp.eq.s32.totalorder %v235, %v233
          %v237 = vstv %s232
          %v238 = vld [vmem:[%s164] ss:$0 sm:$0xff]
          %v239 = vsel %vm236, %v237, %v238
          %240 = vst [vmem:[%s164] sm:$0x1] %v239
          %s241 = scalar_lea.vmem [#allocation2], %s174
          %s242 = scalar_lea.vmem [#allocation2], %s232
          %v243 = vld [vmem:[%s241] ss:$0 sm:$0xff]
          %v244 = vld [vmem:[%s242] ss:$0 sm:$0xff]
          %245 = vst [vmem:[%s242] sm:$0x1] %v243
          %246 = vst [vmem:[%s241] sm:$0x1] %v244
          %s247 = scalar_lea.vmem [#allocation9], %s174
          %s248 = scalar_lea.vmem [#allocation9], %s232
          %v249 = vld [vmem:[%s247] ss:$0 sm:$0xff]
          %v250 = vld [vmem:[%s248] ss:$0 sm:$0xff]
          %251 = vst [vmem:[%s248] sm:$0x1] %v249
          %252 = vst [vmem:[%s247] sm:$0x1] %v250
          %vm253 = vcmp.ne.f32.partialorder %v244, 0.0
          %vm254 = vmand %vm236, %vm253
          %v255 = vsel %vm254, %v244, 1.0
          %v256 = vlaneseq
          %v257 = vand.u32 %v256, 127
          %v258 = vstv %s174
          %vm259 = vcmp.gt.s32.totalorder %v257, %v258
          %v260 = vsel %vm259, %v244, 0.0
          %v261 = vlaneseq
          %v262 = vshrl.u32 %v261, 7
          %v263 = vmov %v262
          %v264 = vld [vmem:[#allocation2] sm:$0xff]
          %v266 = vstv %s174
          %vm267 = vcmp.gt.s32.totalorder %v263, %v266
          %v268 = vsel %vm267, %v255, 1.0
          %v269 = vrcp.pop %v268
          %v270 = vmul.f32 %v268, %v269
          %v271 = vsub.f32 1.0, %v270
          %v272 = vmul.f32 %v269, %v271
          %v273 = vadd.f32 %v269, %v272
          %vm274 = vweird.f32 %v268
          %vm275 = vweird.f32 %v269
          %vm276 = vmor %vm274, %vm275
          %v277 = vsel %vm276, %v269, %v273
          %v278 = vand.u32 2147483647, %v268
          %vm279 = vcmp.eq.f32.partialorder %v278, 8.507059e+37
          %v280 = vand.u32 %v268, 2147483648
          %v281 = vor.u32 1.1754944e-38, %v280
          %v282 = vsel %vm279, %v281, %v277
          %v283 = vmul.f32 %v264, %v282
          %vm284 = vmand %vm267, %vm236
          %v285 = vsel %vm284, %v283, 0.0
          %286 = vadd.xlane.f32.xlu0 %v285
          %v287 = vpop.xlane.xlu0 %286
          %v288 = vmul.f32 %v287, %v260
          %v289 = vsub.f32 %v283, %v288
          %290 = vst [vmem:[#allocation2] sm:$0xff] %v289
        $region56: #{custom-call.11} parent=49 // loop_footer
          %s178 = sadd.s32 1, %s174
        $region57: #{custom-call.11} parent=49 // loop_footer_branch
          %173 = sbr.rel target = $region53
        $region58: #{custom-call.11} parent=49 // loop_exit
          _
        %v291 = vld [vmem:[#allocation9] sm:$0xff]
        %s292 = scalar_lea.vmem [#allocation9], 8
        %s293 = scalar_lea.vmem [#allocation9], 16
        %s294 = scalar_lea.vmem [#allocation9], 24
        %s295 = scalar_lea.vmem [#allocation9], 32
        %s296 = scalar_lea.vmem [#allocation9], 40
        %s297 = scalar_lea.vmem [#allocation9], 48
        %s298 = scalar_lea.vmem [#allocation9], 56
        %s299 = scalar_lea.vmem [#allocation9], 64
        %s300 = scalar_lea.vmem [#allocation9], 72
        %s301 = scalar_lea.vmem [#allocation9], 80
        %s302 = scalar_lea.vmem [#allocation9], 88
        %s303 = scalar_lea.vmem [#allocation9], 96
        %s304 = scalar_lea.vmem [#allocation9], 104
        %s305 = scalar_lea.vmem [#allocation9], 112
        %s306 = scalar_lea.vmem [#allocation9], 120
        %307 = vxpose.xlu0.b32.start [1/16] %v291, 128
        %308 = vxpose.xlu0.b32.cont [2/16] 0, 128
        %309 = vxpose.xlu0.b32.cont [3/16] 0, 128
        %310 = vxpose.xlu0.b32.cont [4/16] 0, 128
        %311 = vxpose.xlu0.b32.cont [5/16] 0, 128
        %312 = vxpose.xlu0.b32.cont [6/16] 0, 128
        %313 = vxpose.xlu0.b32.cont [7/16] 0, 128
        %314 = vxpose.xlu0.b32.cont [8/16] 0, 128
        %315 = vxpose.xlu0.b32.cont [9/16] 0, 128
        %316 = vxpose.xlu0.b32.cont [10/16] 0, 128
        %317 = vxpose.xlu0.b32.cont [11/16] 0, 128
        %318 = vxpose.xlu0.b32.cont [12/16] 0, 128
        %319 = vxpose.xlu0.b32.cont [13/16] 0, 128
        %320 = vxpose.xlu0.b32.cont [14/16] 0, 128
        %321 = vxpose.xlu0.b32.cont [15/16] 0, 128
        %322 = vxpose.xlu0.b32.end [16/16] 0, 128
        %v323 = vpop.trf.xlu0
        %v324 = vpop.trf.xlu0
        %v325 = vpop.trf.xlu0
        %v326 = vpop.trf.xlu0
        %v327 = vpop.trf.xlu0
        %v328 = vpop.trf.xlu0
        %v329 = vpop.trf.xlu0
        %v330 = vpop.trf.xlu0
        %v331 = vpop.trf.xlu0
        %v332 = vpop.trf.xlu0
        %v333 = vpop.trf.xlu0
        %v334 = vpop.trf.xlu0
        %v335 = vpop.trf.xlu0
        %v336 = vpop.trf.xlu0
        %v337 = vpop.trf.xlu0
        %v338 = vpop.trf.xlu0
        %339 = vst [vmem:[%s166] sm:$0x1] %v323
        %s341 = ssub.s32 16, 1
        %v342 = vld [vmem:[#allocation2] sm:%s341]
        %s344 = ssub.s32 16, 1
        %345 = vst [vmem:[%s141] sm:%s344] %v342
        %s347 = ssub.s32 4, 1
        %v348 = vld [vmem:[#allocation4] sm:%s347]
        %s350 = ssub.s32 4, 1
        %351 = vst [vmem:[%s148] sm:%s350] %v348
        %s353 = ssub.s32 4, 1
        %v354 = vld [vmem:[#allocation7] sm:%s353]
        %s356 = ssub.s32 4, 1
        %357 = vst [vmem:[%s154] sm:%s356] %v354
        %s358 = sand.u32 %s14, 1
        %s359 = sand.u32 %s14, 1
        %s360 = smul.addr %s359, 4
        %s361 = scalar_lea.vmem [#allocation3], %s360
        %s362 = sand.u32 %s24, 1
        %s363 = scalar_lea.sflag [#allocation6], %s362
        %s364 = sand.u32 %s24, 1
        %s365 = smul.addr %s364, 2
        %s366 = scalar_lea.vmem [#allocation5], %s365
        %s367 = sand.u32 %s52, 1
        %s368 = sand.u32 %s52, 1
        %s369 = smul.addr %s368, 2
        %s370 = scalar_lea.vmem [#allocation8], %s369
        %s371 = smul.addr %s14, 4
        %s372 = scalar_lea.vmem %s1, %s371
        // Predicated region
        $region59: #{custom-call.11} parent=49 // pred_check
          _
        $region60: #{custom-call.11} parent=49 // pred_check_branch
          %374 = sbr.rel (0) target = $region62
        $region61: #{custom-call.11} parent=49 // pred_region
          // Predicated region
          $region63: #{custom-call.11} parent=61 // pred_check
            _
          $region64: #{custom-call.11} parent=61 // pred_check_branch
            %376 = sbr.rel target = $region66
          $region65: #{custom-call.11} parent=61 // pred_region
            // Predicated region
            $region78: #{custom-call.11} parent=65 // pred_check
              _
            $region79: #{custom-call.11} parent=65 // pred_check_branch
              %392 = sbr.rel (0) target = $region81
            $region80: #{custom-call.11} parent=65 // pred_region
              %s394 = ssub.s32 16, 1
              loop: start=0, step=1, limit=1
              $region82: #{custom-call.11} parent=80 // loop_pre_header
                _
              $region83: #{custom-call.11} parent=80 // loop_header
                %s396 = sphi 0, %s400
                %p397 = scmp.ge.s32.totalorder %s396, 1
                %s401 = sphi %s361, %s361
                %s402 = sphi %s372, %s372
              $region84: #{custom-call.11} parent=80 // loop_header_branch
                %399 = sbr.rel (%p397) target = $region88
              $region85: #{custom-call.11} parent=80 // loop_body
                %v403 = vld [vmem:[%s401] sm:%s394]
                %404 = vst [vmem:[%s402] sm:%s394] %v403
              $region86: #{custom-call.11} parent=80 // loop_footer
                %s400 = sadd.s32 1, %s396
              $region87: #{custom-call.11} parent=80 // loop_footer_branch
                %395 = sbr.rel target = $region83
              $region88: #{custom-call.11} parent=80 // loop_exit
                _
            $region81: #{custom-call.11} parent=65 // pred_fallthru
              _
          $region66: #{custom-call.11} parent=61 // pred_fallthru
            _
          // Predicated region
          $region67: #{custom-call.11} parent=61 // pred_check
            _
          $region68: #{custom-call.11} parent=61 // pred_check_branch
            %378 = sbr.rel (0) target = $region70
          $region69: #{custom-call.11} parent=61 // pred_region
            %s380 = ssub.s32 16, 1
            loop: start=0, step=1, limit=1
            $region71: #{custom-call.11} parent=69 // loop_pre_header
              _
            $region72: #{custom-call.11} parent=69 // loop_header
              %s382 = sphi 0, %s386
              %p383 = scmp.ge.s32.totalorder %s382, 1
              %s387 = sphi %s361, %s361
              %s388 = sphi %s372, %s372
            $region73: #{custom-call.11} parent=69 // loop_header_branch
              %385 = sbr.rel (%p383) target = $region77
            $region74: #{custom-call.11} parent=69 // loop_body
              %v389 = vld [vmem:[%s387] sm:%s380]
              %390 = vst [vmem:[%s388] sm:%s380] %v389
            $region75: #{custom-call.11} parent=69 // loop_footer
              %s386 = sadd.s32 1, %s382
            $region76: #{custom-call.11} parent=69 // loop_footer_branch
              %381 = sbr.rel target = $region72
            $region77: #{custom-call.11} parent=69 // loop_exit
              _
          $region70: #{custom-call.11} parent=61 // pred_fallthru
            _
        $region62: #{custom-call.11} parent=49 // pred_fallthru
          _
        %405 = vnop
        // Predicated region
        $region89: #{custom-call.11} parent=49 // pred_check
          %p406 = pneg %p34
        $region90: #{custom-call.11} parent=49 // pred_check_branch
          %408 = sbr.rel (%p406) target = $region92
        $region91: #{custom-call.11} parent=49 // pred_region
          %s409 = sshrl.u32 %s14, 3
          %411 = vsyncadd %s363, 0
          %s412 = smul.addr %s409, 2
          %s413 = scalar_lea.hbm %s2, %s412
          %s415 = sshll.u32 %s366, 4
          %s416 = int_to_ptr.vmem [resolvable:$true] %s415
          %s417 = sshll.u32 %s413, 4
          %s418 = int_to_ptr.hbm [resolvable:$true] %s417
          %420 = dma.vmem_to_hbm [thread:$0]  %s416, 32, %s418, %s363
        $region92: #{custom-call.11} parent=49 // pred_fallthru
          _
        // Predicated region
        $region93: #{custom-call.11} parent=49 // pred_check
          %p421 = pneg %p62
        $region94: #{custom-call.11} parent=49 // pred_check_branch
          %423 = sbr.rel (%p421) target = $region96
        $region95: #{custom-call.11} parent=49 // pred_region
          %s424 = sshrl.u32 %s14, 3
          %s425 = smul.addr %s424, 2
          %s426 = scalar_lea.vmem %s3, %s425
          // Predicated region
          $region97: #{custom-call.11} parent=95 // pred_check
            _
          $region98: #{custom-call.11} parent=95 // pred_check_branch
            %428 = sbr.rel (0) target = $region100
          $region99: #{custom-call.11} parent=95 // pred_region
            // Predicated region
            $region101: #{custom-call.11} parent=99 // pred_check
              _
            $region102: #{custom-call.11} parent=99 // pred_check_branch
              %430 = sbr.rel target = $region104
            $region103: #{custom-call.11} parent=99 // pred_region
              // Predicated region
              $region116: #{custom-call.11} parent=103 // pred_check
                _
              $region117: #{custom-call.11} parent=103 // pred_check_branch
                %446 = sbr.rel (0) target = $region119
              $region118: #{custom-call.11} parent=103 // pred_region
                %s448 = ssub.s32 4, 1
                loop: start=0, step=1, limit=1
                $region120: #{custom-call.11} parent=118 // loop_pre_header
                  _
                $region121: #{custom-call.11} parent=118 // loop_header
                  %s450 = sphi 0, %s454
                  %p451 = scmp.ge.s32.totalorder %s450, 1
                  %s455 = sphi %s370, %s370
                  %s456 = sphi %s426, %s426
                $region122: #{custom-call.11} parent=118 // loop_header_branch
                  %453 = sbr.rel (%p451) target = $region126
                $region123: #{custom-call.11} parent=118 // loop_body
                  %v457 = vld [vmem:[%s455] sm:%s448]
                  %458 = vst [vmem:[%s456] sm:%s448] %v457
                $region124: #{custom-call.11} parent=118 // loop_footer
                  %s454 = sadd.s32 1, %s450
                $region125: #{custom-call.11} parent=118 // loop_footer_branch
                  %449 = sbr.rel target = $region121
                $region126: #{custom-call.11} parent=118 // loop_exit
                  _
              $region119: #{custom-call.11} parent=103 // pred_fallthru
                _
            $region104: #{custom-call.11} parent=99 // pred_fallthru
              _
            // Predicated region
            $region105: #{custom-call.11} parent=99 // pred_check
              _
            $region106: #{custom-call.11} parent=99 // pred_check_branch
              %432 = sbr.rel (0) target = $region108
            $region107: #{custom-call.11} parent=99 // pred_region
              %s434 = ssub.s32 4, 1
              loop: start=0, step=1, limit=1
              $region109: #{custom-call.11} parent=107 // loop_pre_header
                _
              $region110: #{custom-call.11} parent=107 // loop_header
                %s436 = sphi 0, %s440
                %p437 = scmp.ge.s32.totalorder %s436, 1
                %s441 = sphi %s370, %s370
                %s442 = sphi %s426, %s426
              $region111: #{custom-call.11} parent=107 // loop_header_branch
                %439 = sbr.rel (%p437) target = $region115
              $region112: #{custom-call.11} parent=107 // loop_body
                %v443 = vld [vmem:[%s441] sm:%s434]
                %444 = vst [vmem:[%s442] sm:%s434] %v443
              $region113: #{custom-call.11} parent=107 // loop_footer
                %s440 = sadd.s32 1, %s436
              $region114: #{custom-call.11} parent=107 // loop_footer_branch
                %435 = sbr.rel target = $region110
              $region115: #{custom-call.11} parent=107 // loop_exit
                _
            $region108: #{custom-call.11} parent=99 // pred_fallthru
              _
          $region100: #{custom-call.11} parent=95 // pred_fallthru
            _
          %459 = vnop
        $region96: #{custom-call.11} parent=49 // pred_fallthru
          _
      $region50: #{custom-call.11} parent=5 // pred_fallthru
        _
      %p460 = scmp.le.s32.totalorder 2, %s9
      // Predicated region
      $region127: #{custom-call.11} parent=5 // pred_check
        %p461 = pneg %p460
      $region128: #{custom-call.11} parent=5 // pred_check_branch
        %463 = sbr.rel (%p461) target = $region130
      $region129: #{custom-call.11} parent=5 // pred_region
        %s464 = ssub.s32 %s9, 2
        %s465 = sand.u32 %s15, 1
        %s466 = sand.u32 %s15, 1
        %s467 = smul.addr %s466, 4
        %s468 = scalar_lea.vmem [#allocation3], %s467
        // Predicated region
        $region131: #{custom-call.11} parent=129 // pred_check
          %p469 = pneg %p40
        $region132: #{custom-call.11} parent=129 // pred_check_branch
          %471 = sbr.rel (%p469) target = $region134
        $region133: #{custom-call.11} parent=129 // pred_region
          %s472 = sand.u32 %s25, 1
          %s473 = scalar_lea.sflag [#allocation6], %s472
          %s474 = sand.u32 %s25, 1
          %s475 = smul.addr %s474, 2
          %s476 = scalar_lea.vmem [#allocation5], %s475
          %478 = dma.done %s473, 32
        $region134: #{custom-call.11} parent=129 // pred_fallthru
          _
        // Predicated region
        $region135: #{custom-call.11} parent=129 // pred_check
          %p479 = pneg %p68
        $region136: #{custom-call.11} parent=129 // pred_check_branch
          %481 = sbr.rel (%p479) target = $region138
        $region137: #{custom-call.11} parent=129 // pred_region
          %s482 = sand.u32 %s53, 1
          %s483 = sand.u32 %s53, 1
          %s484 = smul.addr %s483, 2
          %s485 = scalar_lea.vmem [#allocation8], %s484
        $region138: #{custom-call.11} parent=129 // pred_fallthru
          _
      $region130: #{custom-call.11} parent=5 // pred_fallthru
        _
    $region6: #{custom-call.11} parent=1 // loop_footer
      %s13 = sadd.s32 1, %s9
    $region7: #{custom-call.11} parent=1 // loop_footer_branch
      %8 = sbr.rel target = $region3
    $region8: #{custom-call.11} parent=1 // loop_exit
      _
    %486 = vsyncpa [#allocation6], 1
    %s487 = scalar_lea.sflag [#allocation6], 1
    %488 = vsyncpa %s487, 1

// kernel: custom-call.13
$region0: #{custom-call.13}
  %s0 = inlined_call_operand.vmem [shape: f32[2,1,3,3], index: 0, kind: input, shape index: {}]
  %s1 = inlined_call_operand.vmem [shape: f32[2,1,3,3], index: 1, kind: output, shape index: {}]
  $region1: #{custom-call.13} parent=0
    #allocation0 [shape = 'u8[4096]{0}', space=vmem, size = 0x1000, scoped, tag = 'operand span for operand 0']
    #allocation1 [shape = 'u8[4096]{0}', space=vmem, size = 0x1000, scoped, tag = 'packed  for operand 0']
    #allocation2 [shape = 'u8[4096]{0}', space=vmem, size = 0x1000, scoped, tag = 'operand span for operand 1']
    #allocation3 [shape = 'u8[4096]{0}', space=vmem, size = 0x1000, scoped, tag = 'packed  for operand 1']
    loop: start=0, step=1, limit=4
    $region2: #{custom-call.13} parent=1 // loop_pre_header
      _
    $region3: #{custom-call.13} parent=1 // loop_header
      %s3 = sphi 0, %s7
      %p4 = scmp.ge.s32.totalorder %s3, 4
      %s10 = sphi 0, %s36
      %s11 = sphi 0, %s32
      %s12 = sphi 0, %s28
      %s13 = sphi 0, %s24
      %s14 = sphi 0, %s10
      %s15 = sphi 0, %s11
      %s16 = sphi 0, %s12
      %s17 = sphi 0, %s13
      %s18 = sphi 0, %s14
      %s19 = sphi 0, %s15
      %s20 = sphi 0, %s16
      %s21 = sphi 0, %s17
    $region4: #{custom-call.13} parent=1 // loop_header_branch
      %6 = sbr.rel (%p4) target = $region8
    $region5: #{custom-call.13} parent=1 // loop_body
      %s8 = ssub.s32 %s3, 1
      %s9 = ssub.s32 %s3, 2
      %s22 = sadd.s32 1, %s13
      %p23 = scmp.ge.s32.totalorder %s22, 1
      %s24 = scalar_select %p23, 0, %s22
      %s25 = sadd.s32 1, %s12
      %s26 = scalar_select %p23, %s25, %s12
      %p27 = scmp.ge.s32.totalorder %s26, 1
      %s28 = scalar_select %p27, 0, %s26
      %s29 = sadd.s32 1, %s11
      %s30 = scalar_select %p27, %s29, %s11
      %p31 = scmp.ge.s32.totalorder %s30, 1
      %s32 = scalar_select %p31, 0, %s30
      %s33 = sadd.s32 1, %s10
      %s34 = scalar_select %p31, %s33, %s10
      %p35 = scmp.ge.s32.totalorder %s34, 2
      %s36 = scalar_select %p35, 0, %s34
      %p37 = scmp.le.s32.totalorder 1, %s3
      %p38 = scmp.lt.s32.totalorder %s3, 3
      %p39 = pnand %p37, %p38
      %p40 = pneg %p39
      // Predicated region
      $region9: #{custom-call.13} parent=5 // pred_check
        _
      $region10: #{custom-call.13} parent=5 // pred_check_branch
        %42 = sbr.rel (%p39) target = $region12
      $region11: #{custom-call.13} parent=5 // pred_region
        %s43 = ssub.s32 %s3, 1
      $region12: #{custom-call.13} parent=5 // pred_fallthru
        _
      %p44 = scmp.lt.s32.totalorder %s3, 2
      // Predicated region
      $region13: #{custom-call.13} parent=5 // pred_check
        %p45 = pneg %p44
      $region14: #{custom-call.13} parent=5 // pred_check_branch
        %47 = sbr.rel (%p45) target = $region16
      $region15: #{custom-call.13} parent=5 // pred_region
        %s48 = sand.u32 %s3, 1
        %s49 = sand.u32 %s3, 1
        %s50 = smul.addr %s49, 4
        %s51 = scalar_lea.vmem [#allocation1], %s50
        %s52 = sadd.s32 %s13, %s12
        %s53 = sadd.s32 %s52, %s11
        %s54 = sadd.s32 %s53, %s10
        %s55 = smul.addr %s54, 4
        %s56 = scalar_lea.vmem %s0, %s55
        // Predicated region
        $region17: #{custom-call.13} parent=15 // pred_check
          _
        $region18: #{custom-call.13} parent=15 // pred_check_branch
          %58 = sbr.rel (0) target = $region20
        $region19: #{custom-call.13} parent=15 // pred_region
          // Predicated region
          $region21: #{custom-call.13} parent=19 // pred_check
            _
          $region22: #{custom-call.13} parent=19 // pred_check_branch
            %60 = sbr.rel target = $region24
          $region23: #{custom-call.13} parent=19 // pred_region
            // Predicated region
            $region36: #{custom-call.13} parent=23 // pred_check
              _
            $region37: #{custom-call.13} parent=23 // pred_check_branch
              %76 = sbr.rel (0) target = $region39
            $region38: #{custom-call.13} parent=23 // pred_region
              %s78 = ssub.s32 16, 1
              loop: start=0, step=1, limit=1
              $region40: #{custom-call.13} parent=38 // loop_pre_header
                _
              $region41: #{custom-call.13} parent=38 // loop_header
                %s80 = sphi 0, %s84
                %p81 = scmp.ge.s32.totalorder %s80, 1
                %s85 = sphi %s56, %s56
                %s86 = sphi %s51, %s51
              $region42: #{custom-call.13} parent=38 // loop_header_branch
                %83 = sbr.rel (%p81) target = $region46
              $region43: #{custom-call.13} parent=38 // loop_body
                %v87 = vld [vmem:[%s85] sm:%s78]
                %88 = vst [vmem:[%s86] sm:%s78] %v87
              $region44: #{custom-call.13} parent=38 // loop_footer
                %s84 = sadd.s32 1, %s80
              $region45: #{custom-call.13} parent=38 // loop_footer_branch
                %79 = sbr.rel target = $region41
              $region46: #{custom-call.13} parent=38 // loop_exit
                _
            $region39: #{custom-call.13} parent=23 // pred_fallthru
              _
          $region24: #{custom-call.13} parent=19 // pred_fallthru
            _
          // Predicated region
          $region25: #{custom-call.13} parent=19 // pred_check
            _
          $region26: #{custom-call.13} parent=19 // pred_check_branch
            %62 = sbr.rel (0) target = $region28
          $region27: #{custom-call.13} parent=19 // pred_region
            %s64 = ssub.s32 16, 1
            loop: start=0, step=1, limit=1
            $region29: #{custom-call.13} parent=27 // loop_pre_header
              _
            $region30: #{custom-call.13} parent=27 // loop_header
              %s66 = sphi 0, %s70
              %p67 = scmp.ge.s32.totalorder %s66, 1
              %s71 = sphi %s56, %s56
              %s72 = sphi %s51, %s51
            $region31: #{custom-call.13} parent=27 // loop_header_branch
              %69 = sbr.rel (%p67) target = $region35
            $region32: #{custom-call.13} parent=27 // loop_body
              %v73 = vld [vmem:[%s71] sm:%s64]
              %74 = vst [vmem:[%s72] sm:%s64] %v73
            $region33: #{custom-call.13} parent=27 // loop_footer
              %s70 = sadd.s32 1, %s66
            $region34: #{custom-call.13} parent=27 // loop_footer_branch
              %65 = sbr.rel target = $region30
            $region35: #{custom-call.13} parent=27 // loop_exit
              _
          $region28: #{custom-call.13} parent=19 // pred_fallthru
            _
        $region20: #{custom-call.13} parent=15 // pred_fallthru
          _
        %89 = vnop
      $region16: #{custom-call.13} parent=5 // pred_fallthru
        _
      %p90 = scmp.le.s32.totalorder 1, %s3
      %p91 = scmp.lt.s32.totalorder %s3, 3
      %p92 = pnand %p90, %p91
      %p93 = pneg %p92
      // Predicated region
      $region47: #{custom-call.13} parent=5 // pred_check
        _
      $region48: #{custom-call.13} parent=5 // pred_check_branch
        %95 = sbr.rel (%p92) target = $region50
      $region49: #{custom-call.13} parent=5 // pred_region
        #allocation4 [shape = 'f32[3,3]{1,0}', space=vmem, size = 0x1000, scoped, tag = 'rescaled input a']
        %s96 = ssub.s32 %s3, 1
        %s97 = sand.u32 %s8, 1
        %s98 = sand.u32 %s8, 1
        %s99 = smul.addr %s98, 4
        %s100 = scalar_lea.vmem [#allocation1], %s99
        %s101 = sand.u32 %s8, 1
        %s102 = sand.u32 %s8, 1
        %s103 = smul.addr %s102, 4
        %s104 = scalar_lea.vmem [#allocation1], %s103
        %s105 = sand.u32 %s8, 1
        %s106 = sand.u32 %s8, 1
        %s107 = smul.addr %s106, 4
        %s108 = scalar_lea.vmem [#allocation3], %s107
        %s110 = ssub.s32 16, 1
        %v111 = vld [vmem:[%s104] sm:%s110]
        %112 = vst [vmem:[#allocation0] sm:%s110] %v111
        %v113 = vlaneseq
        %v114 = vand.u32 %v113, 127
        %vm115 = vcmp.lt.s32.totalorder %v114, 3
        %v116 = vlaneseq
        %v117 = vshrl.u32 %v116, 7
        %vm119 = vcmp.eq.s32.totalorder %v117, %v114
        %v120 = vld [vmem:[#allocation0] sm:$0xff]
        %v121 = vsel %vm119, %v120, 0.0
        %122 = vadd.xlane.f32.xlu0 %v121
        %v123 = vpop.xlane.xlu0 %122
        %vm124 = vcmp.ge.s32.totalorder %v117, %v114
        %vm125 = vmand %vm124, %vm115
        %v126 = vsel %vm125, %v120, 0.0
        %v127 = vrcp.pop %v123
        %v128 = vmul.f32 %v123, %v127
        %v129 = vsub.f32 1.0, %v128
        %v130 = vmul.f32 %v127, %v129
        %v131 = vadd.f32 %v127, %v130
        %vm132 = vweird.f32 %v123
        %vm133 = vweird.f32 %v127
        %vm134 = vmor %vm132, %vm133
        %v135 = vsel %vm134, %v127, %v131
        %v136 = vand.u32 2147483647, %v123
        %vm137 = vcmp.eq.f32.partialorder %v136, 8.507059e+37
        %v138 = vand.u32 %v123, 2147483648
        %v139 = vor.u32 1.1754944e-38, %v138
        %v140 = vsel %vm137, %v139, %v135
        %v141 = vmul.f32 %v126, %v140
        %142 = vst [vmem:[#allocation4] sm:$0xff] %v141
        %v143 = vlaneseq
        %v144 = vand.u32 %v143, 127
        %v145 = vlaneseq
        %v146 = vshrl.u32 %v145, 7
        %vm148 = vcmp.eq.s32.totalorder %v144, %v146
        %v149 = vlaneseq
        %v150 = vand.u32 %v149, 127
        %vm151 = vcmp.eq.s32.totalorder %v150, 0
        %v152 = vsel %vm151, 1.0, -1.0
        %v153 = vsel %vm148, %v152, 0.0
        %s154 = scalar_lea.vmem [#allocation4], 1
        %v155 = vld [vmem:[%s154] ss:$0 sm:$0xff]
        %v156 = vxor.u32 %v155, 2147483648
        %v157 = vlaneseq
        %v158 = vand.u32 %v157, 127
        %vm159 = vcmp.eq.s32.totalorder %v158, 1
        %v160 = vmul.f32 %v156, %v153
        %161 = vadd.xlane.f32.xlu0 %v160
        %v162 = vpop.xlane.xlu0 %161
        %v163 = vsel %vm159, %v162, %v153
        %s164 = scalar_lea.vmem [#allocation4], 2
        %v165 = vld [vmem:[%s164] ss:$0 sm:$0xff]
        %v166 = vxor.u32 %v165, 2147483648
        %v167 = vlaneseq
        %v168 = vand.u32 %v167, 127
        %vm169 = vcmp.eq.s32.totalorder %v168, 2
        %v170 = vmul.f32 %v166, %v163
        %171 = vadd.xlane.f32.xlu0 %v170
        %v172 = vpop.xlane.xlu0 %171
        %v173 = vsel %vm169, %v172, %v163
        %v174 = vrcp.pop %v123
        %v175 = vmul.f32 %v123, %v174
        %v176 = vsub.f32 1.0, %v175
        %v177 = vmul.f32 %v174, %v176
        %v178 = vadd.f32 %v174, %v177
        %vm179 = vweird.f32 %v123
        %vm180 = vweird.f32 %v174
        %vm181 = vmor %vm179, %vm180
        %v182 = vsel %vm181, %v174, %v178
        %v183 = vand.u32 2147483647, %v123
        %vm184 = vcmp.eq.f32.partialorder %v183, 8.507059e+37
        %v185 = vand.u32 %v123, 2147483648
        %v186 = vor.u32 1.1754944e-38, %v185
        %v187 = vsel %vm184, %v186, %v182
        %v188 = vmul.f32 %v173, %v187
        %vm189 = vweird.f32 %v123
        %v190 = vsel %vm189, %v173, %v188
        %191 = vst [vmem:[#allocation2] sm:$0xff] %v190
        %s193 = ssub.s32 16, 1
        %v194 = vld [vmem:[#allocation2] sm:%s193]
        %s196 = ssub.s32 16, 1
        %197 = vst [vmem:[%s108] sm:%s196] %v194
        %s198 = sand.u32 %s8, 1
        %s199 = sand.u32 %s8, 1
        %s200 = smul.addr %s199, 4
        %s201 = scalar_lea.vmem [#allocation3], %s200
        %s202 = sadd.s32 %s17, %s16
        %s203 = sadd.s32 %s202, %s15
        %s204 = sadd.s32 %s203, %s14
        %s205 = smul.addr %s204, 4
        %s206 = scalar_lea.vmem %s1, %s205
        // Predicated region
        $region51: #{custom-call.13} parent=49 // pred_check
          _
        $region52: #{custom-call.13} parent=49 // pred_check_branch
          %208 = sbr.rel (0) target = $region54
        $region53: #{custom-call.13} parent=49 // pred_region
          // Predicated region
          $region55: #{custom-call.13} parent=53 // pred_check
            _
          $region56: #{custom-call.13} parent=53 // pred_check_branch
            %210 = sbr.rel target = $region58
          $region57: #{custom-call.13} parent=53 // pred_region
            // Predicated region
            $region70: #{custom-call.13} parent=57 // pred_check
              _
            $region71: #{custom-call.13} parent=57 // pred_check_branch
              %226 = sbr.rel (0) target = $region73
            $region72: #{custom-call.13} parent=57 // pred_region
              %s228 = ssub.s32 16, 1
              loop: start=0, step=1, limit=1
              $region74: #{custom-call.13} parent=72 // loop_pre_header
                _
              $region75: #{custom-call.13} parent=72 // loop_header
                %s230 = sphi 0, %s234
                %p231 = scmp.ge.s32.totalorder %s230, 1
                %s235 = sphi %s201, %s201
                %s236 = sphi %s206, %s206
              $region76: #{custom-call.13} parent=72 // loop_header_branch
                %233 = sbr.rel (%p231) target = $region80
              $region77: #{custom-call.13} parent=72 // loop_body
                %v237 = vld [vmem:[%s235] sm:%s228]
                %238 = vst [vmem:[%s236] sm:%s228] %v237
              $region78: #{custom-call.13} parent=72 // loop_footer
                %s234 = sadd.s32 1, %s230
              $region79: #{custom-call.13} parent=72 // loop_footer_branch
                %229 = sbr.rel target = $region75
              $region80: #{custom-call.13} parent=72 // loop_exit
                _
            $region73: #{custom-call.13} parent=57 // pred_fallthru
              _
          $region58: #{custom-call.13} parent=53 // pred_fallthru
            _
          // Predicated region
          $region59: #{custom-call.13} parent=53 // pred_check
            _
          $region60: #{custom-call.13} parent=53 // pred_check_branch
            %212 = sbr.rel (0) target = $region62
          $region61: #{custom-call.13} parent=53 // pred_region
            %s214 = ssub.s32 16, 1
            loop: start=0, step=1, limit=1
            $region63: #{custom-call.13} parent=61 // loop_pre_header
              _
            $region64: #{custom-call.13} parent=61 // loop_header
              %s216 = sphi 0, %s220
              %p217 = scmp.ge.s32.totalorder %s216, 1
              %s221 = sphi %s201, %s201
              %s222 = sphi %s206, %s206
            $region65: #{custom-call.13} parent=61 // loop_header_branch
              %219 = sbr.rel (%p217) target = $region69
            $region66: #{custom-call.13} parent=61 // loop_body
              %v223 = vld [vmem:[%s221] sm:%s214]
              %224 = vst [vmem:[%s222] sm:%s214] %v223
            $region67: #{custom-call.13} parent=61 // loop_footer
              %s220 = sadd.s32 1, %s216
            $region68: #{custom-call.13} parent=61 // loop_footer_branch
              %215 = sbr.rel target = $region64
            $region69: #{custom-call.13} parent=61 // loop_exit
              _
          $region62: #{custom-call.13} parent=53 // pred_fallthru
            _
        $region54: #{custom-call.13} parent=49 // pred_fallthru
          _
        %239 = vnop
      $region50: #{custom-call.13} parent=5 // pred_fallthru
        _
      %p240 = scmp.le.s32.totalorder 2, %s3
      // Predicated region
      $region81: #{custom-call.13} parent=5 // pred_check
        %p241 = pneg %p240
      $region82: #{custom-call.13} parent=5 // pred_check_branch
        %243 = sbr.rel (%p241) target = $region84
      $region83: #{custom-call.13} parent=5 // pred_region
        %s244 = ssub.s32 %s3, 2
        %s245 = sand.u32 %s9, 1
        %s246 = sand.u32 %s9, 1
        %s247 = smul.addr %s246, 4
        %s248 = scalar_lea.vmem [#allocation3], %s247
      $region84: #{custom-call.13} parent=5 // pred_fallthru
        _
    $region6: #{custom-call.13} parent=1 // loop_footer
      %s7 = sadd.s32 1, %s3
    $region7: #{custom-call.13} parent=1 // loop_footer_branch
      %2 = sbr.rel target = $region3
    $region8: #{custom-call.13} parent=1 // loop_exit
      _

// kernel: custom-call.12
$region0: #{custom-call.12}
  %s0 = inlined_call_operand.vmem [shape: f32[2,1,3,3], index: 0, kind: input, shape index: {}]
  %s1 = inlined_call_operand.vmem [shape: f32[2,1,3,3], index: 1, kind: output, shape index: {}]
  $region1: #{custom-call.12} parent=0
    #allocation0 [shape = 'u8[4096]{0}', space=vmem, size = 0x1000, scoped, tag = 'operand span for operand 0']
    #allocation1 [shape = 'u8[4096]{0}', space=vmem, size = 0x1000, scoped, tag = 'packed  for operand 0']
    #allocation2 [shape = 'u8[4096]{0}', space=vmem, size = 0x1000, scoped, tag = 'operand span for operand 1']
    #allocation3 [shape = 'u8[4096]{0}', space=vmem, size = 0x1000, scoped, tag = 'packed  for operand 1']
    loop: start=0, step=1, limit=4
    $region2: #{custom-call.12} parent=1 // loop_pre_header
      _
    $region3: #{custom-call.12} parent=1 // loop_header
      %s3 = sphi 0, %s7
      %p4 = scmp.ge.s32.totalorder %s3, 4
      %s10 = sphi 0, %s36
      %s11 = sphi 0, %s32
      %s12 = sphi 0, %s28
      %s13 = sphi 0, %s24
      %s14 = sphi 0, %s10
      %s15 = sphi 0, %s11
      %s16 = sphi 0, %s12
      %s17 = sphi 0, %s13
      %s18 = sphi 0, %s14
      %s19 = sphi 0, %s15
      %s20 = sphi 0, %s16
      %s21 = sphi 0, %s17
    $region4: #{custom-call.12} parent=1 // loop_header_branch
      %6 = sbr.rel (%p4) target = $region8
    $region5: #{custom-call.12} parent=1 // loop_body
      %s8 = ssub.s32 %s3, 1
      %s9 = ssub.s32 %s3, 2
      %s22 = sadd.s32 1, %s13
      %p23 = scmp.ge.s32.totalorder %s22, 1
      %s24 = scalar_select %p23, 0, %s22
      %s25 = sadd.s32 1, %s12
      %s26 = scalar_select %p23, %s25, %s12
      %p27 = scmp.ge.s32.totalorder %s26, 1
      %s28 = scalar_select %p27, 0, %s26
      %s29 = sadd.s32 1, %s11
      %s30 = scalar_select %p27, %s29, %s11
      %p31 = scmp.ge.s32.totalorder %s30, 1
      %s32 = scalar_select %p31, 0, %s30
      %s33 = sadd.s32 1, %s10
      %s34 = scalar_select %p31, %s33, %s10
      %p35 = scmp.ge.s32.totalorder %s34, 2
      %s36 = scalar_select %p35, 0, %s34
      %p37 = scmp.le.s32.totalorder 1, %s3
      %p38 = scmp.lt.s32.totalorder %s3, 3
      %p39 = pnand %p37, %p38
      %p40 = pneg %p39
      // Predicated region
      $region9: #{custom-call.12} parent=5 // pred_check
        _
      $region10: #{custom-call.12} parent=5 // pred_check_branch
        %42 = sbr.rel (%p39) target = $region12
      $region11: #{custom-call.12} parent=5 // pred_region
        %s43 = ssub.s32 %s3, 1
      $region12: #{custom-call.12} parent=5 // pred_fallthru
        _
      %p44 = scmp.lt.s32.totalorder %s3, 2
      // Predicated region
      $region13: #{custom-call.12} parent=5 // pred_check
        %p45 = pneg %p44
      $region14: #{custom-call.12} parent=5 // pred_check_branch
        %47 = sbr.rel (%p45) target = $region16
      $region15: #{custom-call.12} parent=5 // pred_region
        %s48 = sand.u32 %s3, 1
        %s49 = sand.u32 %s3, 1
        %s50 = smul.addr %s49, 4
        %s51 = scalar_lea.vmem [#allocation1], %s50
        %s52 = sadd.s32 %s13, %s12
        %s53 = sadd.s32 %s52, %s11
        %s54 = sadd.s32 %s53, %s10
        %s55 = smul.addr %s54, 4
        %s56 = scalar_lea.vmem %s0, %s55
        // Predicated region
        $region17: #{custom-call.12} parent=15 // pred_check
          _
        $region18: #{custom-call.12} parent=15 // pred_check_branch
          %58 = sbr.rel (0) target = $region20
        $region19: #{custom-call.12} parent=15 // pred_region
          // Predicated region
          $region21: #{custom-call.12} parent=19 // pred_check
            _
          $region22: #{custom-call.12} parent=19 // pred_check_branch
            %60 = sbr.rel target = $region24
          $region23: #{custom-call.12} parent=19 // pred_region
            // Predicated region
            $region36: #{custom-call.12} parent=23 // pred_check
              _
            $region37: #{custom-call.12} parent=23 // pred_check_branch
              %76 = sbr.rel (0) target = $region39
            $region38: #{custom-call.12} parent=23 // pred_region
              %s78 = ssub.s32 16, 1
              loop: start=0, step=1, limit=1
              $region40: #{custom-call.12} parent=38 // loop_pre_header
                _
              $region41: #{custom-call.12} parent=38 // loop_header
                %s80 = sphi 0, %s84
                %p81 = scmp.ge.s32.totalorder %s80, 1
                %s85 = sphi %s56, %s56
                %s86 = sphi %s51, %s51
              $region42: #{custom-call.12} parent=38 // loop_header_branch
                %83 = sbr.rel (%p81) target = $region46
              $region43: #{custom-call.12} parent=38 // loop_body
                %v87 = vld [vmem:[%s85] sm:%s78]
                %88 = vst [vmem:[%s86] sm:%s78] %v87
              $region44: #{custom-call.12} parent=38 // loop_footer
                %s84 = sadd.s32 1, %s80
              $region45: #{custom-call.12} parent=38 // loop_footer_branch
                %79 = sbr.rel target = $region41
              $region46: #{custom-call.12} parent=38 // loop_exit
                _
            $region39: #{custom-call.12} parent=23 // pred_fallthru
              _
          $region24: #{custom-call.12} parent=19 // pred_fallthru
            _
          // Predicated region
          $region25: #{custom-call.12} parent=19 // pred_check
            _
          $region26: #{custom-call.12} parent=19 // pred_check_branch
            %62 = sbr.rel (0) target = $region28
          $region27: #{custom-call.12} parent=19 // pred_region
            %s64 = ssub.s32 16, 1
            loop: start=0, step=1, limit=1
            $region29: #{custom-call.12} parent=27 // loop_pre_header
              _
            $region30: #{custom-call.12} parent=27 // loop_header
              %s66 = sphi 0, %s70
              %p67 = scmp.ge.s32.totalorder %s66, 1
              %s71 = sphi %s56, %s56
              %s72 = sphi %s51, %s51
            $region31: #{custom-call.12} parent=27 // loop_header_branch
              %69 = sbr.rel (%p67) target = $region35
            $region32: #{custom-call.12} parent=27 // loop_body
              %v73 = vld [vmem:[%s71] sm:%s64]
              %74 = vst [vmem:[%s72] sm:%s64] %v73
            $region33: #{custom-call.12} parent=27 // loop_footer
              %s70 = sadd.s32 1, %s66
            $region34: #{custom-call.12} parent=27 // loop_footer_branch
              %65 = sbr.rel target = $region30
            $region35: #{custom-call.12} parent=27 // loop_exit
              _
          $region28: #{custom-call.12} parent=19 // pred_fallthru
            _
        $region20: #{custom-call.12} parent=15 // pred_fallthru
          _
        %89 = vnop
      $region16: #{custom-call.12} parent=5 // pred_fallthru
        _
      %p90 = scmp.le.s32.totalorder 1, %s3
      %p91 = scmp.lt.s32.totalorder %s3, 3
      %p92 = pnand %p90, %p91
      %p93 = pneg %p92
      // Predicated region
      $region47: #{custom-call.12} parent=5 // pred_check
        _
      $region48: #{custom-call.12} parent=5 // pred_check_branch
        %95 = sbr.rel (%p92) target = $region50
      $region49: #{custom-call.12} parent=5 // pred_region
        #allocation4 [shape = 'f32[3,3]{1,0}', space=vmem, size = 0x1000, scoped, tag = 'rescaled input a']
        %s96 = ssub.s32 %s3, 1
        %s97 = sand.u32 %s8, 1
        %s98 = sand.u32 %s8, 1
        %s99 = smul.addr %s98, 4
        %s100 = scalar_lea.vmem [#allocation1], %s99
        %s101 = sand.u32 %s8, 1
        %s102 = sand.u32 %s8, 1
        %s103 = smul.addr %s102, 4
        %s104 = scalar_lea.vmem [#allocation1], %s103
        %s105 = sand.u32 %s8, 1
        %s106 = sand.u32 %s8, 1
        %s107 = smul.addr %s106, 4
        %s108 = scalar_lea.vmem [#allocation3], %s107
        %s110 = ssub.s32 16, 1
        %v111 = vld [vmem:[%s104] sm:%s110]
        %112 = vst [vmem:[#allocation0] sm:%s110] %v111
        %v113 = vlaneseq
        %v114 = vand.u32 %v113, 127
        %vm115 = vcmp.lt.s32.totalorder %v114, 3
        %v116 = vlaneseq
        %v117 = vshrl.u32 %v116, 7
        %vm119 = vcmp.eq.s32.totalorder %v117, %v114
        %v120 = vld [vmem:[#allocation0] sm:$0xff]
        %v121 = vsel %vm119, %v120, 0.0
        %122 = vadd.xlane.f32.xlu0 %v121
        %v123 = vpop.xlane.xlu0 %122
        %vm124 = vcmp.le.s32.totalorder %v117, %v114
        %vm125 = vmand %vm124, %vm115
        %v126 = vsel %vm125, %v120, 0.0
        %v127 = vrcp.pop %v123
        %v128 = vmul.f32 %v123, %v127
        %v129 = vsub.f32 1.0, %v128
        %v130 = vmul.f32 %v127, %v129
        %v131 = vadd.f32 %v127, %v130
        %vm132 = vweird.f32 %v123
        %vm133 = vweird.f32 %v127
        %vm134 = vmor %vm132, %vm133
        %v135 = vsel %vm134, %v127, %v131
        %v136 = vand.u32 2147483647, %v123
        %vm137 = vcmp.eq.f32.partialorder %v136, 8.507059e+37
        %v138 = vand.u32 %v123, 2147483648
        %v139 = vor.u32 1.1754944e-38, %v138
        %v140 = vsel %vm137, %v139, %v135
        %v141 = vmul.f32 %v126, %v140
        %142 = vst [vmem:[#allocation4] sm:$0xff] %v141
        %v143 = vlaneseq
        %v144 = vand.u32 %v143, 127
        %v145 = vlaneseq
        %v146 = vshrl.u32 %v145, 7
        %vm148 = vcmp.eq.s32.totalorder %v144, %v146
        %v149 = vlaneseq
        %v150 = vand.u32 %v149, 127
        %vm151 = vcmp.eq.s32.totalorder %v150, 2
        %v152 = vsel %vm151, 1.0, -1.0
        %v153 = vsel %vm148, %v152, 0.0
        %s154 = scalar_lea.vmem [#allocation4], 1
        %v155 = vld [vmem:[%s154] ss:$0 sm:$0xff]
        %v156 = vxor.u32 %v155, 2147483648
        %v157 = vlaneseq
        %v158 = vand.u32 %v157, 127
        %vm159 = vcmp.eq.s32.totalorder %v158, 1
        %v160 = vmul.f32 %v156, %v153
        %161 = vadd.xlane.f32.xlu0 %v160
        %v162 = vpop.xlane.xlu0 %161
        %v163 = vsel %vm159, %v162, %v153
        %v164 = vld [vmem:[#allocation4] ss:$0 sm:$0xff]
        %v165 = vxor.u32 %v164, 2147483648
        %v166 = vlaneseq
        %v167 = vand.u32 %v166, 127
        %vm168 = vcmp.eq.s32.totalorder %v167, 0
        %v169 = vmul.f32 %v165, %v163
        %170 = vadd.xlane.f32.xlu0 %v169
        %v171 = vpop.xlane.xlu0 %170
        %v172 = vsel %vm168, %v171, %v163
        %v173 = vrcp.pop %v123
        %v174 = vmul.f32 %v123, %v173
        %v175 = vsub.f32 1.0, %v174
        %v176 = vmul.f32 %v173, %v175
        %v177 = vadd.f32 %v173, %v176
        %vm178 = vweird.f32 %v123
        %vm179 = vweird.f32 %v173
        %vm180 = vmor %vm178, %vm179
        %v181 = vsel %vm180, %v173, %v177
        %v182 = vand.u32 2147483647, %v123
        %vm183 = vcmp.eq.f32.partialorder %v182, 8.507059e+37
        %v184 = vand.u32 %v123, 2147483648
        %v185 = vor.u32 1.1754944e-38, %v184
        %v186 = vsel %vm183, %v185, %v181
        %v187 = vmul.f32 %v172, %v186
        %vm188 = vweird.f32 %v123
        %v189 = vsel %vm188, %v172, %v187
        %190 = vst [vmem:[#allocation2] sm:$0xff] %v189
        %s192 = ssub.s32 16, 1
        %v193 = vld [vmem:[#allocation2] sm:%s192]
        %s195 = ssub.s32 16, 1
        %196 = vst [vmem:[%s108] sm:%s195] %v193
        %s197 = sand.u32 %s8, 1
        %s198 = sand.u32 %s8, 1
        %s199 = smul.addr %s198, 4
        %s200 = scalar_lea.vmem [#allocation3], %s199
        %s201 = sadd.s32 %s17, %s16
        %s202 = sadd.s32 %s201, %s15
        %s203 = sadd.s32 %s202, %s14
        %s204 = smul.addr %s203, 4
        %s205 = scalar_lea.vmem %s1, %s204
        // Predicated region
        $region51: #{custom-call.12} parent=49 // pred_check
          _
        $region52: #{custom-call.12} parent=49 // pred_check_branch
          %207 = sbr.rel (0) target = $region54
        $region53: #{custom-call.12} parent=49 // pred_region
          // Predicated region
          $region55: #{custom-call.12} parent=53 // pred_check
            _
          $region56: #{custom-call.12} parent=53 // pred_check_branch
            %209 = sbr.rel target = $region58
          $region57: #{custom-call.12} parent=53 // pred_region
            // Predicated region
            $region70: #{custom-call.12} parent=57 // pred_check
              _
            $region71: #{custom-call.12} parent=57 // pred_check_branch
              %225 = sbr.rel (0) target = $region73
            $region72: #{custom-call.12} parent=57 // pred_region
              %s227 = ssub.s32 16, 1
              loop: start=0, step=1, limit=1
              $region74: #{custom-call.12} parent=72 // loop_pre_header
                _
              $region75: #{custom-call.12} parent=72 // loop_header
                %s229 = sphi 0, %s233
                %p230 = scmp.ge.s32.totalorder %s229, 1
                %s234 = sphi %s200, %s200
                %s235 = sphi %s205, %s205
              $region76: #{custom-call.12} parent=72 // loop_header_branch
                %232 = sbr.rel (%p230) target = $region80
              $region77: #{custom-call.12} parent=72 // loop_body
                %v236 = vld [vmem:[%s234] sm:%s227]
                %237 = vst [vmem:[%s235] sm:%s227] %v236
              $region78: #{custom-call.12} parent=72 // loop_footer
                %s233 = sadd.s32 1, %s229
              $region79: #{custom-call.12} parent=72 // loop_footer_branch
                %228 = sbr.rel target = $region75
              $region80: #{custom-call.12} parent=72 // loop_exit
                _
            $region73: #{custom-call.12} parent=57 // pred_fallthru
              _
          $region58: #{custom-call.12} parent=53 // pred_fallthru
            _
          // Predicated region
          $region59: #{custom-call.12} parent=53 // pred_check
            _
          $region60: #{custom-call.12} parent=53 // pred_check_branch
            %211 = sbr.rel (0) target = $region62
          $region61: #{custom-call.12} parent=53 // pred_region
            %s213 = ssub.s32 16, 1
            loop: start=0, step=1, limit=1
            $region63: #{custom-call.12} parent=61 // loop_pre_header
              _
            $region64: #{custom-call.12} parent=61 // loop_header
              %s215 = sphi 0, %s219
              %p216 = scmp.ge.s32.totalorder %s215, 1
              %s220 = sphi %s200, %s200
              %s221 = sphi %s205, %s205
            $region65: #{custom-call.12} parent=61 // loop_header_branch
              %218 = sbr.rel (%p216) target = $region69
            $region66: #{custom-call.12} parent=61 // loop_body
              %v222 = vld [vmem:[%s220] sm:%s213]
              %223 = vst [vmem:[%s221] sm:%s213] %v222
            $region67: #{custom-call.12} parent=61 // loop_footer
              %s219 = sadd.s32 1, %s215
            $region68: #{custom-call.12} parent=61 // loop_footer_branch
              %214 = sbr.rel target = $region64
            $region69: #{custom-call.12} parent=61 // loop_exit
              _
          $region62: #{custom-call.12} parent=53 // pred_fallthru
            _
        $region54: #{custom-call.12} parent=49 // pred_fallthru
          _
        %238 = vnop
      $region50: #{custom-call.12} parent=5 // pred_fallthru
        _
      %p239 = scmp.le.s32.totalorder 2, %s3
      // Predicated region
      $region81: #{custom-call.12} parent=5 // pred_check
        %p240 = pneg %p239
      $region82: #{custom-call.12} parent=5 // pred_check_branch
        %242 = sbr.rel (%p240) target = $region84
      $region83: #{custom-call.12} parent=5 // pred_region
        %s243 = ssub.s32 %s3, 2
        %s244 = sand.u32 %s9, 1
        %s245 = sand.u32 %s9, 1
        %s246 = smul.addr %s245, 4
        %s247 = scalar_lea.vmem [#allocation3], %s246
      $region84: #{custom-call.12} parent=5 // pred_fallthru
        _
    $region6: #{custom-call.12} parent=1 // loop_footer
      %s7 = sadd.s32 1, %s3
    $region7: #{custom-call.12} parent=1 // loop_footer_branch
      %2 = sbr.rel target = $region3
    $region8: #{custom-call.12} parent=1 // loop_exit
      _

// kernel: descriptor_loss_forward.1
$region0: #{descriptor_loss_forward.1}
  #allocation0 [shape = 'u32[]', space=smem, size = 0x4, offset = 0x4, fixed_abs, tag = 'smem constant byte address 0x4 - core index']
  #allocation1 [shape = 'u32[72,128]{1,0:T(1,128)}', space=vmem, size = 0x9000, scoped, tag = 'internal scratch']
  %s0 = inlined_call_operand.vmem [shape: f32[2,128,4], index: 0, kind: input, shape index: {}]
  %s1 = inlined_call_operand.vmem [shape: f32[2,4,128], index: 1, kind: input, shape index: {}]
  %s2 = inlined_call_operand.vmem [shape: bf16[2,128,64], index: 2, kind: input, shape index: {}]
  %s3 = inlined_call_operand.vmem [shape: bf16[2,128,64], index: 3, kind: input, shape index: {}]
  %s4 = inlined_call_operand.vmem [shape: f32[1,8,128], index: 4, kind: output, shape index: {}]
  %s5 = sld [smem:[#allocation0]]
  $region26: #{descriptor_loss_forward.1} parent=0
    _
  %s7 = ssub.s32 1, %s5
  %s8 = scalar_select 0, %s7, %s5
  // Predicated region
  $region2: #{descriptor_loss_forward.1} parent=0 // pred_check
    _
  $region3: #{descriptor_loss_forward.1} parent=0 // pred_check_branch
    %10 = sbr.rel (0) target = $region5
  $region4: #{descriptor_loss_forward.1} parent=0 // pred_region
    _
  $region5: #{descriptor_loss_forward.1} parent=0 // pred_fallthru
    _
  // Predicated region
  $region6: #{descriptor_loss_forward.1} parent=0 // pred_check
    _
  $region7: #{descriptor_loss_forward.1} parent=0 // pred_check_branch
    %12 = sbr.rel (0) target = $region9
  $region8: #{descriptor_loss_forward.1} parent=0 // pred_region
    _
  $region9: #{descriptor_loss_forward.1} parent=0 // pred_fallthru
    _
  // Predicated region
  $region10: #{descriptor_loss_forward.1} parent=0 // pred_check
    _
  $region11: #{descriptor_loss_forward.1} parent=0 // pred_check_branch
    %14 = sbr.rel (0) target = $region13
  $region12: #{descriptor_loss_forward.1} parent=0 // pred_region
    _
  $region13: #{descriptor_loss_forward.1} parent=0 // pred_fallthru
    _
  // Predicated region
  $region14: #{descriptor_loss_forward.1} parent=0 // pred_check
    _
  $region15: #{descriptor_loss_forward.1} parent=0 // pred_check_branch
    %16 = sbr.rel (0) target = $region17
  $region16: #{descriptor_loss_forward.1} parent=0 // pred_region
    _
  $region17: #{descriptor_loss_forward.1} parent=0 // pred_fallthru
    _
  %v17 = vld [vmem:[%s0] sm:$0xff]
  %v18 = vld [vmem:[%s0 + $0x8] sm:$0xff]
  %v19 = vld [vmem:[%s0 + $0x10] sm:$0xff]
  %v20 = vld [vmem:[%s0 + $0x18] sm:$0xff]
  %v21 = vld [vmem:[%s0 + $0x20] sm:$0xff]
  %v22 = vld [vmem:[%s0 + $0x28] sm:$0xff]
  %v23 = vld [vmem:[%s0 + $0x30] sm:$0xff]
  %v24 = vld [vmem:[%s0 + $0x38] sm:$0xff]
  %v25 = vld [vmem:[%s0 + $0x40] sm:$0xff]
  %v26 = vld [vmem:[%s0 + $0x48] sm:$0xff]
  %v27 = vld [vmem:[%s0 + $0x50] sm:$0xff]
  %v28 = vld [vmem:[%s0 + $0x58] sm:$0xff]
  %v29 = vld [vmem:[%s0 + $0x60] sm:$0xff]
  %v30 = vld [vmem:[%s0 + $0x68] sm:$0xff]
  %v31 = vld [vmem:[%s0 + $0x70] sm:$0xff]
  %v32 = vld [vmem:[%s0 + $0x78] sm:$0xff]
  %v33 = vld [vmem:[%s1] sm:$0xf]
  %35 = vset.pattern.permute.xlu0 2
  %36 = vperm.xlu0 %35, %v17
  %v37 = vpop.permute.xlu0 %36
  %40 = vset.pattern.permute.xlu0 2
  %41 = vperm.xlu0 %40, %v18
  %v42 = vpop.permute.xlu0 %41
  %45 = vset.pattern.permute.xlu0 2
  %46 = vperm.xlu0 %45, %v19
  %v47 = vpop.permute.xlu0 %46
  %50 = vset.pattern.permute.xlu0 2
  %51 = vperm.xlu0 %50, %v20
  %v52 = vpop.permute.xlu0 %51
  %55 = vset.pattern.permute.xlu0 2
  %56 = vperm.xlu0 %55, %v21
  %v57 = vpop.permute.xlu0 %56
  %60 = vset.pattern.permute.xlu0 2
  %61 = vperm.xlu0 %60, %v22
  %v62 = vpop.permute.xlu0 %61
  %65 = vset.pattern.permute.xlu0 2
  %66 = vperm.xlu0 %65, %v23
  %v67 = vpop.permute.xlu0 %66
  %70 = vset.pattern.permute.xlu0 2
  %71 = vperm.xlu0 %70, %v24
  %v72 = vpop.permute.xlu0 %71
  %75 = vset.pattern.permute.xlu0 2
  %76 = vperm.xlu0 %75, %v25
  %v77 = vpop.permute.xlu0 %76
  %80 = vset.pattern.permute.xlu0 2
  %81 = vperm.xlu0 %80, %v26
  %v82 = vpop.permute.xlu0 %81
  %85 = vset.pattern.permute.xlu0 2
  %86 = vperm.xlu0 %85, %v27
  %v87 = vpop.permute.xlu0 %86
  %90 = vset.pattern.permute.xlu0 2
  %91 = vperm.xlu0 %90, %v28
  %v92 = vpop.permute.xlu0 %91
  %95 = vset.pattern.permute.xlu0 2
  %96 = vperm.xlu0 %95, %v29
  %v97 = vpop.permute.xlu0 %96
  %100 = vset.pattern.permute.xlu0 2
  %101 = vperm.xlu0 %100, %v30
  %v102 = vpop.permute.xlu0 %101
  %105 = vset.pattern.permute.xlu0 2
  %106 = vperm.xlu0 %105, %v31
  %v107 = vpop.permute.xlu0 %106
  %110 = vset.pattern.permute.xlu0 2
  %111 = vperm.xlu0 %110, %v32
  %v112 = vpop.permute.xlu0 %111
  %v114 = vperm.slane %v33, 0
  %v115 = vsub.f32 %v37, %v114
  %v116 = vsub.f32 %v42, %v114
  %v117 = vsub.f32 %v47, %v114
  %v118 = vsub.f32 %v52, %v114
  %v119 = vsub.f32 %v57, %v114
  %v120 = vsub.f32 %v62, %v114
  %v121 = vsub.f32 %v67, %v114
  %v122 = vsub.f32 %v72, %v114
  %v123 = vsub.f32 %v77, %v114
  %v124 = vsub.f32 %v82, %v114
  %v125 = vsub.f32 %v87, %v114
  %v126 = vsub.f32 %v92, %v114
  %v127 = vsub.f32 %v97, %v114
  %v128 = vsub.f32 %v102, %v114
  %v129 = vsub.f32 %v107, %v114
  %v130 = vsub.f32 %v112, %v114
  %131 = vset.pattern.permute.xlu0 3
  %132 = vperm.xlu0 %131, %v17
  %v133 = vpop.permute.xlu0 %132
  %135 = vset.pattern.permute.xlu0 3
  %136 = vperm.xlu0 %135, %v18
  %v137 = vpop.permute.xlu0 %136
  %139 = vset.pattern.permute.xlu0 3
  %140 = vperm.xlu0 %139, %v19
  %v141 = vpop.permute.xlu0 %140
  %143 = vset.pattern.permute.xlu0 3
  %144 = vperm.xlu0 %143, %v20
  %v145 = vpop.permute.xlu0 %144
  %147 = vset.pattern.permute.xlu0 3
  %148 = vperm.xlu0 %147, %v21
  %v149 = vpop.permute.xlu0 %148
  %151 = vset.pattern.permute.xlu0 3
  %152 = vperm.xlu0 %151, %v22
  %v153 = vpop.permute.xlu0 %152
  %155 = vset.pattern.permute.xlu0 3
  %156 = vperm.xlu0 %155, %v23
  %v157 = vpop.permute.xlu0 %156
  %159 = vset.pattern.permute.xlu0 3
  %160 = vperm.xlu0 %159, %v24
  %v161 = vpop.permute.xlu0 %160
  %163 = vset.pattern.permute.xlu0 3
  %164 = vperm.xlu0 %163, %v25
  %v165 = vpop.permute.xlu0 %164
  %167 = vset.pattern.permute.xlu0 3
  %168 = vperm.xlu0 %167, %v26
  %v169 = vpop.permute.xlu0 %168
  %171 = vset.pattern.permute.xlu0 3
  %172 = vperm.xlu0 %171, %v27
  %v173 = vpop.permute.xlu0 %172
  %175 = vset.pattern.permute.xlu0 3
  %176 = vperm.xlu0 %175, %v28
  %v177 = vpop.permute.xlu0 %176
  %179 = vset.pattern.permute.xlu0 3
  %180 = vperm.xlu0 %179, %v29
  %v181 = vpop.permute.xlu0 %180
  %183 = vset.pattern.permute.xlu0 3
  %184 = vperm.xlu0 %183, %v30
  %v185 = vpop.permute.xlu0 %184
  %187 = vset.pattern.permute.xlu0 3
  %188 = vperm.xlu0 %187, %v31
  %v189 = vpop.permute.xlu0 %188
  %191 = vset.pattern.permute.xlu0 3
  %192 = vperm.xlu0 %191, %v32
  %v193 = vpop.permute.xlu0 %192
  %v195 = vperm.slane %v33, 1
  %v196 = vsub.f32 %v133, %v195
  %v197 = vsub.f32 %v137, %v195
  %v198 = vsub.f32 %v141, %v195
  %v199 = vsub.f32 %v145, %v195
  %v200 = vsub.f32 %v149, %v195
  %v201 = vsub.f32 %v153, %v195
  %v202 = vsub.f32 %v157, %v195
  %v203 = vsub.f32 %v161, %v195
  %v204 = vsub.f32 %v165, %v195
  %v205 = vsub.f32 %v169, %v195
  %v206 = vsub.f32 %v173, %v195
  %v207 = vsub.f32 %v177, %v195
  %v208 = vsub.f32 %v181, %v195
  %v209 = vsub.f32 %v185, %v195
  %v210 = vsub.f32 %v189, %v195
  %v211 = vsub.f32 %v193, %v195
  %v212 = vmul.f32 %v115, %v115
  %v213 = vmul.f32 %v116, %v116
  %v214 = vmul.f32 %v117, %v117
  %v215 = vmul.f32 %v118, %v118
  %v216 = vmul.f32 %v119, %v119
  %v217 = vmul.f32 %v120, %v120
  %v218 = vmul.f32 %v121, %v121
  %v219 = vmul.f32 %v122, %v122
  %v220 = vmul.f32 %v123, %v123
  %v221 = vmul.f32 %v124, %v124
  %v222 = vmul.f32 %v125, %v125
  %v223 = vmul.f32 %v126, %v126
  %v224 = vmul.f32 %v127, %v127
  %v225 = vmul.f32 %v128, %v128
  %v226 = vmul.f32 %v129, %v129
  %v227 = vmul.f32 %v130, %v130
  %v228 = vmul.f32 %v196, %v196
  %v229 = vmul.f32 %v197, %v197
  %v230 = vmul.f32 %v198, %v198
  %v231 = vmul.f32 %v199, %v199
  %v232 = vmul.f32 %v200, %v200
  %v233 = vmul.f32 %v201, %v201
  %v234 = vmul.f32 %v202, %v202
  %v235 = vmul.f32 %v203, %v203
  %v236 = vmul.f32 %v204, %v204
  %v237 = vmul.f32 %v205, %v205
  %v238 = vmul.f32 %v206, %v206
  %v239 = vmul.f32 %v207, %v207
  %v240 = vmul.f32 %v208, %v208
  %v241 = vmul.f32 %v209, %v209
  %v242 = vmul.f32 %v210, %v210
  %v243 = vmul.f32 %v211, %v211
  %v244 = vadd.f32 %v212, %v228
  %v245 = vadd.f32 %v213, %v229
  %v246 = vadd.f32 %v214, %v230
  %v247 = vadd.f32 %v215, %v231
  %v248 = vadd.f32 %v216, %v232
  %v249 = vadd.f32 %v217, %v233
  %v250 = vadd.f32 %v218, %v234
  %v251 = vadd.f32 %v219, %v235
  %v252 = vadd.f32 %v220, %v236
  %v253 = vadd.f32 %v221, %v237
  %v254 = vadd.f32 %v222, %v238
  %v255 = vadd.f32 %v223, %v239
  %v256 = vadd.f32 %v224, %v240
  %v257 = vadd.f32 %v225, %v241
  %v258 = vadd.f32 %v226, %v242
  %v259 = vadd.f32 %v227, %v243
  %260 = vset.pattern.permute.xlu0 0
  %261 = vperm.xlu0 %260, %v17
  %v262 = vpop.permute.xlu0 %261
  %264 = vset.pattern.permute.xlu0 0
  %265 = vperm.xlu0 %264, %v18
  %v266 = vpop.permute.xlu0 %265
  %268 = vset.pattern.permute.xlu0 0
  %269 = vperm.xlu0 %268, %v19
  %v270 = vpop.permute.xlu0 %269
  %272 = vset.pattern.permute.xlu0 0
  %273 = vperm.xlu0 %272, %v20
  %v274 = vpop.permute.xlu0 %273
  %276 = vset.pattern.permute.xlu0 0
  %277 = vperm.xlu0 %276, %v21
  %v278 = vpop.permute.xlu0 %277
  %280 = vset.pattern.permute.xlu0 0
  %281 = vperm.xlu0 %280, %v22
  %v282 = vpop.permute.xlu0 %281
  %284 = vset.pattern.permute.xlu0 0
  %285 = vperm.xlu0 %284, %v23
  %v286 = vpop.permute.xlu0 %285
  %288 = vset.pattern.permute.xlu0 0
  %289 = vperm.xlu0 %288, %v24
  %v290 = vpop.permute.xlu0 %289
  %292 = vset.pattern.permute.xlu0 0
  %293 = vperm.xlu0 %292, %v25
  %v294 = vpop.permute.xlu0 %293
  %296 = vset.pattern.permute.xlu0 0
  %297 = vperm.xlu0 %296, %v26
  %v298 = vpop.permute.xlu0 %297
  %300 = vset.pattern.permute.xlu0 0
  %301 = vperm.xlu0 %300, %v27
  %v302 = vpop.permute.xlu0 %301
  %304 = vset.pattern.permute.xlu0 0
  %305 = vperm.xlu0 %304, %v28
  %v306 = vpop.permute.xlu0 %305
  %308 = vset.pattern.permute.xlu0 0
  %309 = vperm.xlu0 %308, %v29
  %v310 = vpop.permute.xlu0 %309
  %312 = vset.pattern.permute.xlu0 0
  %313 = vperm.xlu0 %312, %v30
  %v314 = vpop.permute.xlu0 %313
  %316 = vset.pattern.permute.xlu0 0
  %317 = vperm.xlu0 %316, %v31
  %v318 = vpop.permute.xlu0 %317
  %320 = vset.pattern.permute.xlu0 0
  %321 = vperm.xlu0 %320, %v32
  %v322 = vpop.permute.xlu0 %321
  %v324 = vperm.slane %v33, 2
  %v325 = vsub.f32 %v262, %v324
  %v326 = vsub.f32 %v266, %v324
  %v327 = vsub.f32 %v270, %v324
  %v328 = vsub.f32 %v274, %v324
  %v329 = vsub.f32 %v278, %v324
  %v330 = vsub.f32 %v282, %v324
  %v331 = vsub.f32 %v286, %v324
  %v332 = vsub.f32 %v290, %v324
  %v333 = vsub.f32 %v294, %v324
  %v334 = vsub.f32 %v298, %v324
  %v335 = vsub.f32 %v302, %v324
  %v336 = vsub.f32 %v306, %v324
  %v337 = vsub.f32 %v310, %v324
  %v338 = vsub.f32 %v314, %v324
  %v339 = vsub.f32 %v318, %v324
  %v340 = vsub.f32 %v322, %v324
  %341 = vset.pattern.permute.xlu0 1
  %342 = vperm.xlu0 %341, %v17
  %v343 = vpop.permute.xlu0 %342
  %345 = vset.pattern.permute.xlu0 1
  %346 = vperm.xlu0 %345, %v18
  %v347 = vpop.permute.xlu0 %346
  %349 = vset.pattern.permute.xlu0 1
  %350 = vperm.xlu0 %349, %v19
  %v351 = vpop.permute.xlu0 %350
  %353 = vset.pattern.permute.xlu0 1
  %354 = vperm.xlu0 %353, %v20
  %v355 = vpop.permute.xlu0 %354
  %357 = vset.pattern.permute.xlu0 1
  %358 = vperm.xlu0 %357, %v21
  %v359 = vpop.permute.xlu0 %358
  %361 = vset.pattern.permute.xlu0 1
  %362 = vperm.xlu0 %361, %v22
  %v363 = vpop.permute.xlu0 %362
  %365 = vset.pattern.permute.xlu0 1
  %366 = vperm.xlu0 %365, %v23
  %v367 = vpop.permute.xlu0 %366
  %369 = vset.pattern.permute.xlu0 1
  %370 = vperm.xlu0 %369, %v24
  %v371 = vpop.permute.xlu0 %370
  %373 = vset.pattern.permute.xlu0 1
  %374 = vperm.xlu0 %373, %v25
  %v375 = vpop.permute.xlu0 %374
  %377 = vset.pattern.permute.xlu0 1
  %378 = vperm.xlu0 %377, %v26
  %v379 = vpop.permute.xlu0 %378
  %381 = vset.pattern.permute.xlu0 1
  %382 = vperm.xlu0 %381, %v27
  %v383 = vpop.permute.xlu0 %382
  %385 = vset.pattern.permute.xlu0 1
  %386 = vperm.xlu0 %385, %v28
  %v387 = vpop.permute.xlu0 %386
  %389 = vset.pattern.permute.xlu0 1
  %390 = vperm.xlu0 %389, %v29
  %v391 = vpop.permute.xlu0 %390
  %393 = vset.pattern.permute.xlu0 1
  %394 = vperm.xlu0 %393, %v30
  %v395 = vpop.permute.xlu0 %394
  %397 = vset.pattern.permute.xlu0 1
  %398 = vperm.xlu0 %397, %v31
  %v399 = vpop.permute.xlu0 %398
  %401 = vset.pattern.permute.xlu0 1
  %402 = vperm.xlu0 %401, %v32
  %v403 = vpop.permute.xlu0 %402
  %v405 = vperm.slane %v33, 3
  %v406 = vsub.f32 %v343, %v405
  %v407 = vsub.f32 %v347, %v405
  %v408 = vsub.f32 %v351, %v405
  %v409 = vsub.f32 %v355, %v405
  %v410 = vsub.f32 %v359, %v405
  %v411 = vsub.f32 %v363, %v405
  %v412 = vsub.f32 %v367, %v405
  %v413 = vsub.f32 %v371, %v405
  %v414 = vsub.f32 %v375, %v405
  %v415 = vsub.f32 %v379, %v405
  %v416 = vsub.f32 %v383, %v405
  %v417 = vsub.f32 %v387, %v405
  %v418 = vsub.f32 %v391, %v405
  %v419 = vsub.f32 %v395, %v405
  %v420 = vsub.f32 %v399, %v405
  %v421 = vsub.f32 %v403, %v405
  %v422 = vmul.f32 %v325, %v325
  %v423 = vmul.f32 %v326, %v326
  %v424 = vmul.f32 %v327, %v327
  %v425 = vmul.f32 %v328, %v328
  %v426 = vmul.f32 %v329, %v329
  %v427 = vmul.f32 %v330, %v330
  %v428 = vmul.f32 %v331, %v331
  %v429 = vmul.f32 %v332, %v332
  %v430 = vmul.f32 %v333, %v333
  %v431 = vmul.f32 %v334, %v334
  %v432 = vmul.f32 %v335, %v335
  %v433 = vmul.f32 %v336, %v336
  %v434 = vmul.f32 %v337, %v337
  %v435 = vmul.f32 %v338, %v338
  %v436 = vmul.f32 %v339, %v339
  %v437 = vmul.f32 %v340, %v340
  %v438 = vmul.f32 %v406, %v406
  %v439 = vmul.f32 %v407, %v407
  %v440 = vmul.f32 %v408, %v408
  %v441 = vmul.f32 %v409, %v409
  %v442 = vmul.f32 %v410, %v410
  %v443 = vmul.f32 %v411, %v411
  %v444 = vmul.f32 %v412, %v412
  %v445 = vmul.f32 %v413, %v413
  %v446 = vmul.f32 %v414, %v414
  %v447 = vmul.f32 %v415, %v415
  %v448 = vmul.f32 %v416, %v416
  %v449 = vmul.f32 %v417, %v417
  %v450 = vmul.f32 %v418, %v418
  %v451 = vmul.f32 %v419, %v419
  %v452 = vmul.f32 %v420, %v420
  %v453 = vmul.f32 %v421, %v421
  %v454 = vadd.f32 %v422, %v438
  %v455 = vadd.f32 %v423, %v439
  %v456 = vadd.f32 %v424, %v440
  %v457 = vadd.f32 %v425, %v441
  %v458 = vadd.f32 %v426, %v442
  %v459 = vadd.f32 %v427, %v443
  %v460 = vadd.f32 %v428, %v444
  %v461 = vadd.f32 %v429, %v445
  %v462 = vadd.f32 %v430, %v446
  %v463 = vadd.f32 %v431, %v447
  %v464 = vadd.f32 %v432, %v448
  %v465 = vadd.f32 %v433, %v449
  %v466 = vadd.f32 %v434, %v450
  %v467 = vadd.f32 %v435, %v451
  %v468 = vadd.f32 %v436, %v452
  %v469 = vadd.f32 %v437, %v453
  %470 = vmin.xlane.f32.xlu0 %v244
  %v471 = vpop.xlane.xlu0 %470
  %472 = vmin.xlane.f32.xlu0 %v245
  %v473 = vpop.xlane.xlu0 %472
  %474 = vmin.xlane.f32.xlu0 %v246
  %v475 = vpop.xlane.xlu0 %474
  %476 = vmin.xlane.f32.xlu0 %v247
  %v477 = vpop.xlane.xlu0 %476
  %478 = vmin.xlane.f32.xlu0 %v248
  %v479 = vpop.xlane.xlu0 %478
  %480 = vmin.xlane.f32.xlu0 %v249
  %v481 = vpop.xlane.xlu0 %480
  %482 = vmin.xlane.f32.xlu0 %v250
  %v483 = vpop.xlane.xlu0 %482
  %484 = vmin.xlane.f32.xlu0 %v251
  %v485 = vpop.xlane.xlu0 %484
  %486 = vmin.xlane.f32.xlu0 %v252
  %v487 = vpop.xlane.xlu0 %486
  %488 = vmin.xlane.f32.xlu0 %v253
  %v489 = vpop.xlane.xlu0 %488
  %490 = vmin.xlane.f32.xlu0 %v254
  %v491 = vpop.xlane.xlu0 %490
  %492 = vmin.xlane.f32.xlu0 %v255
  %v493 = vpop.xlane.xlu0 %492
  %494 = vmin.xlane.f32.xlu0 %v256
  %v495 = vpop.xlane.xlu0 %494
  %496 = vmin.xlane.f32.xlu0 %v257
  %v497 = vpop.xlane.xlu0 %496
  %498 = vmin.xlane.f32.xlu0 %v258
  %v499 = vpop.xlane.xlu0 %498
  %500 = vmin.xlane.f32.xlu0 %v259
  %v501 = vpop.xlane.xlu0 %500
  %v502 = vmin.f32 %v454, %v458
  %v503 = vmin.f32 %v455, %v459
  %v504 = vmin.f32 %v456, %v460
  %v505 = vmin.f32 %v457, %v461
  %v506 = vmin.f32 %v502, %v462
  %v507 = vmin.f32 %v503, %v463
  %v508 = vmin.f32 %v504, %v464
  %v509 = vmin.f32 %v505, %v465
  %v510 = vmin.f32 %v506, %v466
  %v511 = vmin.f32 %v507, %v467
  %v512 = vmin.f32 %v508, %v468
  %v513 = vmin.f32 %v509, %v469
  %v514 = vmin.f32 %v510, %v511
  %v515 = vmin.f32 %v512, %v513
  %v516 = vmin.f32 %v514, %v515
  %v517 = vrot.slane %v516, 4
  %v518 = vmin.f32 %v516, %v517
  %v519 = vrot.slane %v518, 2
  %v520 = vmin.f32 %v518, %v519
  %v521 = vrot.slane %v520, 1
  %v522 = vmin.f32 %v520, %v521
  %vm523 = vcmp.eq.f32.partialorder %v244, %v471
  %vm524 = vcmp.eq.f32.partialorder %v245, %v473
  %vm525 = vcmp.eq.f32.partialorder %v246, %v475
  %vm526 = vcmp.eq.f32.partialorder %v247, %v477
  %vm527 = vcmp.eq.f32.partialorder %v248, %v479
  %vm528 = vcmp.eq.f32.partialorder %v249, %v481
  %vm529 = vcmp.eq.f32.partialorder %v250, %v483
  %vm530 = vcmp.eq.f32.partialorder %v251, %v485
  %vm531 = vcmp.eq.f32.partialorder %v252, %v487
  %vm532 = vcmp.eq.f32.partialorder %v253, %v489
  %vm533 = vcmp.eq.f32.partialorder %v254, %v491
  %vm534 = vcmp.eq.f32.partialorder %v255, %v493
  %vm535 = vcmp.eq.f32.partialorder %v256, %v495
  %vm536 = vcmp.eq.f32.partialorder %v257, %v497
  %vm537 = vcmp.eq.f32.partialorder %v258, %v499
  %vm538 = vcmp.eq.f32.partialorder %v259, %v501
  %vm539 = vcmp.eq.f32.partialorder %v454, %v522
  %vm540 = vcmp.eq.f32.partialorder %v455, %v522
  %vm541 = vcmp.eq.f32.partialorder %v456, %v522
  %vm542 = vcmp.eq.f32.partialorder %v457, %v522
  %vm543 = vcmp.eq.f32.partialorder %v458, %v522
  %vm544 = vcmp.eq.f32.partialorder %v459, %v522
  %vm545 = vcmp.eq.f32.partialorder %v460, %v522
  %vm546 = vcmp.eq.f32.partialorder %v461, %v522
  %vm547 = vcmp.eq.f32.partialorder %v462, %v522
  %vm548 = vcmp.eq.f32.partialorder %v463, %v522
  %vm549 = vcmp.eq.f32.partialorder %v464, %v522
  %vm550 = vcmp.eq.f32.partialorder %v465, %v522
  %vm551 = vcmp.eq.f32.partialorder %v466, %v522
  %vm552 = vcmp.eq.f32.partialorder %v467, %v522
  %vm553 = vcmp.eq.f32.partialorder %v468, %v522
  %vm554 = vcmp.eq.f32.partialorder %v469, %v522
  %vm555 = vmand %vm523, %vm539
  %vm556 = vmand %vm524, %vm540
  %vm557 = vmand %vm525, %vm541
  %vm558 = vmand %vm526, %vm542
  %vm559 = vmand %vm527, %vm543
  %vm560 = vmand %vm528, %vm544
  %vm561 = vmand %vm529, %vm545
  %vm562 = vmand %vm530, %vm546
  %vm563 = vmand %vm531, %vm547
  %vm564 = vmand %vm532, %vm548
  %vm565 = vmand %vm533, %vm549
  %vm566 = vmand %vm534, %vm550
  %vm567 = vmand %vm535, %vm551
  %vm568 = vmand %vm536, %vm552
  %vm569 = vmand %vm537, %vm553
  %vm570 = vmand %vm538, %vm554
  %vm571 = vcmp.lt.f32.partialorder %v244, 0.0001
  %vm572 = vcmp.lt.f32.partialorder %v245, 0.0001
  %vm573 = vcmp.lt.f32.partialorder %v246, 0.0001
  %vm574 = vcmp.lt.f32.partialorder %v247, 0.0001
  %vm575 = vcmp.lt.f32.partialorder %v248, 0.0001
  %vm576 = vcmp.lt.f32.partialorder %v249, 0.0001
  %vm577 = vcmp.lt.f32.partialorder %v250, 0.0001
  %vm578 = vcmp.lt.f32.partialorder %v251, 0.0001
  %vm579 = vcmp.lt.f32.partialorder %v252, 0.0001
  %vm580 = vcmp.lt.f32.partialorder %v253, 0.0001
  %vm581 = vcmp.lt.f32.partialorder %v254, 0.0001
  %vm582 = vcmp.lt.f32.partialorder %v255, 0.0001
  %vm583 = vcmp.lt.f32.partialorder %v256, 0.0001
  %vm584 = vcmp.lt.f32.partialorder %v257, 0.0001
  %vm585 = vcmp.lt.f32.partialorder %v258, 0.0001
  %vm586 = vcmp.lt.f32.partialorder %v259, 0.0001
  %vm587 = vmand %vm555, %vm571
  %vm588 = vmand %vm556, %vm572
  %vm589 = vmand %vm557, %vm573
  %vm590 = vmand %vm558, %vm574
  %vm591 = vmand %vm559, %vm575
  %vm592 = vmand %vm560, %vm576
  %vm593 = vmand %vm561, %vm577
  %vm594 = vmand %vm562, %vm578
  %vm595 = vmand %vm563, %vm579
  %vm596 = vmand %vm564, %vm580
  %vm597 = vmand %vm565, %vm581
  %vm598 = vmand %vm566, %vm582
  %vm599 = vmand %vm567, %vm583
  %vm600 = vmand %vm568, %vm584
  %vm601 = vmand %vm569, %vm585
  %vm602 = vmand %vm570, %vm586
  %vm603 = vcmp.lt.f32.partialorder %v454, 0.0001
  %vm604 = vcmp.lt.f32.partialorder %v455, 0.0001
  %vm605 = vcmp.lt.f32.partialorder %v456, 0.0001
  %vm606 = vcmp.lt.f32.partialorder %v457, 0.0001
  %vm607 = vcmp.lt.f32.partialorder %v458, 0.0001
  %vm608 = vcmp.lt.f32.partialorder %v459, 0.0001
  %vm609 = vcmp.lt.f32.partialorder %v460, 0.0001
  %vm610 = vcmp.lt.f32.partialorder %v461, 0.0001
  %vm611 = vcmp.lt.f32.partialorder %v462, 0.0001
  %vm612 = vcmp.lt.f32.partialorder %v463, 0.0001
  %vm613 = vcmp.lt.f32.partialorder %v464, 0.0001
  %vm614 = vcmp.lt.f32.partialorder %v465, 0.0001
  %vm615 = vcmp.lt.f32.partialorder %v466, 0.0001
  %vm616 = vcmp.lt.f32.partialorder %v467, 0.0001
  %vm617 = vcmp.lt.f32.partialorder %v468, 0.0001
  %vm618 = vcmp.lt.f32.partialorder %v469, 0.0001
  %vm619 = vmand %vm587, %vm603
  %vm620 = vmand %vm588, %vm604
  %vm621 = vmand %vm589, %vm605
  %vm622 = vmand %vm590, %vm606
  %vm623 = vmand %vm591, %vm607
  %vm624 = vmand %vm592, %vm608
  %vm625 = vmand %vm593, %vm609
  %vm626 = vmand %vm594, %vm610
  %vm627 = vmand %vm595, %vm611
  %vm628 = vmand %vm596, %vm612
  %vm629 = vmand %vm597, %vm613
  %vm630 = vmand %vm598, %vm614
  %vm631 = vmand %vm599, %vm615
  %vm632 = vmand %vm600, %vm616
  %vm633 = vmand %vm601, %vm617
  %vm634 = vmand %vm602, %vm618
  %v635 = vsel %vm619, 1, 0
  %v636 = vsel %vm620, 1, 0
  %v637 = vsel %vm621, 1, 0
  %v638 = vsel %vm622, 1, 0
  %v639 = vsel %vm623, 1, 0
  %v640 = vsel %vm624, 1, 0
  %v641 = vsel %vm625, 1, 0
  %v642 = vsel %vm626, 1, 0
  %v643 = vsel %vm627, 1, 0
  %v644 = vsel %vm628, 1, 0
  %v645 = vsel %vm629, 1, 0
  %v646 = vsel %vm630, 1, 0
  %v647 = vsel %vm631, 1, 0
  %v648 = vsel %vm632, 1, 0
  %v649 = vsel %vm633, 1, 0
  %v650 = vsel %vm634, 1, 0
  %v651 = vcvt.s32.f32 %v635
  %v652 = vcvt.s32.f32 %v636
  %v653 = vcvt.s32.f32 %v637
  %v654 = vcvt.s32.f32 %v638
  %v655 = vcvt.s32.f32 %v639
  %v656 = vcvt.s32.f32 %v640
  %v657 = vcvt.s32.f32 %v641
  %v658 = vcvt.s32.f32 %v642
  %v659 = vcvt.s32.f32 %v643
  %v660 = vcvt.s32.f32 %v644
  %v661 = vcvt.s32.f32 %v645
  %v662 = vcvt.s32.f32 %v646
  %v663 = vcvt.s32.f32 %v647
  %v664 = vcvt.s32.f32 %v648
  %v665 = vcvt.s32.f32 %v649
  %v666 = vcvt.s32.f32 %v650
  %v667 = vld [vmem:[%s2] sm:$0xf]
  %v668 = vld [vmem:[%s2 + $0x4] sm:$0xf]
  %v669 = vld [vmem:[%s2 + $0x8] sm:$0xf]
  %v670 = vld [vmem:[%s2 + $0xc] sm:$0xf]
  %v671 = vld [vmem:[%s2 + $0x10] sm:$0xf]
  %v672 = vld [vmem:[%s2 + $0x14] sm:$0xf]
  %v673 = vld [vmem:[%s2 + $0x18] sm:$0xf]
  %v674 = vld [vmem:[%s2 + $0x1c] sm:$0xf]
  %v675 = vld [vmem:[%s2 + $0x20] sm:$0xf]
  %v676 = vld [vmem:[%s2 + $0x24] sm:$0xf]
  %v677 = vld [vmem:[%s2 + $0x28] sm:$0xf]
  %v678 = vld [vmem:[%s2 + $0x2c] sm:$0xf]
  %v679 = vld [vmem:[%s2 + $0x30] sm:$0xf]
  %v680 = vld [vmem:[%s2 + $0x34] sm:$0xf]
  %v681 = vld [vmem:[%s2 + $0x38] sm:$0xf]
  %v682 = vld [vmem:[%s2 + $0x3c] sm:$0xf]
  %v683 = vunpack.c.l.bf16 %v667
  %v684 = vunpack.c.l.bf16 %v668
  %v685 = vunpack.c.l.bf16 %v669
  %v686 = vunpack.c.l.bf16 %v670
  %v687 = vunpack.c.l.bf16 %v671
  %v688 = vunpack.c.l.bf16 %v672
  %v689 = vunpack.c.l.bf16 %v673
  %v690 = vunpack.c.l.bf16 %v674
  %v691 = vunpack.c.l.bf16 %v675
  %v692 = vunpack.c.l.bf16 %v676
  %v693 = vunpack.c.l.bf16 %v677
  %v694 = vunpack.c.l.bf16 %v678
  %v695 = vunpack.c.l.bf16 %v679
  %v696 = vunpack.c.l.bf16 %v680
  %v697 = vunpack.c.l.bf16 %v681
  %v698 = vunpack.c.l.bf16 %v682
  %v699 = vld [vmem:[%s3] sm:$0xf]
  %v700 = vld [vmem:[%s3 + $0x4] sm:$0xf]
  %v701 = vld [vmem:[%s3 + $0x8] sm:$0xf]
  %v702 = vld [vmem:[%s3 + $0xc] sm:$0xf]
  %v703 = vld [vmem:[%s3 + $0x10] sm:$0xf]
  %v704 = vld [vmem:[%s3 + $0x14] sm:$0xf]
  %v705 = vld [vmem:[%s3 + $0x18] sm:$0xf]
  %v706 = vld [vmem:[%s3 + $0x1c] sm:$0xf]
  %v707 = vld [vmem:[%s3 + $0x20] sm:$0xf]
  %v708 = vld [vmem:[%s3 + $0x24] sm:$0xf]
  %v709 = vld [vmem:[%s3 + $0x28] sm:$0xf]
  %v710 = vld [vmem:[%s3 + $0x2c] sm:$0xf]
  %v711 = vld [vmem:[%s3 + $0x30] sm:$0xf]
  %v712 = vld [vmem:[%s3 + $0x34] sm:$0xf]
  %v713 = vld [vmem:[%s3 + $0x38] sm:$0xf]
  %v714 = vld [vmem:[%s3 + $0x3c] sm:$0xf]
  %v715 = vunpack.c.l.bf16 %v699
  %v716 = vunpack.c.l.bf16 %v700
  %v717 = vunpack.c.l.bf16 %v701
  %v718 = vunpack.c.l.bf16 %v702
  %v719 = vunpack.c.l.bf16 %v703
  %v720 = vunpack.c.l.bf16 %v704
  %v721 = vunpack.c.l.bf16 %v705
  %v722 = vunpack.c.l.bf16 %v706
  %v723 = vunpack.c.l.bf16 %v707
  %v724 = vunpack.c.l.bf16 %v708
  %v725 = vunpack.c.l.bf16 %v709
  %v726 = vunpack.c.l.bf16 %v710
  %v727 = vunpack.c.l.bf16 %v711
  %v728 = vunpack.c.l.bf16 %v712
  %v729 = vunpack.c.l.bf16 %v713
  %v730 = vunpack.c.l.bf16 %v714
  %v731 = vmul.f32 %v683, %v683
  %v732 = vmul.f32 %v684, %v684
  %v733 = vmul.f32 %v685, %v685
  %v734 = vmul.f32 %v686, %v686
  %v735 = vmul.f32 %v687, %v687
  %v736 = vmul.f32 %v688, %v688
  %v737 = vmul.f32 %v689, %v689
  %v738 = vmul.f32 %v690, %v690
  %v739 = vmul.f32 %v691, %v691
  %v740 = vmul.f32 %v692, %v692
  %v741 = vmul.f32 %v693, %v693
  %v742 = vmul.f32 %v694, %v694
  %v743 = vmul.f32 %v695, %v695
  %v744 = vmul.f32 %v696, %v696
  %v745 = vmul.f32 %v697, %v697
  %v746 = vmul.f32 %v698, %v698
  %vm747 = vcmask 523264
  %v748 = vsel %vm747, %v731, 0.0
  %749 = vadd.xlane.f32.xlu0 %v748
  %v750 = vpop.xlane.xlu0 %749
  %v751 = vsel %vm747, %v732, 0.0
  %752 = vadd.xlane.f32.xlu0 %v751
  %v753 = vpop.xlane.xlu0 %752
  %v754 = vsel %vm747, %v733, 0.0
  %755 = vadd.xlane.f32.xlu0 %v754
  %v756 = vpop.xlane.xlu0 %755
  %v757 = vsel %vm747, %v734, 0.0
  %758 = vadd.xlane.f32.xlu0 %v757
  %v759 = vpop.xlane.xlu0 %758
  %v760 = vsel %vm747, %v735, 0.0
  %761 = vadd.xlane.f32.xlu0 %v760
  %v762 = vpop.xlane.xlu0 %761
  %v763 = vsel %vm747, %v736, 0.0
  %764 = vadd.xlane.f32.xlu0 %v763
  %v765 = vpop.xlane.xlu0 %764
  %v766 = vsel %vm747, %v737, 0.0
  %767 = vadd.xlane.f32.xlu0 %v766
  %v768 = vpop.xlane.xlu0 %767
  %v769 = vsel %vm747, %v738, 0.0
  %770 = vadd.xlane.f32.xlu0 %v769
  %v771 = vpop.xlane.xlu0 %770
  %v772 = vsel %vm747, %v739, 0.0
  %773 = vadd.xlane.f32.xlu0 %v772
  %v774 = vpop.xlane.xlu0 %773
  %v775 = vsel %vm747, %v740, 0.0
  %776 = vadd.xlane.f32.xlu0 %v775
  %v777 = vpop.xlane.xlu0 %776
  %v778 = vsel %vm747, %v741, 0.0
  %779 = vadd.xlane.f32.xlu0 %v778
  %v780 = vpop.xlane.xlu0 %779
  %v781 = vsel %vm747, %v742, 0.0
  %782 = vadd.xlane.f32.xlu0 %v781
  %v783 = vpop.xlane.xlu0 %782
  %v784 = vsel %vm747, %v743, 0.0
  %785 = vadd.xlane.f32.xlu0 %v784
  %v786 = vpop.xlane.xlu0 %785
  %v787 = vsel %vm747, %v744, 0.0
  %788 = vadd.xlane.f32.xlu0 %v787
  %v789 = vpop.xlane.xlu0 %788
  %v790 = vsel %vm747, %v745, 0.0
  %791 = vadd.xlane.f32.xlu0 %v790
  %v792 = vpop.xlane.xlu0 %791
  %v793 = vsel %vm747, %v746, 0.0
  %794 = vadd.xlane.f32.xlu0 %v793
  %v795 = vpop.xlane.xlu0 %794
  %v796 = vadd.f32 %v750, 1e-12
  %v797 = vadd.f32 %v753, 1e-12
  %v798 = vadd.f32 %v756, 1e-12
  %v799 = vadd.f32 %v759, 1e-12
  %v800 = vadd.f32 %v762, 1e-12
  %v801 = vadd.f32 %v765, 1e-12
  %v802 = vadd.f32 %v768, 1e-12
  %v803 = vadd.f32 %v771, 1e-12
  %v804 = vadd.f32 %v774, 1e-12
  %v805 = vadd.f32 %v777, 1e-12
  %v806 = vadd.f32 %v780, 1e-12
  %v807 = vadd.f32 %v783, 1e-12
  %v808 = vadd.f32 %v786, 1e-12
  %v809 = vadd.f32 %v789, 1e-12
  %v810 = vadd.f32 %v792, 1e-12
  %v811 = vadd.f32 %v795, 1e-12
  %v812 = vrsqrt.pop %v796
  %v813 = vmul.f32 %v812, %v796
  %v814 = vmul.f32 %v813, %v812
  %v815 = vmul.f32 0.5, %v814
  %v816 = vsub.f32 1.5, %v815
  %v817 = vmul.f32 %v812, %v816
  %vm818 = vweird.f32 %v796
  %vm819 = vweird.f32 %v812
  %vm820 = vmor %vm818, %vm819
  %v821 = vsel %vm820, %v812, %v817
  %v822 = vrsqrt.pop %v797
  %v823 = vmul.f32 %v822, %v797
  %v824 = vmul.f32 %v823, %v822
  %v825 = vmul.f32 0.5, %v824
  %v826 = vsub.f32 1.5, %v825
  %v827 = vmul.f32 %v822, %v826
  %vm828 = vweird.f32 %v797
  %vm829 = vweird.f32 %v822
  %vm830 = vmor %vm828, %vm829
  %v831 = vsel %vm830, %v822, %v827
  %v832 = vrsqrt.pop %v798
  %v833 = vmul.f32 %v832, %v798
  %v834 = vmul.f32 %v833, %v832
  %v835 = vmul.f32 0.5, %v834
  %v836 = vsub.f32 1.5, %v835
  %v837 = vmul.f32 %v832, %v836
  %vm838 = vweird.f32 %v798
  %vm839 = vweird.f32 %v832
  %vm840 = vmor %vm838, %vm839
  %v841 = vsel %vm840, %v832, %v837
  %v842 = vrsqrt.pop %v799
  %v843 = vmul.f32 %v842, %v799
  %v844 = vmul.f32 %v843, %v842
  %v845 = vmul.f32 0.5, %v844
  %v846 = vsub.f32 1.5, %v845
  %v847 = vmul.f32 %v842, %v846
  %vm848 = vweird.f32 %v799
  %vm849 = vweird.f32 %v842
  %vm850 = vmor %vm848, %vm849
  %v851 = vsel %vm850, %v842, %v847
  %v852 = vrsqrt.pop %v800
  %v853 = vmul.f32 %v852, %v800
  %v854 = vmul.f32 %v853, %v852
  %v855 = vmul.f32 0.5, %v854
  %v856 = vsub.f32 1.5, %v855
  %v857 = vmul.f32 %v852, %v856
  %vm858 = vweird.f32 %v800
  %vm859 = vweird.f32 %v852
  %vm860 = vmor %vm858, %vm859
  %v861 = vsel %vm860, %v852, %v857
  %v862 = vrsqrt.pop %v801
  %v863 = vmul.f32 %v862, %v801
  %v864 = vmul.f32 %v863, %v862
  %v865 = vmul.f32 0.5, %v864
  %v866 = vsub.f32 1.5, %v865
  %v867 = vmul.f32 %v862, %v866
  %vm868 = vweird.f32 %v801
  %vm869 = vweird.f32 %v862
  %vm870 = vmor %vm868, %vm869
  %v871 = vsel %vm870, %v862, %v867
  %v872 = vrsqrt.pop %v802
  %v873 = vmul.f32 %v872, %v802
  %v874 = vmul.f32 %v873, %v872
  %v875 = vmul.f32 0.5, %v874
  %v876 = vsub.f32 1.5, %v875
  %v877 = vmul.f32 %v872, %v876
  %vm878 = vweird.f32 %v802
  %vm879 = vweird.f32 %v872
  %vm880 = vmor %vm878, %vm879
  %v881 = vsel %vm880, %v872, %v877
  %v882 = vrsqrt.pop %v803
  %v883 = vmul.f32 %v882, %v803
  %v884 = vmul.f32 %v883, %v882
  %v885 = vmul.f32 0.5, %v884
  %v886 = vsub.f32 1.5, %v885
  %v887 = vmul.f32 %v882, %v886
  %vm888 = vweird.f32 %v803
  %vm889 = vweird.f32 %v882
  %vm890 = vmor %vm888, %vm889
  %v891 = vsel %vm890, %v882, %v887
  %v892 = vrsqrt.pop %v804
  %v893 = vmul.f32 %v892, %v804
  %v894 = vmul.f32 %v893, %v892
  %v895 = vmul.f32 0.5, %v894
  %v896 = vsub.f32 1.5, %v895
  %v897 = vmul.f32 %v892, %v896
  %vm898 = vweird.f32 %v804
  %vm899 = vweird.f32 %v892
  %vm900 = vmor %vm898, %vm899
  %v901 = vsel %vm900, %v892, %v897
  %v902 = vrsqrt.pop %v805
  %v903 = vmul.f32 %v902, %v805
  %v904 = vmul.f32 %v903, %v902
  %v905 = vmul.f32 0.5, %v904
  %v906 = vsub.f32 1.5, %v905
  %v907 = vmul.f32 %v902, %v906
  %vm908 = vweird.f32 %v805
  %vm909 = vweird.f32 %v902
  %vm910 = vmor %vm908, %vm909
  %v911 = vsel %vm910, %v902, %v907
  %v912 = vrsqrt.pop %v806
  %v913 = vmul.f32 %v912, %v806
  %v914 = vmul.f32 %v913, %v912
  %v915 = vmul.f32 0.5, %v914
  %v916 = vsub.f32 1.5, %v915
  %v917 = vmul.f32 %v912, %v916
  %vm918 = vweird.f32 %v806
  %vm919 = vweird.f32 %v912
  %vm920 = vmor %vm918, %vm919
  %v921 = vsel %vm920, %v912, %v917
  %v922 = vrsqrt.pop %v807
  %v923 = vmul.f32 %v922, %v807
  %v924 = vmul.f32 %v923, %v922
  %v925 = vmul.f32 0.5, %v924
  %v926 = vsub.f32 1.5, %v925
  %v927 = vmul.f32 %v922, %v926
  %vm928 = vweird.f32 %v807
  %vm929 = vweird.f32 %v922
  %vm930 = vmor %vm928, %vm929
  %v931 = vsel %vm930, %v922, %v927
  %v932 = vrsqrt.pop %v808
  %v933 = vmul.f32 %v932, %v808
  %v934 = vmul.f32 %v933, %v932
  %v935 = vmul.f32 0.5, %v934
  %v936 = vsub.f32 1.5, %v935
  %v937 = vmul.f32 %v932, %v936
  %vm938 = vweird.f32 %v808
  %vm939 = vweird.f32 %v932
  %vm940 = vmor %vm938, %vm939
  %v941 = vsel %vm940, %v932, %v937
  %v942 = vrsqrt.pop %v809
  %v943 = vmul.f32 %v942, %v809
  %v944 = vmul.f32 %v943, %v942
  %v945 = vmul.f32 0.5, %v944
  %v946 = vsub.f32 1.5, %v945
  %v947 = vmul.f32 %v942, %v946
  %vm948 = vweird.f32 %v809
  %vm949 = vweird.f32 %v942
  %vm950 = vmor %vm948, %vm949
  %v951 = vsel %vm950, %v942, %v947
  %v952 = vrsqrt.pop %v810
  %v953 = vmul.f32 %v952, %v810
  %v954 = vmul.f32 %v953, %v952
  %v955 = vmul.f32 0.5, %v954
  %v956 = vsub.f32 1.5, %v955
  %v957 = vmul.f32 %v952, %v956
  %vm958 = vweird.f32 %v810
  %vm959 = vweird.f32 %v952
  %vm960 = vmor %vm958, %vm959
  %v961 = vsel %vm960, %v952, %v957
  %v962 = vrsqrt.pop %v811
  %v963 = vmul.f32 %v962, %v811
  %v964 = vmul.f32 %v963, %v962
  %v965 = vmul.f32 0.5, %v964
  %v966 = vsub.f32 1.5, %v965
  %v967 = vmul.f32 %v962, %v966
  %vm968 = vweird.f32 %v811
  %vm969 = vweird.f32 %v962
  %vm970 = vmor %vm968, %vm969
  %v971 = vsel %vm970, %v962, %v967
  %v972 = vmul.f32 %v821, 20.0
  %v973 = vmul.f32 %v831, 20.0
  %v974 = vmul.f32 %v841, 20.0
  %v975 = vmul.f32 %v851, 20.0
  %v976 = vmul.f32 %v861, 20.0
  %v977 = vmul.f32 %v871, 20.0
  %v978 = vmul.f32 %v881, 20.0
  %v979 = vmul.f32 %v891, 20.0
  %v980 = vmul.f32 %v901, 20.0
  %v981 = vmul.f32 %v911, 20.0
  %v982 = vmul.f32 %v921, 20.0
  %v983 = vmul.f32 %v931, 20.0
  %v984 = vmul.f32 %v941, 20.0
  %v985 = vmul.f32 %v951, 20.0
  %v986 = vmul.f32 %v961, 20.0
  %v987 = vmul.f32 %v971, 20.0
  %v988 = vmul.f32 %v715, %v715
  %v989 = vmul.f32 %v716, %v716
  %v990 = vmul.f32 %v717, %v717
  %v991 = vmul.f32 %v718, %v718
  %v992 = vmul.f32 %v719, %v719
  %v993 = vmul.f32 %v720, %v720
  %v994 = vmul.f32 %v721, %v721
  %v995 = vmul.f32 %v722, %v722
  %v996 = vmul.f32 %v723, %v723
  %v997 = vmul.f32 %v724, %v724
  %v998 = vmul.f32 %v725, %v725
  %v999 = vmul.f32 %v726, %v726
  %v1000 = vmul.f32 %v727, %v727
  %v1001 = vmul.f32 %v728, %v728
  %v1002 = vmul.f32 %v729, %v729
  %v1003 = vmul.f32 %v730, %v730
  %v1004 = vsel %vm747, %v988, 0.0
  %1005 = vadd.xlane.f32.xlu0 %v1004
  %v1006 = vpop.xlane.xlu0 %1005
  %v1007 = vsel %vm747, %v989, 0.0
  %1008 = vadd.xlane.f32.xlu0 %v1007
  %v1009 = vpop.xlane.xlu0 %1008
  %v1010 = vsel %vm747, %v990, 0.0
  %1011 = vadd.xlane.f32.xlu0 %v1010
  %v1012 = vpop.xlane.xlu0 %1011
  %v1013 = vsel %vm747, %v991, 0.0
  %1014 = vadd.xlane.f32.xlu0 %v1013
  %v1015 = vpop.xlane.xlu0 %1014
  %v1016 = vsel %vm747, %v992, 0.0
  %1017 = vadd.xlane.f32.xlu0 %v1016
  %v1018 = vpop.xlane.xlu0 %1017
  %v1019 = vsel %vm747, %v993, 0.0
  %1020 = vadd.xlane.f32.xlu0 %v1019
  %v1021 = vpop.xlane.xlu0 %1020
  %v1022 = vsel %vm747, %v994, 0.0
  %1023 = vadd.xlane.f32.xlu0 %v1022
  %v1024 = vpop.xlane.xlu0 %1023
  %v1025 = vsel %vm747, %v995, 0.0
  %1026 = vadd.xlane.f32.xlu0 %v1025
  %v1027 = vpop.xlane.xlu0 %1026
  %v1028 = vsel %vm747, %v996, 0.0
  %1029 = vadd.xlane.f32.xlu0 %v1028
  %v1030 = vpop.xlane.xlu0 %1029
  %v1031 = vsel %vm747, %v997, 0.0
  %1032 = vadd.xlane.f32.xlu0 %v1031
  %v1033 = vpop.xlane.xlu0 %1032
  %v1034 = vsel %vm747, %v998, 0.0
  %1035 = vadd.xlane.f32.xlu0 %v1034
  %v1036 = vpop.xlane.xlu0 %1035
  %v1037 = vsel %vm747, %v999, 0.0
  %1038 = vadd.xlane.f32.xlu0 %v1037
  %v1039 = vpop.xlane.xlu0 %1038
  %v1040 = vsel %vm747, %v1000, 0.0
  %1041 = vadd.xlane.f32.xlu0 %v1040
  %v1042 = vpop.xlane.xlu0 %1041
  %v1043 = vsel %vm747, %v1001, 0.0
  %1044 = vadd.xlane.f32.xlu0 %v1043
  %v1045 = vpop.xlane.xlu0 %1044
  %v1046 = vsel %vm747, %v1002, 0.0
  %1047 = vadd.xlane.f32.xlu0 %v1046
  %v1048 = vpop.xlane.xlu0 %1047
  %v1049 = vsel %vm747, %v1003, 0.0
  %1050 = vadd.xlane.f32.xlu0 %v1049
  %v1051 = vpop.xlane.xlu0 %1050
  %v1052 = vadd.f32 %v1006, 1e-12
  %v1053 = vadd.f32 %v1009, 1e-12
  %v1054 = vadd.f32 %v1012, 1e-12
  %v1055 = vadd.f32 %v1015, 1e-12
  %v1056 = vadd.f32 %v1018, 1e-12
  %v1057 = vadd.f32 %v1021, 1e-12
  %v1058 = vadd.f32 %v1024, 1e-12
  %v1059 = vadd.f32 %v1027, 1e-12
  %v1060 = vadd.f32 %v1030, 1e-12
  %v1061 = vadd.f32 %v1033, 1e-12
  %v1062 = vadd.f32 %v1036, 1e-12
  %v1063 = vadd.f32 %v1039, 1e-12
  %v1064 = vadd.f32 %v1042, 1e-12
  %v1065 = vadd.f32 %v1045, 1e-12
  %v1066 = vadd.f32 %v1048, 1e-12
  %v1067 = vadd.f32 %v1051, 1e-12
  %v1068 = vrsqrt.pop %v1052
  %v1069 = vmul.f32 %v1068, %v1052
  %v1070 = vmul.f32 %v1069, %v1068
  %v1071 = vmul.f32 0.5, %v1070
  %v1072 = vsub.f32 1.5, %v1071
  %v1073 = vmul.f32 %v1068, %v1072
  %vm1074 = vweird.f32 %v1052
  %vm1075 = vweird.f32 %v1068
  %vm1076 = vmor %vm1074, %vm1075
  %v1077 = vsel %vm1076, %v1068, %v1073
  %v1078 = vrsqrt.pop %v1053
  %v1079 = vmul.f32 %v1078, %v1053
  %v1080 = vmul.f32 %v1079, %v1078
  %v1081 = vmul.f32 0.5, %v1080
  %v1082 = vsub.f32 1.5, %v1081
  %v1083 = vmul.f32 %v1078, %v1082
  %vm1084 = vweird.f32 %v1053
  %vm1085 = vweird.f32 %v1078
  %vm1086 = vmor %vm1084, %vm1085
  %v1087 = vsel %vm1086, %v1078, %v1083
  %v1088 = vrsqrt.pop %v1054
  %v1089 = vmul.f32 %v1088, %v1054
  %v1090 = vmul.f32 %v1089, %v1088
  %v1091 = vmul.f32 0.5, %v1090
  %v1092 = vsub.f32 1.5, %v1091
  %v1093 = vmul.f32 %v1088, %v1092
  %vm1094 = vweird.f32 %v1054
  %vm1095 = vweird.f32 %v1088
  %vm1096 = vmor %vm1094, %vm1095
  %v1097 = vsel %vm1096, %v1088, %v1093
  %v1098 = vrsqrt.pop %v1055
  %v1099 = vmul.f32 %v1098, %v1055
  %v1100 = vmul.f32 %v1099, %v1098
  %v1101 = vmul.f32 0.5, %v1100
  %v1102 = vsub.f32 1.5, %v1101
  %v1103 = vmul.f32 %v1098, %v1102
  %vm1104 = vweird.f32 %v1055
  %vm1105 = vweird.f32 %v1098
  %vm1106 = vmor %vm1104, %vm1105
  %v1107 = vsel %vm1106, %v1098, %v1103
  %v1108 = vrsqrt.pop %v1056
  %v1109 = vmul.f32 %v1108, %v1056
  %v1110 = vmul.f32 %v1109, %v1108
  %v1111 = vmul.f32 0.5, %v1110
  %v1112 = vsub.f32 1.5, %v1111
  %v1113 = vmul.f32 %v1108, %v1112
  %vm1114 = vweird.f32 %v1056
  %vm1115 = vweird.f32 %v1108
  %vm1116 = vmor %vm1114, %vm1115
  %v1117 = vsel %vm1116, %v1108, %v1113
  %v1118 = vrsqrt.pop %v1057
  %v1119 = vmul.f32 %v1118, %v1057
  %v1120 = vmul.f32 %v1119, %v1118
  %v1121 = vmul.f32 0.5, %v1120
  %v1122 = vsub.f32 1.5, %v1121
  %v1123 = vmul.f32 %v1118, %v1122
  %vm1124 = vweird.f32 %v1057
  %vm1125 = vweird.f32 %v1118
  %vm1126 = vmor %vm1124, %vm1125
  %v1127 = vsel %vm1126, %v1118, %v1123
  %v1128 = vrsqrt.pop %v1058
  %v1129 = vmul.f32 %v1128, %v1058
  %v1130 = vmul.f32 %v1129, %v1128
  %v1131 = vmul.f32 0.5, %v1130
  %v1132 = vsub.f32 1.5, %v1131
  %v1133 = vmul.f32 %v1128, %v1132
  %vm1134 = vweird.f32 %v1058
  %vm1135 = vweird.f32 %v1128
  %vm1136 = vmor %vm1134, %vm1135
  %v1137 = vsel %vm1136, %v1128, %v1133
  %v1138 = vrsqrt.pop %v1059
  %v1139 = vmul.f32 %v1138, %v1059
  %v1140 = vmul.f32 %v1139, %v1138
  %v1141 = vmul.f32 0.5, %v1140
  %v1142 = vsub.f32 1.5, %v1141
  %v1143 = vmul.f32 %v1138, %v1142
  %vm1144 = vweird.f32 %v1059
  %vm1145 = vweird.f32 %v1138
  %vm1146 = vmor %vm1144, %vm1145
  %v1147 = vsel %vm1146, %v1138, %v1143
  %v1148 = vrsqrt.pop %v1060
  %v1149 = vmul.f32 %v1148, %v1060
  %v1150 = vmul.f32 %v1149, %v1148
  %v1151 = vmul.f32 0.5, %v1150
  %v1152 = vsub.f32 1.5, %v1151
  %v1153 = vmul.f32 %v1148, %v1152
  %vm1154 = vweird.f32 %v1060
  %vm1155 = vweird.f32 %v1148
  %vm1156 = vmor %vm1154, %vm1155
  %v1157 = vsel %vm1156, %v1148, %v1153
  %v1158 = vrsqrt.pop %v1061
  %v1159 = vmul.f32 %v1158, %v1061
  %v1160 = vmul.f32 %v1159, %v1158
  %v1161 = vmul.f32 0.5, %v1160
  %v1162 = vsub.f32 1.5, %v1161
  %v1163 = vmul.f32 %v1158, %v1162
  %vm1164 = vweird.f32 %v1061
  %vm1165 = vweird.f32 %v1158
  %vm1166 = vmor %vm1164, %vm1165
  %v1167 = vsel %vm1166, %v1158, %v1163
  %v1168 = vrsqrt.pop %v1062
  %v1169 = vmul.f32 %v1168, %v1062
  %v1170 = vmul.f32 %v1169, %v1168
  %v1171 = vmul.f32 0.5, %v1170
  %v1172 = vsub.f32 1.5, %v1171
  %v1173 = vmul.f32 %v1168, %v1172
  %vm1174 = vweird.f32 %v1062
  %vm1175 = vweird.f32 %v1168
  %vm1176 = vmor %vm1174, %vm1175
  %v1177 = vsel %vm1176, %v1168, %v1173
  %v1178 = vrsqrt.pop %v1063
  %v1179 = vmul.f32 %v1178, %v1063
  %v1180 = vmul.f32 %v1179, %v1178
  %v1181 = vmul.f32 0.5, %v1180
  %v1182 = vsub.f32 1.5, %v1181
  %v1183 = vmul.f32 %v1178, %v1182
  %vm1184 = vweird.f32 %v1063
  %vm1185 = vweird.f32 %v1178
  %vm1186 = vmor %vm1184, %vm1185
  %v1187 = vsel %vm1186, %v1178, %v1183
  %v1188 = vrsqrt.pop %v1064
  %v1189 = vmul.f32 %v1188, %v1064
  %v1190 = vmul.f32 %v1189, %v1188
  %v1191 = vmul.f32 0.5, %v1190
  %v1192 = vsub.f32 1.5, %v1191
  %v1193 = vmul.f32 %v1188, %v1192
  %vm1194 = vweird.f32 %v1064
  %vm1195 = vweird.f32 %v1188
  %vm1196 = vmor %vm1194, %vm1195
  %v1197 = vsel %vm1196, %v1188, %v1193
  %v1198 = vrsqrt.pop %v1065
  %v1199 = vmul.f32 %v1198, %v1065
  %v1200 = vmul.f32 %v1199, %v1198
  %v1201 = vmul.f32 0.5, %v1200
  %v1202 = vsub.f32 1.5, %v1201
  %v1203 = vmul.f32 %v1198, %v1202
  %vm1204 = vweird.f32 %v1065
  %vm1205 = vweird.f32 %v1198
  %vm1206 = vmor %vm1204, %vm1205
  %v1207 = vsel %vm1206, %v1198, %v1203
  %v1208 = vrsqrt.pop %v1066
  %v1209 = vmul.f32 %v1208, %v1066
  %v1210 = vmul.f32 %v1209, %v1208
  %v1211 = vmul.f32 0.5, %v1210
  %v1212 = vsub.f32 1.5, %v1211
  %v1213 = vmul.f32 %v1208, %v1212
  %vm1214 = vweird.f32 %v1066
  %vm1215 = vweird.f32 %v1208
  %vm1216 = vmor %vm1214, %vm1215
  %v1217 = vsel %vm1216, %v1208, %v1213
  %v1218 = vrsqrt.pop %v1067
  %v1219 = vmul.f32 %v1218, %v1067
  %v1220 = vmul.f32 %v1219, %v1218
  %v1221 = vmul.f32 0.5, %v1220
  %v1222 = vsub.f32 1.5, %v1221
  %v1223 = vmul.f32 %v1218, %v1222
  %vm1224 = vweird.f32 %v1067
  %vm1225 = vweird.f32 %v1218
  %vm1226 = vmor %vm1224, %vm1225
  %v1227 = vsel %vm1226, %v1218, %v1223
  %v1228 = vmul.f32 %v683, %v972
  %v1229 = vmul.f32 %v684, %v973
  %v1230 = vmul.f32 %v685, %v974
  %v1231 = vmul.f32 %v686, %v975
  %v1232 = vmul.f32 %v687, %v976
  %v1233 = vmul.f32 %v688, %v977
  %v1234 = vmul.f32 %v689, %v978
  %v1235 = vmul.f32 %v690, %v979
  %v1236 = vmul.f32 %v691, %v980
  %v1237 = vmul.f32 %v692, %v981
  %v1238 = vmul.f32 %v693, %v982
  %v1239 = vmul.f32 %v694, %v983
  %v1240 = vmul.f32 %v695, %v984
  %v1241 = vmul.f32 %v696, %v985
  %v1242 = vmul.f32 %v697, %v986
  %v1243 = vmul.f32 %v698, %v987
  %v1244 = vpack.c.bf16 %v1229, %v1228
  %v1245 = vpack.c.bf16 %v1231, %v1230
  %v1246 = vpack.c.bf16 %v1233, %v1232
  %v1247 = vpack.c.bf16 %v1235, %v1234
  %v1248 = vpack.c.bf16 %v1237, %v1236
  %v1249 = vpack.c.bf16 %v1239, %v1238
  %v1250 = vpack.c.bf16 %v1241, %v1240
  %v1251 = vpack.c.bf16 %v1243, %v1242
  %v1252 = vmul.f32 %v715, %v1077
  %v1253 = vmul.f32 %v716, %v1087
  %v1254 = vmul.f32 %v717, %v1097
  %v1255 = vmul.f32 %v718, %v1107
  %v1256 = vmul.f32 %v719, %v1117
  %v1257 = vmul.f32 %v720, %v1127
  %v1258 = vmul.f32 %v721, %v1137
  %v1259 = vmul.f32 %v722, %v1147
  %v1260 = vmul.f32 %v723, %v1157
  %v1261 = vmul.f32 %v724, %v1167
  %v1262 = vmul.f32 %v725, %v1177
  %v1263 = vmul.f32 %v726, %v1187
  %v1264 = vmul.f32 %v727, %v1197
  %v1265 = vmul.f32 %v728, %v1207
  %v1266 = vmul.f32 %v729, %v1217
  %v1267 = vmul.f32 %v730, %v1227
  %v1268 = vpack.c.bf16 %v1253, %v1252
  %v1269 = vpack.c.bf16 %v1255, %v1254
  %v1270 = vpack.c.bf16 %v1257, %v1256
  %v1271 = vpack.c.bf16 %v1259, %v1258
  %v1272 = vpack.c.bf16 %v1261, %v1260
  %v1273 = vpack.c.bf16 %v1263, %v1262
  %v1274 = vpack.c.bf16 %v1265, %v1264
  %v1275 = vpack.c.bf16 %v1267, %v1266
  %v1277 = vsel %vm747, %v1244, 0
  %v1280 = vsel %vm747, %v1245, 0
  %v1283 = vsel %vm747, %v1246, 0
  %v1286 = vsel %vm747, %v1247, 0
  %v1289 = vsel %vm747, %v1248, 0
  %v1292 = vsel %vm747, %v1249, 0
  %v1295 = vsel %vm747, %v1250, 0
  %v1298 = vsel %vm747, %v1251, 0
  %v1301 = vsel %vm747, %v1268, 0
  %v1304 = vsel %vm747, %v1269, 0
  %v1307 = vsel %vm747, %v1270, 0
  %v1310 = vsel %vm747, %v1271, 0
  %v1313 = vsel %vm747, %v1272, 0
  %v1316 = vsel %vm747, %v1273, 0
  %v1319 = vsel %vm747, %v1274, 0
  %v1322 = vsel %vm747, %v1275, 0
  %1324 = vmatpush.bf16.xpose.msra.mxu0 %v1322
  %1325 = vmatpush.bf16.xpose.msra.mxu0 %v1319
  %1326 = vmatpush.bf16.xpose.msra.mxu0 %v1316
  %1327 = vmatpush.bf16.xpose.msra.mxu0 %v1313
  %1328 = vmatpush.bf16.xpose.msra.mxu0 %v1310
  %1329 = vmatpush.bf16.xpose.msra.mxu0 %v1307
  %1330 = vmatpush.bf16.xpose.msra.mxu0 %v1304
  %1331 = vmatpush.bf16.xpose.msra.mxu0 %v1301
  %1332 = vmatmul.bf16.gmra.mxu0 %v1277
  %v1333 = vpop.f32.mrf.mxu0
  %v1334 = vadd.f32 0.0, %v1333
  %v1335 = vpop.f32.mrf.mxu0
  %v1336 = vadd.f32 0.0, %v1335
  %1337 = vmatmul.bf16.gmra.mxu0 %v1280
  %v1338 = vpop.f32.mrf.mxu0
  %v1339 = vadd.f32 0.0, %v1338
  %v1340 = vpop.f32.mrf.mxu0
  %v1341 = vadd.f32 0.0, %v1340
  %1342 = vmatmul.bf16.gmra.mxu0 %v1283
  %v1343 = vpop.f32.mrf.mxu0
  %v1344 = vadd.f32 0.0, %v1343
  %v1345 = vpop.f32.mrf.mxu0
  %v1346 = vadd.f32 0.0, %v1345
  %1347 = vmatmul.bf16.gmra.mxu0 %v1286
  %v1348 = vpop.f32.mrf.mxu0
  %v1349 = vadd.f32 0.0, %v1348
  %v1350 = vpop.f32.mrf.mxu0
  %v1351 = vadd.f32 0.0, %v1350
  %1352 = vmatmul.bf16.gmra.mxu0 %v1289
  %v1353 = vpop.f32.mrf.mxu0
  %v1354 = vadd.f32 0.0, %v1353
  %v1355 = vpop.f32.mrf.mxu0
  %v1356 = vadd.f32 0.0, %v1355
  %1357 = vmatmul.bf16.gmra.mxu0 %v1292
  %v1358 = vpop.f32.mrf.mxu0
  %v1359 = vadd.f32 0.0, %v1358
  %v1360 = vpop.f32.mrf.mxu0
  %v1361 = vadd.f32 0.0, %v1360
  %1362 = vmatmul.bf16.gmra.mxu0 %v1295
  %v1363 = vpop.f32.mrf.mxu0
  %v1364 = vadd.f32 0.0, %v1363
  %v1365 = vpop.f32.mrf.mxu0
  %v1366 = vadd.f32 0.0, %v1365
  %1367 = vmatmul.bf16.gmra.mxu0 %v1298
  %v1368 = vpop.f32.mrf.mxu0
  %v1369 = vadd.f32 0.0, %v1368
  %v1370 = vpop.f32.mrf.mxu0
  %v1371 = vadd.f32 0.0, %v1370
  %1372 = vdwg.mxu0
  %v1373 = vmax.f32 %v1334, %v1344
  %v1374 = vmax.f32 %v1336, %v1346
  %v1375 = vmax.f32 %v1339, %v1349
  %v1376 = vmax.f32 %v1341, %v1351
  %v1377 = vmax.f32 %v1373, %v1354
  %v1378 = vmax.f32 %v1374, %v1356
  %v1379 = vmax.f32 %v1375, %v1359
  %v1380 = vmax.f32 %v1376, %v1361
  %v1381 = vmax.f32 %v1377, %v1364
  %v1382 = vmax.f32 %v1378, %v1366
  %v1383 = vmax.f32 %v1379, %v1369
  %v1384 = vmax.f32 %v1380, %v1371
  %v1385 = vmax.f32 %v1381, %v1382
  %v1386 = vmax.f32 %v1383, %v1384
  %v1387 = vmax.f32 %v1385, %v1386
  %v1388 = vrot.slane %v1387, 4
  %v1389 = vmax.f32 %v1387, %v1388
  %v1390 = vrot.slane %v1389, 2
  %v1391 = vmax.f32 %v1389, %v1390
  %v1392 = vrot.slane %v1391, 1
  %v1393 = vmax.f32 %v1391, %v1392
  %v1394 = vsub.f32 %v1334, %v1393
  %v1395 = vsub.f32 %v1336, %v1393
  %v1396 = vsub.f32 %v1339, %v1393
  %v1397 = vsub.f32 %v1341, %v1393
  %v1398 = vsub.f32 %v1344, %v1393
  %v1399 = vsub.f32 %v1346, %v1393
  %v1400 = vsub.f32 %v1349, %v1393
  %v1401 = vsub.f32 %v1351, %v1393
  %v1402 = vsub.f32 %v1354, %v1393
  %v1403 = vsub.f32 %v1356, %v1393
  %v1404 = vsub.f32 %v1359, %v1393
  %v1405 = vsub.f32 %v1361, %v1393
  %v1406 = vsub.f32 %v1364, %v1393
  %v1407 = vsub.f32 %v1366, %v1393
  %v1408 = vsub.f32 %v1369, %v1393
  %v1409 = vsub.f32 %v1371, %v1393
  %v1410 = vmul.f32 %v1394, 1.442695
  %v1411 = vpow.pop %v1410
  %v1412 = vmul.f32 %v1395, 1.442695
  %v1413 = vpow.pop %v1412
  %v1414 = vmul.f32 %v1396, 1.442695
  %v1415 = vpow.pop %v1414
  %v1416 = vmul.f32 %v1397, 1.442695
  %v1417 = vpow.pop %v1416
  %v1418 = vmul.f32 %v1398, 1.442695
  %v1419 = vpow.pop %v1418
  %v1420 = vmul.f32 %v1399, 1.442695
  %v1421 = vpow.pop %v1420
  %v1422 = vmul.f32 %v1400, 1.442695
  %v1423 = vpow.pop %v1422
  %v1424 = vmul.f32 %v1401, 1.442695
  %v1425 = vpow.pop %v1424
  %v1426 = vmul.f32 %v1402, 1.442695
  %v1427 = vpow.pop %v1426
  %v1428 = vmul.f32 %v1403, 1.442695
  %v1429 = vpow.pop %v1428
  %v1430 = vmul.f32 %v1404, 1.442695
  %v1431 = vpow.pop %v1430
  %v1432 = vmul.f32 %v1405, 1.442695
  %v1433 = vpow.pop %v1432
  %v1434 = vmul.f32 %v1406, 1.442695
  %v1435 = vpow.pop %v1434
  %v1436 = vmul.f32 %v1407, 1.442695
  %v1437 = vpow.pop %v1436
  %v1438 = vmul.f32 %v1408, 1.442695
  %v1439 = vpow.pop %v1438
  %v1440 = vmul.f32 %v1409, 1.442695
  %v1441 = vpow.pop %v1440
  %v1442 = vadd.f32 %v1411, %v1413
  %v1443 = vadd.f32 %v1442, %v1415
  %v1444 = vadd.f32 %v1443, %v1417
  %v1445 = vadd.f32 %v1444, %v1419
  %v1446 = vadd.f32 %v1445, %v1421
  %v1447 = vadd.f32 %v1446, %v1423
  %v1448 = vadd.f32 %v1447, %v1425
  %v1449 = vadd.f32 %v1448, %v1427
  %v1450 = vadd.f32 %v1449, %v1429
  %v1451 = vadd.f32 %v1450, %v1431
  %v1452 = vadd.f32 %v1451, %v1433
  %v1453 = vadd.f32 %v1452, %v1435
  %v1454 = vadd.f32 %v1453, %v1437
  %v1455 = vadd.f32 %v1454, %v1439
  %v1456 = vadd.f32 %v1455, %v1441
  %v1457 = vrot.slane %v1456, 4
  %v1458 = vadd.f32 %v1456, %v1457
  %v1459 = vrot.slane %v1458, 2
  %v1460 = vadd.f32 %v1458, %v1459
  %v1461 = vrot.slane %v1460, 1
  %v1462 = vadd.f32 %v1460, %v1461
  %v1463 = vlog2.pop %v1462
  %v1464 = vmul.f32 %v1463, 0.6931472
  %v1465 = vadd.f32 %v1393, %v1464
  %1466 = vmax.xlane.f32.xlu0 %v1334
  %v1467 = vpop.xlane.xlu0 %1466
  %1468 = vmax.xlane.f32.xlu0 %v1336
  %v1469 = vpop.xlane.xlu0 %1468
  %1470 = vmax.xlane.f32.xlu0 %v1339
  %v1471 = vpop.xlane.xlu0 %1470
  %1472 = vmax.xlane.f32.xlu0 %v1341
  %v1473 = vpop.xlane.xlu0 %1472
  %1474 = vmax.xlane.f32.xlu0 %v1344
  %v1475 = vpop.xlane.xlu0 %1474
  %1476 = vmax.xlane.f32.xlu0 %v1346
  %v1477 = vpop.xlane.xlu0 %1476
  %1478 = vmax.xlane.f32.xlu0 %v1349
  %v1479 = vpop.xlane.xlu0 %1478
  %1480 = vmax.xlane.f32.xlu0 %v1351
  %v1481 = vpop.xlane.xlu0 %1480
  %1482 = vmax.xlane.f32.xlu0 %v1354
  %v1483 = vpop.xlane.xlu0 %1482
  %1484 = vmax.xlane.f32.xlu0 %v1356
  %v1485 = vpop.xlane.xlu0 %1484
  %1486 = vmax.xlane.f32.xlu0 %v1359
  %v1487 = vpop.xlane.xlu0 %1486
  %1488 = vmax.xlane.f32.xlu0 %v1361
  %v1489 = vpop.xlane.xlu0 %1488
  %1490 = vmax.xlane.f32.xlu0 %v1364
  %v1491 = vpop.xlane.xlu0 %1490
  %1492 = vmax.xlane.f32.xlu0 %v1366
  %v1493 = vpop.xlane.xlu0 %1492
  %1494 = vmax.xlane.f32.xlu0 %v1369
  %v1495 = vpop.xlane.xlu0 %1494
  %1496 = vmax.xlane.f32.xlu0 %v1371
  %v1497 = vpop.xlane.xlu0 %1496
  %v1498 = vsub.f32 %v1334, %v1467
  %v1499 = vsub.f32 %v1336, %v1469
  %v1500 = vsub.f32 %v1339, %v1471
  %v1501 = vsub.f32 %v1341, %v1473
  %v1502 = vsub.f32 %v1344, %v1475
  %v1503 = vsub.f32 %v1346, %v1477
  %v1504 = vsub.f32 %v1349, %v1479
  %v1505 = vsub.f32 %v1351, %v1481
  %v1506 = vsub.f32 %v1354, %v1483
  %v1507 = vsub.f32 %v1356, %v1485
  %v1508 = vsub.f32 %v1359, %v1487
  %v1509 = vsub.f32 %v1361, %v1489
  %v1510 = vsub.f32 %v1364, %v1491
  %v1511 = vsub.f32 %v1366, %v1493
  %v1512 = vsub.f32 %v1369, %v1495
  %v1513 = vsub.f32 %v1371, %v1497
  %v1514 = vmul.f32 %v1498, 1.442695
  %v1515 = vpow.pop %v1514
  %v1516 = vmul.f32 %v1499, 1.442695
  %v1517 = vpow.pop %v1516
  %v1518 = vmul.f32 %v1500, 1.442695
  %v1519 = vpow.pop %v1518
  %v1520 = vmul.f32 %v1501, 1.442695
  %v1521 = vpow.pop %v1520
  %v1522 = vmul.f32 %v1502, 1.442695
  %v1523 = vpow.pop %v1522
  %v1524 = vmul.f32 %v1503, 1.442695
  %v1525 = vpow.pop %v1524
  %v1526 = vmul.f32 %v1504, 1.442695
  %v1527 = vpow.pop %v1526
  %v1528 = vmul.f32 %v1505, 1.442695
  %v1529 = vpow.pop %v1528
  %v1530 = vmul.f32 %v1506, 1.442695
  %v1531 = vpow.pop %v1530
  %v1532 = vmul.f32 %v1507, 1.442695
  %v1533 = vpow.pop %v1532
  %v1534 = vmul.f32 %v1508, 1.442695
  %v1535 = vpow.pop %v1534
  %v1536 = vmul.f32 %v1509, 1.442695
  %v1537 = vpow.pop %v1536
  %v1538 = vmul.f32 %v1510, 1.442695
  %v1539 = vpow.pop %v1538
  %v1540 = vmul.f32 %v1511, 1.442695
  %v1541 = vpow.pop %v1540
  %v1542 = vmul.f32 %v1512, 1.442695
  %v1543 = vpow.pop %v1542
  %v1544 = vmul.f32 %v1513, 1.442695
  %v1545 = vpow.pop %v1544
  %1546 = vadd.xlane.f32.xlu0 %v1515
  %v1547 = vpop.xlane.xlu0 %1546
  %1548 = vadd.xlane.f32.xlu0 %v1517
  %v1549 = vpop.xlane.xlu0 %1548
  %1550 = vadd.xlane.f32.xlu0 %v1519
  %v1551 = vpop.xlane.xlu0 %1550
  %1552 = vadd.xlane.f32.xlu0 %v1521
  %v1553 = vpop.xlane.xlu0 %1552
  %1554 = vadd.xlane.f32.xlu0 %v1523
  %v1555 = vpop.xlane.xlu0 %1554
  %1556 = vadd.xlane.f32.xlu0 %v1525
  %v1557 = vpop.xlane.xlu0 %1556
  %1558 = vadd.xlane.f32.xlu0 %v1527
  %v1559 = vpop.xlane.xlu0 %1558
  %1560 = vadd.xlane.f32.xlu0 %v1529
  %v1561 = vpop.xlane.xlu0 %1560
  %1562 = vadd.xlane.f32.xlu0 %v1531
  %v1563 = vpop.xlane.xlu0 %1562
  %1564 = vadd.xlane.f32.xlu0 %v1533
  %v1565 = vpop.xlane.xlu0 %1564
  %1566 = vadd.xlane.f32.xlu0 %v1535
  %v1567 = vpop.xlane.xlu0 %1566
  %1568 = vadd.xlane.f32.xlu0 %v1537
  %v1569 = vpop.xlane.xlu0 %1568
  %1570 = vadd.xlane.f32.xlu0 %v1539
  %v1571 = vpop.xlane.xlu0 %1570
  %1572 = vadd.xlane.f32.xlu0 %v1541
  %v1573 = vpop.xlane.xlu0 %1572
  %1574 = vadd.xlane.f32.xlu0 %v1543
  %v1575 = vpop.xlane.xlu0 %1574
  %1576 = vadd.xlane.f32.xlu0 %v1545
  %v1577 = vpop.xlane.xlu0 %1576
  %v1578 = vlog2.pop %v1547
  %v1579 = vmul.f32 %v1578, 0.6931472
  %v1580 = vlog2.pop %v1549
  %v1581 = vmul.f32 %v1580, 0.6931472
  %v1582 = vlog2.pop %v1551
  %v1583 = vmul.f32 %v1582, 0.6931472
  %v1584 = vlog2.pop %v1553
  %v1585 = vmul.f32 %v1584, 0.6931472
  %v1586 = vlog2.pop %v1555
  %v1587 = vmul.f32 %v1586, 0.6931472
  %v1588 = vlog2.pop %v1557
  %v1589 = vmul.f32 %v1588, 0.6931472
  %v1590 = vlog2.pop %v1559
  %v1591 = vmul.f32 %v1590, 0.6931472
  %v1592 = vlog2.pop %v1561
  %v1593 = vmul.f32 %v1592, 0.6931472
  %v1594 = vlog2.pop %v1563
  %v1595 = vmul.f32 %v1594, 0.6931472
  %v1596 = vlog2.pop %v1565
  %v1597 = vmul.f32 %v1596, 0.6931472
  %v1598 = vlog2.pop %v1567
  %v1599 = vmul.f32 %v1598, 0.6931472
  %v1600 = vlog2.pop %v1569
  %v1601 = vmul.f32 %v1600, 0.6931472
  %v1602 = vlog2.pop %v1571
  %v1603 = vmul.f32 %v1602, 0.6931472
  %v1604 = vlog2.pop %v1573
  %v1605 = vmul.f32 %v1604, 0.6931472
  %v1606 = vlog2.pop %v1575
  %v1607 = vmul.f32 %v1606, 0.6931472
  %v1608 = vlog2.pop %v1577
  %v1609 = vmul.f32 %v1608, 0.6931472
  %v1610 = vadd.f32 %v1467, %v1579
  %v1611 = vadd.f32 %v1469, %v1581
  %v1612 = vadd.f32 %v1471, %v1583
  %v1613 = vadd.f32 %v1473, %v1585
  %v1614 = vadd.f32 %v1475, %v1587
  %v1615 = vadd.f32 %v1477, %v1589
  %v1616 = vadd.f32 %v1479, %v1591
  %v1617 = vadd.f32 %v1481, %v1593
  %v1618 = vadd.f32 %v1483, %v1595
  %v1619 = vadd.f32 %v1485, %v1597
  %v1620 = vadd.f32 %v1487, %v1599
  %v1621 = vadd.f32 %v1489, %v1601
  %v1622 = vadd.f32 %v1491, %v1603
  %v1623 = vadd.f32 %v1493, %v1605
  %v1624 = vadd.f32 %v1495, %v1607
  %v1625 = vadd.f32 %v1497, %v1609
  %v1626 = vsub.f32 %v1334, %v1465
  %v1627 = vsub.f32 %v1336, %v1465
  %v1628 = vsub.f32 %v1339, %v1465
  %v1629 = vsub.f32 %v1341, %v1465
  %v1630 = vsub.f32 %v1344, %v1465
  %v1631 = vsub.f32 %v1346, %v1465
  %v1632 = vsub.f32 %v1349, %v1465
  %v1633 = vsub.f32 %v1351, %v1465
  %v1634 = vsub.f32 %v1354, %v1465
  %v1635 = vsub.f32 %v1356, %v1465
  %v1636 = vsub.f32 %v1359, %v1465
  %v1637 = vsub.f32 %v1361, %v1465
  %v1638 = vsub.f32 %v1364, %v1465
  %v1639 = vsub.f32 %v1366, %v1465
  %v1640 = vsub.f32 %v1369, %v1465
  %v1641 = vsub.f32 %v1371, %v1465
  %v1642 = vsub.f32 %v1334, %v1610
  %v1643 = vsub.f32 %v1336, %v1611
  %v1644 = vsub.f32 %v1339, %v1612
  %v1645 = vsub.f32 %v1341, %v1613
  %v1646 = vsub.f32 %v1344, %v1614
  %v1647 = vsub.f32 %v1346, %v1615
  %v1648 = vsub.f32 %v1349, %v1616
  %v1649 = vsub.f32 %v1351, %v1617
  %v1650 = vsub.f32 %v1354, %v1618
  %v1651 = vsub.f32 %v1356, %v1619
  %v1652 = vsub.f32 %v1359, %v1620
  %v1653 = vsub.f32 %v1361, %v1621
  %v1654 = vsub.f32 %v1364, %v1622
  %v1655 = vsub.f32 %v1366, %v1623
  %v1656 = vsub.f32 %v1369, %v1624
  %v1657 = vsub.f32 %v1371, %v1625
  %v1658 = vadd.f32 %v1626, %v1642
  %v1659 = vadd.f32 %v1627, %v1643
  %v1660 = vadd.f32 %v1628, %v1644
  %v1661 = vadd.f32 %v1629, %v1645
  %v1662 = vadd.f32 %v1630, %v1646
  %v1663 = vadd.f32 %v1631, %v1647
  %v1664 = vadd.f32 %v1632, %v1648
  %v1665 = vadd.f32 %v1633, %v1649
  %v1666 = vadd.f32 %v1634, %v1650
  %v1667 = vadd.f32 %v1635, %v1651
  %v1668 = vadd.f32 %v1636, %v1652
  %v1669 = vadd.f32 %v1637, %v1653
  %v1670 = vadd.f32 %v1638, %v1654
  %v1671 = vadd.f32 %v1639, %v1655
  %v1672 = vadd.f32 %v1640, %v1656
  %v1673 = vadd.f32 %v1641, %v1657
  %v1674 = vmul.f32 %v651, %v1658
  %v1675 = vmul.f32 %v652, %v1659
  %v1676 = vmul.f32 %v653, %v1660
  %v1677 = vmul.f32 %v654, %v1661
  %v1678 = vmul.f32 %v655, %v1662
  %v1679 = vmul.f32 %v656, %v1663
  %v1680 = vmul.f32 %v657, %v1664
  %v1681 = vmul.f32 %v658, %v1665
  %v1682 = vmul.f32 %v659, %v1666
  %v1683 = vmul.f32 %v660, %v1667
  %v1684 = vmul.f32 %v661, %v1668
  %v1685 = vmul.f32 %v662, %v1669
  %v1686 = vmul.f32 %v663, %v1670
  %v1687 = vmul.f32 %v664, %v1671
  %v1688 = vmul.f32 %v665, %v1672
  %v1689 = vmul.f32 %v666, %v1673
  %v1690 = vadd.f32 %v1674, %v1675
  %v1691 = vadd.f32 %v1690, %v1676
  %v1692 = vadd.f32 %v1691, %v1677
  %v1693 = vadd.f32 %v1692, %v1678
  %v1694 = vadd.f32 %v1693, %v1679
  %v1695 = vadd.f32 %v1694, %v1680
  %v1696 = vadd.f32 %v1695, %v1681
  %v1697 = vadd.f32 %v1696, %v1682
  %v1698 = vadd.f32 %v1697, %v1683
  %v1699 = vadd.f32 %v1698, %v1684
  %v1700 = vadd.f32 %v1699, %v1685
  %v1701 = vadd.f32 %v1700, %v1686
  %v1702 = vadd.f32 %v1701, %v1687
  %v1703 = vadd.f32 %v1702, %v1688
  %v1704 = vadd.f32 %v1703, %v1689
  %v1705 = vrot.slane %v1704, 4
  %v1706 = vadd.f32 %v1704, %v1705
  %v1707 = vrot.slane %v1706, 2
  %v1708 = vadd.f32 %v1706, %v1707
  %v1709 = vrot.slane %v1708, 1
  %v1710 = vadd.f32 %v1708, %v1709
  %v1711 = vadd.f32 %v1710, 0.0
  %v1712 = vadd.f32 %v651, %v652
  %v1713 = vadd.f32 %v1712, %v653
  %v1714 = vadd.f32 %v1713, %v654
  %v1715 = vadd.f32 %v1714, %v655
  %v1716 = vadd.f32 %v1715, %v656
  %v1717 = vadd.f32 %v1716, %v657
  %v1718 = vadd.f32 %v1717, %v658
  %v1719 = vadd.f32 %v1718, %v659
  %v1720 = vadd.f32 %v1719, %v660
  %v1721 = vadd.f32 %v1720, %v661
  %v1722 = vadd.f32 %v1721, %v662
  %v1723 = vadd.f32 %v1722, %v663
  %v1724 = vadd.f32 %v1723, %v664
  %v1725 = vadd.f32 %v1724, %v665
  %v1726 = vadd.f32 %v1725, %v666
  %v1727 = vrot.slane %v1726, 4
  %v1728 = vadd.f32 %v1726, %v1727
  %v1729 = vrot.slane %v1728, 2
  %v1730 = vadd.f32 %v1728, %v1729
  %v1731 = vrot.slane %v1730, 1
  %v1732 = vadd.f32 %v1730, %v1731
  %v1733 = vadd.f32 %v1732, 0.0
  %s1734 = scalar_lea.vmem %s0, 128
  %v1735 = vld [vmem:[%s1734] sm:$0xff]
  %v1736 = vld [vmem:[%s1734 + $0x8] sm:$0xff]
  %v1737 = vld [vmem:[%s1734 + $0x10] sm:$0xff]
  %v1738 = vld [vmem:[%s1734 + $0x18] sm:$0xff]
  %v1739 = vld [vmem:[%s1734 + $0x20] sm:$0xff]
  %v1740 = vld [vmem:[%s1734 + $0x28] sm:$0xff]
  %v1741 = vld [vmem:[%s1734 + $0x30] sm:$0xff]
  %v1742 = vld [vmem:[%s1734 + $0x38] sm:$0xff]
  %v1743 = vld [vmem:[%s1734 + $0x40] sm:$0xff]
  %v1744 = vld [vmem:[%s1734 + $0x48] sm:$0xff]
  %v1745 = vld [vmem:[%s1734 + $0x50] sm:$0xff]
  %v1746 = vld [vmem:[%s1734 + $0x58] sm:$0xff]
  %v1747 = vld [vmem:[%s1734 + $0x60] sm:$0xff]
  %v1748 = vld [vmem:[%s1734 + $0x68] sm:$0xff]
  %v1749 = vld [vmem:[%s1734 + $0x70] sm:$0xff]
  %v1750 = vld [vmem:[%s1734 + $0x78] sm:$0xff]
  %s1751 = scalar_lea.vmem %s1, 4
  %v1752 = vld [vmem:[%s1751] sm:$0xf]
  %1754 = vset.pattern.permute.xlu0 2
  %1755 = vperm.xlu0 %1754, %v1735
  %v1756 = vpop.permute.xlu0 %1755
  %1759 = vset.pattern.permute.xlu0 2
  %1760 = vperm.xlu0 %1759, %v1736
  %v1761 = vpop.permute.xlu0 %1760
  %1764 = vset.pattern.permute.xlu0 2
  %1765 = vperm.xlu0 %1764, %v1737
  %v1766 = vpop.permute.xlu0 %1765
  %1769 = vset.pattern.permute.xlu0 2
  %1770 = vperm.xlu0 %1769, %v1738
  %v1771 = vpop.permute.xlu0 %1770
  %1774 = vset.pattern.permute.xlu0 2
  %1775 = vperm.xlu0 %1774, %v1739
  %v1776 = vpop.permute.xlu0 %1775
  %1779 = vset.pattern.permute.xlu0 2
  %1780 = vperm.xlu0 %1779, %v1740
  %v1781 = vpop.permute.xlu0 %1780
  %1784 = vset.pattern.permute.xlu0 2
  %1785 = vperm.xlu0 %1784, %v1741
  %v1786 = vpop.permute.xlu0 %1785
  %1789 = vset.pattern.permute.xlu0 2
  %1790 = vperm.xlu0 %1789, %v1742
  %v1791 = vpop.permute.xlu0 %1790
  %1794 = vset.pattern.permute.xlu0 2
  %1795 = vperm.xlu0 %1794, %v1743
  %v1796 = vpop.permute.xlu0 %1795
  %1799 = vset.pattern.permute.xlu0 2
  %1800 = vperm.xlu0 %1799, %v1744
  %v1801 = vpop.permute.xlu0 %1800
  %1804 = vset.pattern.permute.xlu0 2
  %1805 = vperm.xlu0 %1804, %v1745
  %v1806 = vpop.permute.xlu0 %1805
  %1809 = vset.pattern.permute.xlu0 2
  %1810 = vperm.xlu0 %1809, %v1746
  %v1811 = vpop.permute.xlu0 %1810
  %1814 = vset.pattern.permute.xlu0 2
  %1815 = vperm.xlu0 %1814, %v1747
  %v1816 = vpop.permute.xlu0 %1815
  %1819 = vset.pattern.permute.xlu0 2
  %1820 = vperm.xlu0 %1819, %v1748
  %v1821 = vpop.permute.xlu0 %1820
  %1824 = vset.pattern.permute.xlu0 2
  %1825 = vperm.xlu0 %1824, %v1749
  %v1826 = vpop.permute.xlu0 %1825
  %1829 = vset.pattern.permute.xlu0 2
  %1830 = vperm.xlu0 %1829, %v1750
  %v1831 = vpop.permute.xlu0 %1830
  %v1833 = vperm.slane %v1752, 0
  %v1834 = vsub.f32 %v1756, %v1833
  %v1835 = vsub.f32 %v1761, %v1833
  %v1836 = vsub.f32 %v1766, %v1833
  %v1837 = vsub.f32 %v1771, %v1833
  %v1838 = vsub.f32 %v1776, %v1833
  %v1839 = vsub.f32 %v1781, %v1833
  %v1840 = vsub.f32 %v1786, %v1833
  %v1841 = vsub.f32 %v1791, %v1833
  %v1842 = vsub.f32 %v1796, %v1833
  %v1843 = vsub.f32 %v1801, %v1833
  %v1844 = vsub.f32 %v1806, %v1833
  %v1845 = vsub.f32 %v1811, %v1833
  %v1846 = vsub.f32 %v1816, %v1833
  %v1847 = vsub.f32 %v1821, %v1833
  %v1848 = vsub.f32 %v1826, %v1833
  %v1849 = vsub.f32 %v1831, %v1833
  %1850 = vset.pattern.permute.xlu0 3
  %1851 = vperm.xlu0 %1850, %v1735
  %v1852 = vpop.permute.xlu0 %1851
  %1854 = vset.pattern.permute.xlu0 3
  %1855 = vperm.xlu0 %1854, %v1736
  %v1856 = vpop.permute.xlu0 %1855
  %1858 = vset.pattern.permute.xlu0 3
  %1859 = vperm.xlu0 %1858, %v1737
  %v1860 = vpop.permute.xlu0 %1859
  %1862 = vset.pattern.permute.xlu0 3
  %1863 = vperm.xlu0 %1862, %v1738
  %v1864 = vpop.permute.xlu0 %1863
  %1866 = vset.pattern.permute.xlu0 3
  %1867 = vperm.xlu0 %1866, %v1739
  %v1868 = vpop.permute.xlu0 %1867
  %1870 = vset.pattern.permute.xlu0 3
  %1871 = vperm.xlu0 %1870, %v1740
  %v1872 = vpop.permute.xlu0 %1871
  %1874 = vset.pattern.permute.xlu0 3
  %1875 = vperm.xlu0 %1874, %v1741
  %v1876 = vpop.permute.xlu0 %1875
  %1878 = vset.pattern.permute.xlu0 3
  %1879 = vperm.xlu0 %1878, %v1742
  %v1880 = vpop.permute.xlu0 %1879
  %1882 = vset.pattern.permute.xlu0 3
  %1883 = vperm.xlu0 %1882, %v1743
  %v1884 = vpop.permute.xlu0 %1883
  %1886 = vset.pattern.permute.xlu0 3
  %1887 = vperm.xlu0 %1886, %v1744
  %v1888 = vpop.permute.xlu0 %1887
  %1890 = vset.pattern.permute.xlu0 3
  %1891 = vperm.xlu0 %1890, %v1745
  %v1892 = vpop.permute.xlu0 %1891
  %1894 = vset.pattern.permute.xlu0 3
  %1895 = vperm.xlu0 %1894, %v1746
  %v1896 = vpop.permute.xlu0 %1895
  %1898 = vset.pattern.permute.xlu0 3
  %1899 = vperm.xlu0 %1898, %v1747
  %v1900 = vpop.permute.xlu0 %1899
  %1902 = vset.pattern.permute.xlu0 3
  %1903 = vperm.xlu0 %1902, %v1748
  %v1904 = vpop.permute.xlu0 %1903
  %1906 = vset.pattern.permute.xlu0 3
  %1907 = vperm.xlu0 %1906, %v1749
  %v1908 = vpop.permute.xlu0 %1907
  %1910 = vset.pattern.permute.xlu0 3
  %1911 = vperm.xlu0 %1910, %v1750
  %v1912 = vpop.permute.xlu0 %1911
  %v1914 = vperm.slane %v1752, 1
  %v1915 = vsub.f32 %v1852, %v1914
  %v1916 = vsub.f32 %v1856, %v1914
  %v1917 = vsub.f32 %v1860, %v1914
  %v1918 = vsub.f32 %v1864, %v1914
  %v1919 = vsub.f32 %v1868, %v1914
  %v1920 = vsub.f32 %v1872, %v1914
  %v1921 = vsub.f32 %v1876, %v1914
  %v1922 = vsub.f32 %v1880, %v1914
  %v1923 = vsub.f32 %v1884, %v1914
  %v1924 = vsub.f32 %v1888, %v1914
  %v1925 = vsub.f32 %v1892, %v1914
  %v1926 = vsub.f32 %v1896, %v1914
  %v1927 = vsub.f32 %v1900, %v1914
  %v1928 = vsub.f32 %v1904, %v1914
  %v1929 = vsub.f32 %v1908, %v1914
  %v1930 = vsub.f32 %v1912, %v1914
  %v1931 = vmul.f32 %v1834, %v1834
  %v1932 = vmul.f32 %v1835, %v1835
  %v1933 = vmul.f32 %v1836, %v1836
  %v1934 = vmul.f32 %v1837, %v1837
  %v1935 = vmul.f32 %v1838, %v1838
  %v1936 = vmul.f32 %v1839, %v1839
  %v1937 = vmul.f32 %v1840, %v1840
  %v1938 = vmul.f32 %v1841, %v1841
  %v1939 = vmul.f32 %v1842, %v1842
  %v1940 = vmul.f32 %v1843, %v1843
  %v1941 = vmul.f32 %v1844, %v1844
  %v1942 = vmul.f32 %v1845, %v1845
  %v1943 = vmul.f32 %v1846, %v1846
  %v1944 = vmul.f32 %v1847, %v1847
  %v1945 = vmul.f32 %v1848, %v1848
  %v1946 = vmul.f32 %v1849, %v1849
  %v1947 = vmul.f32 %v1915, %v1915
  %v1948 = vmul.f32 %v1916, %v1916
  %v1949 = vmul.f32 %v1917, %v1917
  %v1950 = vmul.f32 %v1918, %v1918
  %v1951 = vmul.f32 %v1919, %v1919
  %v1952 = vmul.f32 %v1920, %v1920
  %v1953 = vmul.f32 %v1921, %v1921
  %v1954 = vmul.f32 %v1922, %v1922
  %v1955 = vmul.f32 %v1923, %v1923
  %v1956 = vmul.f32 %v1924, %v1924
  %v1957 = vmul.f32 %v1925, %v1925
  %v1958 = vmul.f32 %v1926, %v1926
  %v1959 = vmul.f32 %v1927, %v1927
  %v1960 = vmul.f32 %v1928, %v1928
  %v1961 = vmul.f32 %v1929, %v1929
  %v1962 = vmul.f32 %v1930, %v1930
  %v1963 = vadd.f32 %v1931, %v1947
  %v1964 = vadd.f32 %v1932, %v1948
  %v1965 = vadd.f32 %v1933, %v1949
  %v1966 = vadd.f32 %v1934, %v1950
  %v1967 = vadd.f32 %v1935, %v1951
  %v1968 = vadd.f32 %v1936, %v1952
  %v1969 = vadd.f32 %v1937, %v1953
  %v1970 = vadd.f32 %v1938, %v1954
  %v1971 = vadd.f32 %v1939, %v1955
  %v1972 = vadd.f32 %v1940, %v1956
  %v1973 = vadd.f32 %v1941, %v1957
  %v1974 = vadd.f32 %v1942, %v1958
  %v1975 = vadd.f32 %v1943, %v1959
  %v1976 = vadd.f32 %v1944, %v1960
  %v1977 = vadd.f32 %v1945, %v1961
  %v1978 = vadd.f32 %v1946, %v1962
  %1979 = vset.pattern.permute.xlu0 0
  %1980 = vperm.xlu0 %1979, %v1735
  %v1981 = vpop.permute.xlu0 %1980
  %1983 = vset.pattern.permute.xlu0 0
  %1984 = vperm.xlu0 %1983, %v1736
  %v1985 = vpop.permute.xlu0 %1984
  %1987 = vset.pattern.permute.xlu0 0
  %1988 = vperm.xlu0 %1987, %v1737
  %v1989 = vpop.permute.xlu0 %1988
  %1991 = vset.pattern.permute.xlu0 0
  %1992 = vperm.xlu0 %1991, %v1738
  %v1993 = vpop.permute.xlu0 %1992
  %1995 = vset.pattern.permute.xlu0 0
  %1996 = vperm.xlu0 %1995, %v1739
  %v1997 = vpop.permute.xlu0 %1996
  %1999 = vset.pattern.permute.xlu0 0
  %2000 = vperm.xlu0 %1999, %v1740
  %v2001 = vpop.permute.xlu0 %2000
  %2003 = vset.pattern.permute.xlu0 0
  %2004 = vperm.xlu0 %2003, %v1741
  %v2005 = vpop.permute.xlu0 %2004
  %2007 = vset.pattern.permute.xlu0 0
  %2008 = vperm.xlu0 %2007, %v1742
  %v2009 = vpop.permute.xlu0 %2008
  %2011 = vset.pattern.permute.xlu0 0
  %2012 = vperm.xlu0 %2011, %v1743
  %v2013 = vpop.permute.xlu0 %2012
  %2015 = vset.pattern.permute.xlu0 0
  %2016 = vperm.xlu0 %2015, %v1744
  %v2017 = vpop.permute.xlu0 %2016
  %2019 = vset.pattern.permute.xlu0 0
  %2020 = vperm.xlu0 %2019, %v1745
  %v2021 = vpop.permute.xlu0 %2020
  %2023 = vset.pattern.permute.xlu0 0
  %2024 = vperm.xlu0 %2023, %v1746
  %v2025 = vpop.permute.xlu0 %2024
  %2027 = vset.pattern.permute.xlu0 0
  %2028 = vperm.xlu0 %2027, %v1747
  %v2029 = vpop.permute.xlu0 %2028
  %2031 = vset.pattern.permute.xlu0 0
  %2032 = vperm.xlu0 %2031, %v1748
  %v2033 = vpop.permute.xlu0 %2032
  %2035 = vset.pattern.permute.xlu0 0
  %2036 = vperm.xlu0 %2035, %v1749
  %v2037 = vpop.permute.xlu0 %2036
  %2039 = vset.pattern.permute.xlu0 0
  %2040 = vperm.xlu0 %2039, %v1750
  %v2041 = vpop.permute.xlu0 %2040
  %v2043 = vperm.slane %v1752, 2
  %v2044 = vsub.f32 %v1981, %v2043
  %v2045 = vsub.f32 %v1985, %v2043
  %v2046 = vsub.f32 %v1989, %v2043
  %v2047 = vsub.f32 %v1993, %v2043
  %v2048 = vsub.f32 %v1997, %v2043
  %v2049 = vsub.f32 %v2001, %v2043
  %v2050 = vsub.f32 %v2005, %v2043
  %v2051 = vsub.f32 %v2009, %v2043
  %v2052 = vsub.f32 %v2013, %v2043
  %v2053 = vsub.f32 %v2017, %v2043
  %v2054 = vsub.f32 %v2021, %v2043
  %v2055 = vsub.f32 %v2025, %v2043
  %v2056 = vsub.f32 %v2029, %v2043
  %v2057 = vsub.f32 %v2033, %v2043
  %v2058 = vsub.f32 %v2037, %v2043
  %v2059 = vsub.f32 %v2041, %v2043
  %2060 = vset.pattern.permute.xlu0 1
  %2061 = vperm.xlu0 %2060, %v1735
  %v2062 = vpop.permute.xlu0 %2061
  %2064 = vset.pattern.permute.xlu0 1
  %2065 = vperm.xlu0 %2064, %v1736
  %v2066 = vpop.permute.xlu0 %2065
  %2068 = vset.pattern.permute.xlu0 1
  %2069 = vperm.xlu0 %2068, %v1737
  %v2070 = vpop.permute.xlu0 %2069
  %2072 = vset.pattern.permute.xlu0 1
  %2073 = vperm.xlu0 %2072, %v1738
  %v2074 = vpop.permute.xlu0 %2073
  %2076 = vset.pattern.permute.xlu0 1
  %2077 = vperm.xlu0 %2076, %v1739
  %v2078 = vpop.permute.xlu0 %2077
  %2080 = vset.pattern.permute.xlu0 1
  %2081 = vperm.xlu0 %2080, %v1740
  %v2082 = vpop.permute.xlu0 %2081
  %2084 = vset.pattern.permute.xlu0 1
  %2085 = vperm.xlu0 %2084, %v1741
  %v2086 = vpop.permute.xlu0 %2085
  %2088 = vset.pattern.permute.xlu0 1
  %2089 = vperm.xlu0 %2088, %v1742
  %v2090 = vpop.permute.xlu0 %2089
  %2092 = vset.pattern.permute.xlu0 1
  %2093 = vperm.xlu0 %2092, %v1743
  %v2094 = vpop.permute.xlu0 %2093
  %2096 = vset.pattern.permute.xlu0 1
  %2097 = vperm.xlu0 %2096, %v1744
  %v2098 = vpop.permute.xlu0 %2097
  %2100 = vset.pattern.permute.xlu0 1
  %2101 = vperm.xlu0 %2100, %v1745
  %v2102 = vpop.permute.xlu0 %2101
  %2104 = vset.pattern.permute.xlu0 1
  %2105 = vperm.xlu0 %2104, %v1746
  %v2106 = vpop.permute.xlu0 %2105
  %2108 = vset.pattern.permute.xlu0 1
  %2109 = vperm.xlu0 %2108, %v1747
  %v2110 = vpop.permute.xlu0 %2109
  %2112 = vset.pattern.permute.xlu0 1
  %2113 = vperm.xlu0 %2112, %v1748
  %v2114 = vpop.permute.xlu0 %2113
  %2116 = vset.pattern.permute.xlu0 1
  %2117 = vperm.xlu0 %2116, %v1749
  %v2118 = vpop.permute.xlu0 %2117
  %2120 = vset.pattern.permute.xlu0 1
  %2121 = vperm.xlu0 %2120, %v1750
  %v2122 = vpop.permute.xlu0 %2121
  %v2124 = vperm.slane %v1752, 3
  %v2125 = vsub.f32 %v2062, %v2124
  %v2126 = vsub.f32 %v2066, %v2124
  %v2127 = vsub.f32 %v2070, %v2124
  %v2128 = vsub.f32 %v2074, %v2124
  %v2129 = vsub.f32 %v2078, %v2124
  %v2130 = vsub.f32 %v2082, %v2124
  %v2131 = vsub.f32 %v2086, %v2124
  %v2132 = vsub.f32 %v2090, %v2124
  %v2133 = vsub.f32 %v2094, %v2124
  %v2134 = vsub.f32 %v2098, %v2124
  %v2135 = vsub.f32 %v2102, %v2124
  %v2136 = vsub.f32 %v2106, %v2124
  %v2137 = vsub.f32 %v2110, %v2124
  %v2138 = vsub.f32 %v2114, %v2124
  %v2139 = vsub.f32 %v2118, %v2124
  %v2140 = vsub.f32 %v2122, %v2124
  %v2141 = vmul.f32 %v2044, %v2044
  %v2142 = vmul.f32 %v2045, %v2045
  %v2143 = vmul.f32 %v2046, %v2046
  %v2144 = vmul.f32 %v2047, %v2047
  %v2145 = vmul.f32 %v2048, %v2048
  %v2146 = vmul.f32 %v2049, %v2049
  %v2147 = vmul.f32 %v2050, %v2050
  %v2148 = vmul.f32 %v2051, %v2051
  %v2149 = vmul.f32 %v2052, %v2052
  %v2150 = vmul.f32 %v2053, %v2053
  %v2151 = vmul.f32 %v2054, %v2054
  %v2152 = vmul.f32 %v2055, %v2055
  %v2153 = vmul.f32 %v2056, %v2056
  %v2154 = vmul.f32 %v2057, %v2057
  %v2155 = vmul.f32 %v2058, %v2058
  %v2156 = vmul.f32 %v2059, %v2059
  %v2157 = vmul.f32 %v2125, %v2125
  %v2158 = vmul.f32 %v2126, %v2126
  %v2159 = vmul.f32 %v2127, %v2127
  %v2160 = vmul.f32 %v2128, %v2128
  %v2161 = vmul.f32 %v2129, %v2129
  %v2162 = vmul.f32 %v2130, %v2130
  %v2163 = vmul.f32 %v2131, %v2131
  %v2164 = vmul.f32 %v2132, %v2132
  %v2165 = vmul.f32 %v2133, %v2133
  %v2166 = vmul.f32 %v2134, %v2134
  %v2167 = vmul.f32 %v2135, %v2135
  %v2168 = vmul.f32 %v2136, %v2136
  %v2169 = vmul.f32 %v2137, %v2137
  %v2170 = vmul.f32 %v2138, %v2138
  %v2171 = vmul.f32 %v2139, %v2139
  %v2172 = vmul.f32 %v2140, %v2140
  %v2173 = vadd.f32 %v2141, %v2157
  %v2174 = vadd.f32 %v2142, %v2158
  %v2175 = vadd.f32 %v2143, %v2159
  %v2176 = vadd.f32 %v2144, %v2160
  %v2177 = vadd.f32 %v2145, %v2161
  %v2178 = vadd.f32 %v2146, %v2162
  %v2179 = vadd.f32 %v2147, %v2163
  %v2180 = vadd.f32 %v2148, %v2164
  %v2181 = vadd.f32 %v2149, %v2165
  %v2182 = vadd.f32 %v2150, %v2166
  %v2183 = vadd.f32 %v2151, %v2167
  %v2184 = vadd.f32 %v2152, %v2168
  %v2185 = vadd.f32 %v2153, %v2169
  %v2186 = vadd.f32 %v2154, %v2170
  %v2187 = vadd.f32 %v2155, %v2171
  %v2188 = vadd.f32 %v2156, %v2172
  %2189 = vmin.xlane.f32.xlu0 %v1963
  %v2190 = vpop.xlane.xlu0 %2189
  %2191 = vmin.xlane.f32.xlu0 %v1964
  %v2192 = vpop.xlane.xlu0 %2191
  %2193 = vmin.xlane.f32.xlu0 %v1965
  %v2194 = vpop.xlane.xlu0 %2193
  %2195 = vmin.xlane.f32.xlu0 %v1966
  %v2196 = vpop.xlane.xlu0 %2195
  %2197 = vmin.xlane.f32.xlu0 %v1967
  %v2198 = vpop.xlane.xlu0 %2197
  %2199 = vmin.xlane.f32.xlu0 %v1968
  %v2200 = vpop.xlane.xlu0 %2199
  %2201 = vmin.xlane.f32.xlu0 %v1969
  %v2202 = vpop.xlane.xlu0 %2201
  %2203 = vmin.xlane.f32.xlu0 %v1970
  %v2204 = vpop.xlane.xlu0 %2203
  %2205 = vmin.xlane.f32.xlu0 %v1971
  %v2206 = vpop.xlane.xlu0 %2205
  %2207 = vmin.xlane.f32.xlu0 %v1972
  %v2208 = vpop.xlane.xlu0 %2207
  %2209 = vmin.xlane.f32.xlu0 %v1973
  %v2210 = vpop.xlane.xlu0 %2209
  %2211 = vmin.xlane.f32.xlu0 %v1974
  %v2212 = vpop.xlane.xlu0 %2211
  %2213 = vmin.xlane.f32.xlu0 %v1975
  %v2214 = vpop.xlane.xlu0 %2213
  %2215 = vmin.xlane.f32.xlu0 %v1976
  %v2216 = vpop.xlane.xlu0 %2215
  %2217 = vmin.xlane.f32.xlu0 %v1977
  %v2218 = vpop.xlane.xlu0 %2217
  %2219 = vmin.xlane.f32.xlu0 %v1978
  %v2220 = vpop.xlane.xlu0 %2219
  %v2221 = vmin.f32 %v2173, %v2177
  %v2222 = vmin.f32 %v2174, %v2178
  %v2223 = vmin.f32 %v2175, %v2179
  %v2224 = vmin.f32 %v2176, %v2180
  %v2225 = vmin.f32 %v2221, %v2181
  %v2226 = vmin.f32 %v2222, %v2182
  %v2227 = vmin.f32 %v2223, %v2183
  %v2228 = vmin.f32 %v2224, %v2184
  %v2229 = vmin.f32 %v2225, %v2185
  %v2230 = vmin.f32 %v2226, %v2186
  %v2231 = vmin.f32 %v2227, %v2187
  %v2232 = vmin.f32 %v2228, %v2188
  %v2233 = vmin.f32 %v2229, %v2230
  %v2234 = vmin.f32 %v2231, %v2232
  %v2235 = vmin.f32 %v2233, %v2234
  %v2236 = vrot.slane %v2235, 4
  %v2237 = vmin.f32 %v2235, %v2236
  %v2238 = vrot.slane %v2237, 2
  %v2239 = vmin.f32 %v2237, %v2238
  %v2240 = vrot.slane %v2239, 1
  %v2241 = vmin.f32 %v2239, %v2240
  %vm2242 = vcmp.eq.f32.partialorder %v1963, %v2190
  %vm2243 = vcmp.eq.f32.partialorder %v1964, %v2192
  %vm2244 = vcmp.eq.f32.partialorder %v1965, %v2194
  %vm2245 = vcmp.eq.f32.partialorder %v1966, %v2196
  %vm2246 = vcmp.eq.f32.partialorder %v1967, %v2198
  %vm2247 = vcmp.eq.f32.partialorder %v1968, %v2200
  %vm2248 = vcmp.eq.f32.partialorder %v1969, %v2202
  %vm2249 = vcmp.eq.f32.partialorder %v1970, %v2204
  %vm2250 = vcmp.eq.f32.partialorder %v1971, %v2206
  %vm2251 = vcmp.eq.f32.partialorder %v1972, %v2208
  %vm2252 = vcmp.eq.f32.partialorder %v1973, %v2210
  %vm2253 = vcmp.eq.f32.partialorder %v1974, %v2212
  %vm2254 = vcmp.eq.f32.partialorder %v1975, %v2214
  %vm2255 = vcmp.eq.f32.partialorder %v1976, %v2216
  %vm2256 = vcmp.eq.f32.partialorder %v1977, %v2218
  %vm2257 = vcmp.eq.f32.partialorder %v1978, %v2220
  %vm2258 = vcmp.eq.f32.partialorder %v2173, %v2241
  %vm2259 = vcmp.eq.f32.partialorder %v2174, %v2241
  %vm2260 = vcmp.eq.f32.partialorder %v2175, %v2241
  %vm2261 = vcmp.eq.f32.partialorder %v2176, %v2241
  %vm2262 = vcmp.eq.f32.partialorder %v2177, %v2241
  %vm2263 = vcmp.eq.f32.partialorder %v2178, %v2241
  %vm2264 = vcmp.eq.f32.partialorder %v2179, %v2241
  %vm2265 = vcmp.eq.f32.partialorder %v2180, %v2241
  %vm2266 = vcmp.eq.f32.partialorder %v2181, %v2241
  %vm2267 = vcmp.eq.f32.partialorder %v2182, %v2241
  %vm2268 = vcmp.eq.f32.partialorder %v2183, %v2241
  %vm2269 = vcmp.eq.f32.partialorder %v2184, %v2241
  %vm2270 = vcmp.eq.f32.partialorder %v2185, %v2241
  %vm2271 = vcmp.eq.f32.partialorder %v2186, %v2241
  %vm2272 = vcmp.eq.f32.partialorder %v2187, %v2241
  %vm2273 = vcmp.eq.f32.partialorder %v2188, %v2241
  %vm2274 = vmand %vm2242, %vm2258
  %vm2275 = vmand %vm2243, %vm2259
  %vm2276 = vmand %vm2244, %vm2260
  %vm2277 = vmand %vm2245, %vm2261
  %vm2278 = vmand %vm2246, %vm2262
  %vm2279 = vmand %vm2247, %vm2263
  %vm2280 = vmand %vm2248, %vm2264
  %vm2281 = vmand %vm2249, %vm2265
  %vm2282 = vmand %vm2250, %vm2266
  %vm2283 = vmand %vm2251, %vm2267
  %vm2284 = vmand %vm2252, %vm2268
  %vm2285 = vmand %vm2253, %vm2269
  %vm2286 = vmand %vm2254, %vm2270
  %vm2287 = vmand %vm2255, %vm2271
  %vm2288 = vmand %vm2256, %vm2272
  %vm2289 = vmand %vm2257, %vm2273
  %vm2290 = vcmp.lt.f32.partialorder %v1963, 0.0001
  %vm2291 = vcmp.lt.f32.partialorder %v1964, 0.0001
  %vm2292 = vcmp.lt.f32.partialorder %v1965, 0.0001
  %vm2293 = vcmp.lt.f32.partialorder %v1966, 0.0001
  %vm2294 = vcmp.lt.f32.partialorder %v1967, 0.0001
  %vm2295 = vcmp.lt.f32.partialorder %v1968, 0.0001
  %vm2296 = vcmp.lt.f32.partialorder %v1969, 0.0001
  %vm2297 = vcmp.lt.f32.partialorder %v1970, 0.0001
  %vm2298 = vcmp.lt.f32.partialorder %v1971, 0.0001
  %vm2299 = vcmp.lt.f32.partialorder %v1972, 0.0001
  %vm2300 = vcmp.lt.f32.partialorder %v1973, 0.0001
  %vm2301 = vcmp.lt.f32.partialorder %v1974, 0.0001
  %vm2302 = vcmp.lt.f32.partialorder %v1975, 0.0001
  %vm2303 = vcmp.lt.f32.partialorder %v1976, 0.0001
  %vm2304 = vcmp.lt.f32.partialorder %v1977, 0.0001
  %vm2305 = vcmp.lt.f32.partialorder %v1978, 0.0001
  %vm2306 = vmand %vm2274, %vm2290
  %vm2307 = vmand %vm2275, %vm2291
  %vm2308 = vmand %vm2276, %vm2292
  %vm2309 = vmand %vm2277, %vm2293
  %vm2310 = vmand %vm2278, %vm2294
  %vm2311 = vmand %vm2279, %vm2295
  %vm2312 = vmand %vm2280, %vm2296
  %vm2313 = vmand %vm2281, %vm2297
  %vm2314 = vmand %vm2282, %vm2298
  %vm2315 = vmand %vm2283, %vm2299
  %vm2316 = vmand %vm2284, %vm2300
  %vm2317 = vmand %vm2285, %vm2301
  %vm2318 = vmand %vm2286, %vm2302
  %vm2319 = vmand %vm2287, %vm2303
  %vm2320 = vmand %vm2288, %vm2304
  %vm2321 = vmand %vm2289, %vm2305
  %vm2322 = vcmp.lt.f32.partialorder %v2173, 0.0001
  %vm2323 = vcmp.lt.f32.partialorder %v2174, 0.0001
  %vm2324 = vcmp.lt.f32.partialorder %v2175, 0.0001
  %vm2325 = vcmp.lt.f32.partialorder %v2176, 0.0001
  %vm2326 = vcmp.lt.f32.partialorder %v2177, 0.0001
  %vm2327 = vcmp.lt.f32.partialorder %v2178, 0.0001
  %vm2328 = vcmp.lt.f32.partialorder %v2179, 0.0001
  %vm2329 = vcmp.lt.f32.partialorder %v2180, 0.0001
  %vm2330 = vcmp.lt.f32.partialorder %v2181, 0.0001
  %vm2331 = vcmp.lt.f32.partialorder %v2182, 0.0001
  %vm2332 = vcmp.lt.f32.partialorder %v2183, 0.0001
  %vm2333 = vcmp.lt.f32.partialorder %v2184, 0.0001
  %vm2334 = vcmp.lt.f32.partialorder %v2185, 0.0001
  %vm2335 = vcmp.lt.f32.partialorder %v2186, 0.0001
  %vm2336 = vcmp.lt.f32.partialorder %v2187, 0.0001
  %vm2337 = vcmp.lt.f32.partialorder %v2188, 0.0001
  %vm2338 = vmand %vm2306, %vm2322
  %vm2339 = vmand %vm2307, %vm2323
  %vm2340 = vmand %vm2308, %vm2324
  %vm2341 = vmand %vm2309, %vm2325
  %vm2342 = vmand %vm2310, %vm2326
  %vm2343 = vmand %vm2311, %vm2327
  %vm2344 = vmand %vm2312, %vm2328
  %vm2345 = vmand %vm2313, %vm2329
  %vm2346 = vmand %vm2314, %vm2330
  %vm2347 = vmand %vm2315, %vm2331
  %vm2348 = vmand %vm2316, %vm2332
  %vm2349 = vmand %vm2317, %vm2333
  %vm2350 = vmand %vm2318, %vm2334
  %vm2351 = vmand %vm2319, %vm2335
  %vm2352 = vmand %vm2320, %vm2336
  %vm2353 = vmand %vm2321, %vm2337
  %v2354 = vsel %vm2338, 1, 0
  %v2355 = vsel %vm2339, 1, 0
  %v2356 = vsel %vm2340, 1, 0
  %v2357 = vsel %vm2341, 1, 0
  %v2358 = vsel %vm2342, 1, 0
  %v2359 = vsel %vm2343, 1, 0
  %v2360 = vsel %vm2344, 1, 0
  %v2361 = vsel %vm2345, 1, 0
  %v2362 = vsel %vm2346, 1, 0
  %v2363 = vsel %vm2347, 1, 0
  %v2364 = vsel %vm2348, 1, 0
  %v2365 = vsel %vm2349, 1, 0
  %v2366 = vsel %vm2350, 1, 0
  %v2367 = vsel %vm2351, 1, 0
  %v2368 = vsel %vm2352, 1, 0
  %v2369 = vsel %vm2353, 1, 0
  %v2370 = vcvt.s32.f32 %v2354
  %v2371 = vcvt.s32.f32 %v2355
  %v2372 = vcvt.s32.f32 %v2356
  %v2373 = vcvt.s32.f32 %v2357
  %v2374 = vcvt.s32.f32 %v2358
  %v2375 = vcvt.s32.f32 %v2359
  %v2376 = vcvt.s32.f32 %v2360
  %v2377 = vcvt.s32.f32 %v2361
  %v2378 = vcvt.s32.f32 %v2362
  %v2379 = vcvt.s32.f32 %v2363
  %v2380 = vcvt.s32.f32 %v2364
  %v2381 = vcvt.s32.f32 %v2365
  %v2382 = vcvt.s32.f32 %v2366
  %v2383 = vcvt.s32.f32 %v2367
  %v2384 = vcvt.s32.f32 %v2368
  %v2385 = vcvt.s32.f32 %v2369
  %s2386 = scalar_lea.vmem %s2, 64
  %v2387 = vld [vmem:[%s2386] sm:$0xf]
  %v2388 = vld [vmem:[%s2386 + $0x4] sm:$0xf]
  %v2389 = vld [vmem:[%s2386 + $0x8] sm:$0xf]
  %v2390 = vld [vmem:[%s2386 + $0xc] sm:$0xf]
  %v2391 = vld [vmem:[%s2386 + $0x10] sm:$0xf]
  %v2392 = vld [vmem:[%s2386 + $0x14] sm:$0xf]
  %v2393 = vld [vmem:[%s2386 + $0x18] sm:$0xf]
  %v2394 = vld [vmem:[%s2386 + $0x1c] sm:$0xf]
  %v2395 = vld [vmem:[%s2386 + $0x20] sm:$0xf]
  %v2396 = vld [vmem:[%s2386 + $0x24] sm:$0xf]
  %v2397 = vld [vmem:[%s2386 + $0x28] sm:$0xf]
  %v2398 = vld [vmem:[%s2386 + $0x2c] sm:$0xf]
  %v2399 = vld [vmem:[%s2386 + $0x30] sm:$0xf]
  %v2400 = vld [vmem:[%s2386 + $0x34] sm:$0xf]
  %v2401 = vld [vmem:[%s2386 + $0x38] sm:$0xf]
  %v2402 = vld [vmem:[%s2386 + $0x3c] sm:$0xf]
  %v2403 = vunpack.c.l.bf16 %v2387
  %v2404 = vunpack.c.l.bf16 %v2388
  %v2405 = vunpack.c.l.bf16 %v2389
  %v2406 = vunpack.c.l.bf16 %v2390
  %v2407 = vunpack.c.l.bf16 %v2391
  %v2408 = vunpack.c.l.bf16 %v2392
  %v2409 = vunpack.c.l.bf16 %v2393
  %v2410 = vunpack.c.l.bf16 %v2394
  %v2411 = vunpack.c.l.bf16 %v2395
  %v2412 = vunpack.c.l.bf16 %v2396
  %v2413 = vunpack.c.l.bf16 %v2397
  %v2414 = vunpack.c.l.bf16 %v2398
  %v2415 = vunpack.c.l.bf16 %v2399
  %v2416 = vunpack.c.l.bf16 %v2400
  %v2417 = vunpack.c.l.bf16 %v2401
  %v2418 = vunpack.c.l.bf16 %v2402
  %s2419 = scalar_lea.vmem %s3, 64
  %v2420 = vld [vmem:[%s2419] sm:$0xf]
  %v2421 = vld [vmem:[%s2419 + $0x4] sm:$0xf]
  %v2422 = vld [vmem:[%s2419 + $0x8] sm:$0xf]
  %v2423 = vld [vmem:[%s2419 + $0xc] sm:$0xf]
  %v2424 = vld [vmem:[%s2419 + $0x10] sm:$0xf]
  %v2425 = vld [vmem:[%s2419 + $0x14] sm:$0xf]
  %v2426 = vld [vmem:[%s2419 + $0x18] sm:$0xf]
  %v2427 = vld [vmem:[%s2419 + $0x1c] sm:$0xf]
  %v2428 = vld [vmem:[%s2419 + $0x20] sm:$0xf]
  %v2429 = vld [vmem:[%s2419 + $0x24] sm:$0xf]
  %v2430 = vld [vmem:[%s2419 + $0x28] sm:$0xf]
  %v2431 = vld [vmem:[%s2419 + $0x2c] sm:$0xf]
  %v2432 = vld [vmem:[%s2419 + $0x30] sm:$0xf]
  %v2433 = vld [vmem:[%s2419 + $0x34] sm:$0xf]
  %v2434 = vld [vmem:[%s2419 + $0x38] sm:$0xf]
  %v2435 = vld [vmem:[%s2419 + $0x3c] sm:$0xf]
  %v2436 = vunpack.c.l.bf16 %v2420
  %v2437 = vunpack.c.l.bf16 %v2421
  %v2438 = vunpack.c.l.bf16 %v2422
  %v2439 = vunpack.c.l.bf16 %v2423
  %v2440 = vunpack.c.l.bf16 %v2424
  %v2441 = vunpack.c.l.bf16 %v2425
  %v2442 = vunpack.c.l.bf16 %v2426
  %v2443 = vunpack.c.l.bf16 %v2427
  %v2444 = vunpack.c.l.bf16 %v2428
  %v2445 = vunpack.c.l.bf16 %v2429
  %v2446 = vunpack.c.l.bf16 %v2430
  %v2447 = vunpack.c.l.bf16 %v2431
  %v2448 = vunpack.c.l.bf16 %v2432
  %v2449 = vunpack.c.l.bf16 %v2433
  %v2450 = vunpack.c.l.bf16 %v2434
  %v2451 = vunpack.c.l.bf16 %v2435
  %v2452 = vmul.f32 %v2403, %v2403
  %v2453 = vmul.f32 %v2404, %v2404
  %v2454 = vmul.f32 %v2405, %v2405
  %v2455 = vmul.f32 %v2406, %v2406
  %v2456 = vmul.f32 %v2407, %v2407
  %v2457 = vmul.f32 %v2408, %v2408
  %v2458 = vmul.f32 %v2409, %v2409
  %v2459 = vmul.f32 %v2410, %v2410
  %v2460 = vmul.f32 %v2411, %v2411
  %v2461 = vmul.f32 %v2412, %v2412
  %v2462 = vmul.f32 %v2413, %v2413
  %v2463 = vmul.f32 %v2414, %v2414
  %v2464 = vmul.f32 %v2415, %v2415
  %v2465 = vmul.f32 %v2416, %v2416
  %v2466 = vmul.f32 %v2417, %v2417
  %v2467 = vmul.f32 %v2418, %v2418
  %v2468 = vsel %vm747, %v2452, 0.0
  %2469 = vadd.xlane.f32.xlu0 %v2468
  %v2470 = vpop.xlane.xlu0 %2469
  %v2471 = vsel %vm747, %v2453, 0.0
  %2472 = vadd.xlane.f32.xlu0 %v2471
  %v2473 = vpop.xlane.xlu0 %2472
  %v2474 = vsel %vm747, %v2454, 0.0
  %2475 = vadd.xlane.f32.xlu0 %v2474
  %v2476 = vpop.xlane.xlu0 %2475
  %v2477 = vsel %vm747, %v2455, 0.0
  %2478 = vadd.xlane.f32.xlu0 %v2477
  %v2479 = vpop.xlane.xlu0 %2478
  %v2480 = vsel %vm747, %v2456, 0.0
  %2481 = vadd.xlane.f32.xlu0 %v2480
  %v2482 = vpop.xlane.xlu0 %2481
  %v2483 = vsel %vm747, %v2457, 0.0
  %2484 = vadd.xlane.f32.xlu0 %v2483
  %v2485 = vpop.xlane.xlu0 %2484
  %v2486 = vsel %vm747, %v2458, 0.0
  %2487 = vadd.xlane.f32.xlu0 %v2486
  %v2488 = vpop.xlane.xlu0 %2487
  %v2489 = vsel %vm747, %v2459, 0.0
  %2490 = vadd.xlane.f32.xlu0 %v2489
  %v2491 = vpop.xlane.xlu0 %2490
  %v2492 = vsel %vm747, %v2460, 0.0
  %2493 = vadd.xlane.f32.xlu0 %v2492
  %v2494 = vpop.xlane.xlu0 %2493
  %v2495 = vsel %vm747, %v2461, 0.0
  %2496 = vadd.xlane.f32.xlu0 %v2495
  %v2497 = vpop.xlane.xlu0 %2496
  %v2498 = vsel %vm747, %v2462, 0.0
  %2499 = vadd.xlane.f32.xlu0 %v2498
  %v2500 = vpop.xlane.xlu0 %2499
  %v2501 = vsel %vm747, %v2463, 0.0
  %2502 = vadd.xlane.f32.xlu0 %v2501
  %v2503 = vpop.xlane.xlu0 %2502
  %v2504 = vsel %vm747, %v2464, 0.0
  %2505 = vadd.xlane.f32.xlu0 %v2504
  %v2506 = vpop.xlane.xlu0 %2505
  %v2507 = vsel %vm747, %v2465, 0.0
  %2508 = vadd.xlane.f32.xlu0 %v2507
  %v2509 = vpop.xlane.xlu0 %2508
  %v2510 = vsel %vm747, %v2466, 0.0
  %2511 = vadd.xlane.f32.xlu0 %v2510
  %v2512 = vpop.xlane.xlu0 %2511
  %v2513 = vsel %vm747, %v2467, 0.0
  %2514 = vadd.xlane.f32.xlu0 %v2513
  %v2515 = vpop.xlane.xlu0 %2514
  %v2516 = vadd.f32 %v2470, 1e-12
  %v2517 = vadd.f32 %v2473, 1e-12
  %v2518 = vadd.f32 %v2476, 1e-12
  %v2519 = vadd.f32 %v2479, 1e-12
  %v2520 = vadd.f32 %v2482, 1e-12
  %v2521 = vadd.f32 %v2485, 1e-12
  %v2522 = vadd.f32 %v2488, 1e-12
  %v2523 = vadd.f32 %v2491, 1e-12
  %v2524 = vadd.f32 %v2494, 1e-12
  %v2525 = vadd.f32 %v2497, 1e-12
  %v2526 = vadd.f32 %v2500, 1e-12
  %v2527 = vadd.f32 %v2503, 1e-12
  %v2528 = vadd.f32 %v2506, 1e-12
  %v2529 = vadd.f32 %v2509, 1e-12
  %v2530 = vadd.f32 %v2512, 1e-12
  %v2531 = vadd.f32 %v2515, 1e-12
  %v2532 = vrsqrt.pop %v2516
  %v2533 = vmul.f32 %v2532, %v2516
  %v2534 = vmul.f32 %v2533, %v2532
  %v2535 = vmul.f32 0.5, %v2534
  %v2536 = vsub.f32 1.5, %v2535
  %v2537 = vmul.f32 %v2532, %v2536
  %vm2538 = vweird.f32 %v2516
  %vm2539 = vweird.f32 %v2532
  %vm2540 = vmor %vm2538, %vm2539
  %v2541 = vsel %vm2540, %v2532, %v2537
  %v2542 = vrsqrt.pop %v2517
  %v2543 = vmul.f32 %v2542, %v2517
  %v2544 = vmul.f32 %v2543, %v2542
  %v2545 = vmul.f32 0.5, %v2544
  %v2546 = vsub.f32 1.5, %v2545
  %v2547 = vmul.f32 %v2542, %v2546
  %vm2548 = vweird.f32 %v2517
  %vm2549 = vweird.f32 %v2542
  %vm2550 = vmor %vm2548, %vm2549
  %v2551 = vsel %vm2550, %v2542, %v2547
  %v2552 = vrsqrt.pop %v2518
  %v2553 = vmul.f32 %v2552, %v2518
  %v2554 = vmul.f32 %v2553, %v2552
  %v2555 = vmul.f32 0.5, %v2554
  %v2556 = vsub.f32 1.5, %v2555
  %v2557 = vmul.f32 %v2552, %v2556
  %vm2558 = vweird.f32 %v2518
  %vm2559 = vweird.f32 %v2552
  %vm2560 = vmor %vm2558, %vm2559
  %v2561 = vsel %vm2560, %v2552, %v2557
  %v2562 = vrsqrt.pop %v2519
  %v2563 = vmul.f32 %v2562, %v2519
  %v2564 = vmul.f32 %v2563, %v2562
  %v2565 = vmul.f32 0.5, %v2564
  %v2566 = vsub.f32 1.5, %v2565
  %v2567 = vmul.f32 %v2562, %v2566
  %vm2568 = vweird.f32 %v2519
  %vm2569 = vweird.f32 %v2562
  %vm2570 = vmor %vm2568, %vm2569
  %v2571 = vsel %vm2570, %v2562, %v2567
  %v2572 = vrsqrt.pop %v2520
  %v2573 = vmul.f32 %v2572, %v2520
  %v2574 = vmul.f32 %v2573, %v2572
  %v2575 = vmul.f32 0.5, %v2574
  %v2576 = vsub.f32 1.5, %v2575
  %v2577 = vmul.f32 %v2572, %v2576
  %vm2578 = vweird.f32 %v2520
  %vm2579 = vweird.f32 %v2572
  %vm2580 = vmor %vm2578, %vm2579
  %v2581 = vsel %vm2580, %v2572, %v2577
  %v2582 = vrsqrt.pop %v2521
  %v2583 = vmul.f32 %v2582, %v2521
  %v2584 = vmul.f32 %v2583, %v2582
  %v2585 = vmul.f32 0.5, %v2584
  %v2586 = vsub.f32 1.5, %v2585
  %v2587 = vmul.f32 %v2582, %v2586
  %vm2588 = vweird.f32 %v2521
  %vm2589 = vweird.f32 %v2582
  %vm2590 = vmor %vm2588, %vm2589
  %v2591 = vsel %vm2590, %v2582, %v2587
  %v2592 = vrsqrt.pop %v2522
  %v2593 = vmul.f32 %v2592, %v2522
  %v2594 = vmul.f32 %v2593, %v2592
  %v2595 = vmul.f32 0.5, %v2594
  %v2596 = vsub.f32 1.5, %v2595
  %v2597 = vmul.f32 %v2592, %v2596
  %vm2598 = vweird.f32 %v2522
  %vm2599 = vweird.f32 %v2592
  %vm2600 = vmor %vm2598, %vm2599
  %v2601 = vsel %vm2600, %v2592, %v2597
  %v2602 = vrsqrt.pop %v2523
  %v2603 = vmul.f32 %v2602, %v2523
  %v2604 = vmul.f32 %v2603, %v2602
  %v2605 = vmul.f32 0.5, %v2604
  %v2606 = vsub.f32 1.5, %v2605
  %v2607 = vmul.f32 %v2602, %v2606
  %vm2608 = vweird.f32 %v2523
  %vm2609 = vweird.f32 %v2602
  %vm2610 = vmor %vm2608, %vm2609
  %v2611 = vsel %vm2610, %v2602, %v2607
  %v2612 = vrsqrt.pop %v2524
  %v2613 = vmul.f32 %v2612, %v2524
  %v2614 = vmul.f32 %v2613, %v2612
  %v2615 = vmul.f32 0.5, %v2614
  %v2616 = vsub.f32 1.5, %v2615
  %v2617 = vmul.f32 %v2612, %v2616
  %vm2618 = vweird.f32 %v2524
  %vm2619 = vweird.f32 %v2612
  %vm2620 = vmor %vm2618, %vm2619
  %v2621 = vsel %vm2620, %v2612, %v2617
  %v2622 = vrsqrt.pop %v2525
  %v2623 = vmul.f32 %v2622, %v2525
  %v2624 = vmul.f32 %v2623, %v2622
  %v2625 = vmul.f32 0.5, %v2624
  %v2626 = vsub.f32 1.5, %v2625
  %v2627 = vmul.f32 %v2622, %v2626
  %vm2628 = vweird.f32 %v2525
  %vm2629 = vweird.f32 %v2622
  %vm2630 = vmor %vm2628, %vm2629
  %v2631 = vsel %vm2630, %v2622, %v2627
  %v2632 = vrsqrt.pop %v2526
  %v2633 = vmul.f32 %v2632, %v2526
  %v2634 = vmul.f32 %v2633, %v2632
  %v2635 = vmul.f32 0.5, %v2634
  %v2636 = vsub.f32 1.5, %v2635
  %v2637 = vmul.f32 %v2632, %v2636
  %vm2638 = vweird.f32 %v2526
  %vm2639 = vweird.f32 %v2632
  %vm2640 = vmor %vm2638, %vm2639
  %v2641 = vsel %vm2640, %v2632, %v2637
  %v2642 = vrsqrt.pop %v2527
  %v2643 = vmul.f32 %v2642, %v2527
  %v2644 = vmul.f32 %v2643, %v2642
  %v2645 = vmul.f32 0.5, %v2644
  %v2646 = vsub.f32 1.5, %v2645
  %v2647 = vmul.f32 %v2642, %v2646
  %vm2648 = vweird.f32 %v2527
  %vm2649 = vweird.f32 %v2642
  %vm2650 = vmor %vm2648, %vm2649
  %v2651 = vsel %vm2650, %v2642, %v2647
  %v2652 = vrsqrt.pop %v2528
  %v2653 = vmul.f32 %v2652, %v2528
  %v2654 = vmul.f32 %v2653, %v2652
  %v2655 = vmul.f32 0.5, %v2654
  %v2656 = vsub.f32 1.5, %v2655
  %v2657 = vmul.f32 %v2652, %v2656
  %vm2658 = vweird.f32 %v2528
  %vm2659 = vweird.f32 %v2652
  %vm2660 = vmor %vm2658, %vm2659
  %v2661 = vsel %vm2660, %v2652, %v2657
  %v2662 = vrsqrt.pop %v2529
  %v2663 = vmul.f32 %v2662, %v2529
  %v2664 = vmul.f32 %v2663, %v2662
  %v2665 = vmul.f32 0.5, %v2664
  %v2666 = vsub.f32 1.5, %v2665
  %v2667 = vmul.f32 %v2662, %v2666
  %vm2668 = vweird.f32 %v2529
  %vm2669 = vweird.f32 %v2662
  %vm2670 = vmor %vm2668, %vm2669
  %v2671 = vsel %vm2670, %v2662, %v2667
  %v2672 = vrsqrt.pop %v2530
  %v2673 = vmul.f32 %v2672, %v2530
  %v2674 = vmul.f32 %v2673, %v2672
  %v2675 = vmul.f32 0.5, %v2674
  %v2676 = vsub.f32 1.5, %v2675
  %v2677 = vmul.f32 %v2672, %v2676
  %vm2678 = vweird.f32 %v2530
  %vm2679 = vweird.f32 %v2672
  %vm2680 = vmor %vm2678, %vm2679
  %v2681 = vsel %vm2680, %v2672, %v2677
  %v2682 = vrsqrt.pop %v2531
  %v2683 = vmul.f32 %v2682, %v2531
  %v2684 = vmul.f32 %v2683, %v2682
  %v2685 = vmul.f32 0.5, %v2684
  %v2686 = vsub.f32 1.5, %v2685
  %v2687 = vmul.f32 %v2682, %v2686
  %vm2688 = vweird.f32 %v2531
  %vm2689 = vweird.f32 %v2682
  %vm2690 = vmor %vm2688, %vm2689
  %v2691 = vsel %vm2690, %v2682, %v2687
  %v2692 = vmul.f32 %v2541, 20.0
  %v2693 = vmul.f32 %v2551, 20.0
  %v2694 = vmul.f32 %v2561, 20.0
  %v2695 = vmul.f32 %v2571, 20.0
  %v2696 = vmul.f32 %v2581, 20.0
  %v2697 = vmul.f32 %v2591, 20.0
  %v2698 = vmul.f32 %v2601, 20.0
  %v2699 = vmul.f32 %v2611, 20.0
  %v2700 = vmul.f32 %v2621, 20.0
  %v2701 = vmul.f32 %v2631, 20.0
  %v2702 = vmul.f32 %v2641, 20.0
  %v2703 = vmul.f32 %v2651, 20.0
  %v2704 = vmul.f32 %v2661, 20.0
  %v2705 = vmul.f32 %v2671, 20.0
  %v2706 = vmul.f32 %v2681, 20.0
  %v2707 = vmul.f32 %v2691, 20.0
  %v2708 = vmul.f32 %v2436, %v2436
  %v2709 = vmul.f32 %v2437, %v2437
  %v2710 = vmul.f32 %v2438, %v2438
  %v2711 = vmul.f32 %v2439, %v2439
  %v2712 = vmul.f32 %v2440, %v2440
  %v2713 = vmul.f32 %v2441, %v2441
  %v2714 = vmul.f32 %v2442, %v2442
  %v2715 = vmul.f32 %v2443, %v2443
  %v2716 = vmul.f32 %v2444, %v2444
  %v2717 = vmul.f32 %v2445, %v2445
  %v2718 = vmul.f32 %v2446, %v2446
  %v2719 = vmul.f32 %v2447, %v2447
  %v2720 = vmul.f32 %v2448, %v2448
  %v2721 = vmul.f32 %v2449, %v2449
  %v2722 = vmul.f32 %v2450, %v2450
  %v2723 = vmul.f32 %v2451, %v2451
  %v2724 = vsel %vm747, %v2708, 0.0
  %2725 = vadd.xlane.f32.xlu0 %v2724
  %v2726 = vpop.xlane.xlu0 %2725
  %v2727 = vsel %vm747, %v2709, 0.0
  %2728 = vadd.xlane.f32.xlu0 %v2727
  %v2729 = vpop.xlane.xlu0 %2728
  %v2730 = vsel %vm747, %v2710, 0.0
  %2731 = vadd.xlane.f32.xlu0 %v2730
  %v2732 = vpop.xlane.xlu0 %2731
  %v2733 = vsel %vm747, %v2711, 0.0
  %2734 = vadd.xlane.f32.xlu0 %v2733
  %v2735 = vpop.xlane.xlu0 %2734
  %v2736 = vsel %vm747, %v2712, 0.0
  %2737 = vadd.xlane.f32.xlu0 %v2736
  %v2738 = vpop.xlane.xlu0 %2737
  %v2739 = vsel %vm747, %v2713, 0.0
  %2740 = vadd.xlane.f32.xlu0 %v2739
  %v2741 = vpop.xlane.xlu0 %2740
  %v2742 = vsel %vm747, %v2714, 0.0
  %2743 = vadd.xlane.f32.xlu0 %v2742
  %v2744 = vpop.xlane.xlu0 %2743
  %v2745 = vsel %vm747, %v2715, 0.0
  %2746 = vadd.xlane.f32.xlu0 %v2745
  %v2747 = vpop.xlane.xlu0 %2746
  %v2748 = vsel %vm747, %v2716, 0.0
  %2749 = vadd.xlane.f32.xlu0 %v2748
  %v2750 = vpop.xlane.xlu0 %2749
  %v2751 = vsel %vm747, %v2717, 0.0
  %2752 = vadd.xlane.f32.xlu0 %v2751
  %v2753 = vpop.xlane.xlu0 %2752
  %v2754 = vsel %vm747, %v2718, 0.0
  %2755 = vadd.xlane.f32.xlu0 %v2754
  %v2756 = vpop.xlane.xlu0 %2755
  %v2757 = vsel %vm747, %v2719, 0.0
  %2758 = vadd.xlane.f32.xlu0 %v2757
  %v2759 = vpop.xlane.xlu0 %2758
  %v2760 = vsel %vm747, %v2720, 0.0
  %2761 = vadd.xlane.f32.xlu0 %v2760
  %v2762 = vpop.xlane.xlu0 %2761
  %v2763 = vsel %vm747, %v2721, 0.0
  %2764 = vadd.xlane.f32.xlu0 %v2763
  %v2765 = vpop.xlane.xlu0 %2764
  %v2766 = vsel %vm747, %v2722, 0.0
  %2767 = vadd.xlane.f32.xlu0 %v2766
  %v2768 = vpop.xlane.xlu0 %2767
  %v2769 = vsel %vm747, %v2723, 0.0
  %2770 = vadd.xlane.f32.xlu0 %v2769
  %v2771 = vpop.xlane.xlu0 %2770
  %v2772 = vadd.f32 %v2726, 1e-12
  %v2773 = vadd.f32 %v2729, 1e-12
  %v2774 = vadd.f32 %v2732, 1e-12
  %v2775 = vadd.f32 %v2735, 1e-12
  %v2776 = vadd.f32 %v2738, 1e-12
  %v2777 = vadd.f32 %v2741, 1e-12
  %v2778 = vadd.f32 %v2744, 1e-12
  %v2779 = vadd.f32 %v2747, 1e-12
  %v2780 = vadd.f32 %v2750, 1e-12
  %v2781 = vadd.f32 %v2753, 1e-12
  %v2782 = vadd.f32 %v2756, 1e-12
  %v2783 = vadd.f32 %v2759, 1e-12
  %v2784 = vadd.f32 %v2762, 1e-12
  %v2785 = vadd.f32 %v2765, 1e-12
  %v2786 = vadd.f32 %v2768, 1e-12
  %v2787 = vadd.f32 %v2771, 1e-12
  %v2788 = vrsqrt.pop %v2772
  %v2789 = vmul.f32 %v2788, %v2772
  %v2790 = vmul.f32 %v2789, %v2788
  %v2791 = vmul.f32 0.5, %v2790
  %v2792 = vsub.f32 1.5, %v2791
  %v2793 = vmul.f32 %v2788, %v2792
  %vm2794 = vweird.f32 %v2772
  %vm2795 = vweird.f32 %v2788
  %vm2796 = vmor %vm2794, %vm2795
  %v2797 = vsel %vm2796, %v2788, %v2793
  %v2798 = vrsqrt.pop %v2773
  %v2799 = vmul.f32 %v2798, %v2773
  %v2800 = vmul.f32 %v2799, %v2798
  %v2801 = vmul.f32 0.5, %v2800
  %v2802 = vsub.f32 1.5, %v2801
  %v2803 = vmul.f32 %v2798, %v2802
  %vm2804 = vweird.f32 %v2773
  %vm2805 = vweird.f32 %v2798
  %vm2806 = vmor %vm2804, %vm2805
  %v2807 = vsel %vm2806, %v2798, %v2803
  %v2808 = vrsqrt.pop %v2774
  %v2809 = vmul.f32 %v2808, %v2774
  %v2810 = vmul.f32 %v2809, %v2808
  %v2811 = vmul.f32 0.5, %v2810
  %v2812 = vsub.f32 1.5, %v2811
  %v2813 = vmul.f32 %v2808, %v2812
  %vm2814 = vweird.f32 %v2774
  %vm2815 = vweird.f32 %v2808
  %vm2816 = vmor %vm2814, %vm2815
  %v2817 = vsel %vm2816, %v2808, %v2813
  %v2818 = vrsqrt.pop %v2775
  %v2819 = vmul.f32 %v2818, %v2775
  %v2820 = vmul.f32 %v2819, %v2818
  %v2821 = vmul.f32 0.5, %v2820
  %v2822 = vsub.f32 1.5, %v2821
  %v2823 = vmul.f32 %v2818, %v2822
  %vm2824 = vweird.f32 %v2775
  %vm2825 = vweird.f32 %v2818
  %vm2826 = vmor %vm2824, %vm2825
  %v2827 = vsel %vm2826, %v2818, %v2823
  %v2828 = vrsqrt.pop %v2776
  %v2829 = vmul.f32 %v2828, %v2776
  %v2830 = vmul.f32 %v2829, %v2828
  %v2831 = vmul.f32 0.5, %v2830
  %v2832 = vsub.f32 1.5, %v2831
  %v2833 = vmul.f32 %v2828, %v2832
  %vm2834 = vweird.f32 %v2776
  %vm2835 = vweird.f32 %v2828
  %vm2836 = vmor %vm2834, %vm2835
  %v2837 = vsel %vm2836, %v2828, %v2833
  %v2838 = vrsqrt.pop %v2777
  %v2839 = vmul.f32 %v2838, %v2777
  %v2840 = vmul.f32 %v2839, %v2838
  %v2841 = vmul.f32 0.5, %v2840
  %v2842 = vsub.f32 1.5, %v2841
  %v2843 = vmul.f32 %v2838, %v2842
  %vm2844 = vweird.f32 %v2777
  %vm2845 = vweird.f32 %v2838
  %vm2846 = vmor %vm2844, %vm2845
  %v2847 = vsel %vm2846, %v2838, %v2843
  %v2848 = vrsqrt.pop %v2778
  %v2849 = vmul.f32 %v2848, %v2778
  %v2850 = vmul.f32 %v2849, %v2848
  %v2851 = vmul.f32 0.5, %v2850
  %v2852 = vsub.f32 1.5, %v2851
  %v2853 = vmul.f32 %v2848, %v2852
  %vm2854 = vweird.f32 %v2778
  %vm2855 = vweird.f32 %v2848
  %vm2856 = vmor %vm2854, %vm2855
  %v2857 = vsel %vm2856, %v2848, %v2853
  %v2858 = vrsqrt.pop %v2779
  %v2859 = vmul.f32 %v2858, %v2779
  %v2860 = vmul.f32 %v2859, %v2858
  %v2861 = vmul.f32 0.5, %v2860
  %v2862 = vsub.f32 1.5, %v2861
  %v2863 = vmul.f32 %v2858, %v2862
  %vm2864 = vweird.f32 %v2779
  %vm2865 = vweird.f32 %v2858
  %vm2866 = vmor %vm2864, %vm2865
  %v2867 = vsel %vm2866, %v2858, %v2863
  %v2868 = vrsqrt.pop %v2780
  %v2869 = vmul.f32 %v2868, %v2780
  %v2870 = vmul.f32 %v2869, %v2868
  %v2871 = vmul.f32 0.5, %v2870
  %v2872 = vsub.f32 1.5, %v2871
  %v2873 = vmul.f32 %v2868, %v2872
  %vm2874 = vweird.f32 %v2780
  %vm2875 = vweird.f32 %v2868
  %vm2876 = vmor %vm2874, %vm2875
  %v2877 = vsel %vm2876, %v2868, %v2873
  %v2878 = vrsqrt.pop %v2781
  %v2879 = vmul.f32 %v2878, %v2781
  %v2880 = vmul.f32 %v2879, %v2878
  %v2881 = vmul.f32 0.5, %v2880
  %v2882 = vsub.f32 1.5, %v2881
  %v2883 = vmul.f32 %v2878, %v2882
  %vm2884 = vweird.f32 %v2781
  %vm2885 = vweird.f32 %v2878
  %vm2886 = vmor %vm2884, %vm2885
  %v2887 = vsel %vm2886, %v2878, %v2883
  %v2888 = vrsqrt.pop %v2782
  %v2889 = vmul.f32 %v2888, %v2782
  %v2890 = vmul.f32 %v2889, %v2888
  %v2891 = vmul.f32 0.5, %v2890
  %v2892 = vsub.f32 1.5, %v2891
  %v2893 = vmul.f32 %v2888, %v2892
  %vm2894 = vweird.f32 %v2782
  %vm2895 = vweird.f32 %v2888
  %vm2896 = vmor %vm2894, %vm2895
  %v2897 = vsel %vm2896, %v2888, %v2893
  %v2898 = vrsqrt.pop %v2783
  %v2899 = vmul.f32 %v2898, %v2783
  %v2900 = vmul.f32 %v2899, %v2898
  %v2901 = vmul.f32 0.5, %v2900
  %v2902 = vsub.f32 1.5, %v2901
  %v2903 = vmul.f32 %v2898, %v2902
  %vm2904 = vweird.f32 %v2783
  %vm2905 = vweird.f32 %v2898
  %vm2906 = vmor %vm2904, %vm2905
  %v2907 = vsel %vm2906, %v2898, %v2903
  %v2908 = vrsqrt.pop %v2784
  %v2909 = vmul.f32 %v2908, %v2784
  %v2910 = vmul.f32 %v2909, %v2908
  %v2911 = vmul.f32 0.5, %v2910
  %v2912 = vsub.f32 1.5, %v2911
  %v2913 = vmul.f32 %v2908, %v2912
  %vm2914 = vweird.f32 %v2784
  %vm2915 = vweird.f32 %v2908
  %vm2916 = vmor %vm2914, %vm2915
  %v2917 = vsel %vm2916, %v2908, %v2913
  %v2918 = vrsqrt.pop %v2785
  %v2919 = vmul.f32 %v2918, %v2785
  %v2920 = vmul.f32 %v2919, %v2918
  %v2921 = vmul.f32 0.5, %v2920
  %v2922 = vsub.f32 1.5, %v2921
  %v2923 = vmul.f32 %v2918, %v2922
  %vm2924 = vweird.f32 %v2785
  %vm2925 = vweird.f32 %v2918
  %vm2926 = vmor %vm2924, %vm2925
  %v2927 = vsel %vm2926, %v2918, %v2923
  %v2928 = vrsqrt.pop %v2786
  %v2929 = vmul.f32 %v2928, %v2786
  %v2930 = vmul.f32 %v2929, %v2928
  %v2931 = vmul.f32 0.5, %v2930
  %v2932 = vsub.f32 1.5, %v2931
  %v2933 = vmul.f32 %v2928, %v2932
  %vm2934 = vweird.f32 %v2786
  %vm2935 = vweird.f32 %v2928
  %vm2936 = vmor %vm2934, %vm2935
  %v2937 = vsel %vm2936, %v2928, %v2933
  %v2938 = vrsqrt.pop %v2787
  %v2939 = vmul.f32 %v2938, %v2787
  %v2940 = vmul.f32 %v2939, %v2938
  %v2941 = vmul.f32 0.5, %v2940
  %v2942 = vsub.f32 1.5, %v2941
  %v2943 = vmul.f32 %v2938, %v2942
  %vm2944 = vweird.f32 %v2787
  %vm2945 = vweird.f32 %v2938
  %vm2946 = vmor %vm2944, %vm2945
  %v2947 = vsel %vm2946, %v2938, %v2943
  %v2948 = vmul.f32 %v2403, %v2692
  %v2949 = vmul.f32 %v2404, %v2693
  %v2950 = vmul.f32 %v2405, %v2694
  %v2951 = vmul.f32 %v2406, %v2695
  %v2952 = vmul.f32 %v2407, %v2696
  %v2953 = vmul.f32 %v2408, %v2697
  %v2954 = vmul.f32 %v2409, %v2698
  %v2955 = vmul.f32 %v2410, %v2699
  %v2956 = vmul.f32 %v2411, %v2700
  %v2957 = vmul.f32 %v2412, %v2701
  %v2958 = vmul.f32 %v2413, %v2702
  %v2959 = vmul.f32 %v2414, %v2703
  %v2960 = vmul.f32 %v2415, %v2704
  %v2961 = vmul.f32 %v2416, %v2705
  %v2962 = vmul.f32 %v2417, %v2706
  %v2963 = vmul.f32 %v2418, %v2707
  %v2964 = vpack.c.bf16 %v2949, %v2948
  %v2965 = vpack.c.bf16 %v2951, %v2950
  %v2966 = vpack.c.bf16 %v2953, %v2952
  %v2967 = vpack.c.bf16 %v2955, %v2954
  %v2968 = vpack.c.bf16 %v2957, %v2956
  %v2969 = vpack.c.bf16 %v2959, %v2958
  %v2970 = vpack.c.bf16 %v2961, %v2960
  %v2971 = vpack.c.bf16 %v2963, %v2962
  %v2972 = vmul.f32 %v2436, %v2797
  %v2973 = vmul.f32 %v2437, %v2807
  %v2974 = vmul.f32 %v2438, %v2817
  %v2975 = vmul.f32 %v2439, %v2827
  %v2976 = vmul.f32 %v2440, %v2837
  %v2977 = vmul.f32 %v2441, %v2847
  %v2978 = vmul.f32 %v2442, %v2857
  %v2979 = vmul.f32 %v2443, %v2867
  %v2980 = vmul.f32 %v2444, %v2877
  %v2981 = vmul.f32 %v2445, %v2887
  %v2982 = vmul.f32 %v2446, %v2897
  %v2983 = vmul.f32 %v2447, %v2907
  %v2984 = vmul.f32 %v2448, %v2917
  %v2985 = vmul.f32 %v2449, %v2927
  %v2986 = vmul.f32 %v2450, %v2937
  %v2987 = vmul.f32 %v2451, %v2947
  %v2988 = vpack.c.bf16 %v2973, %v2972
  %v2989 = vpack.c.bf16 %v2975, %v2974
  %v2990 = vpack.c.bf16 %v2977, %v2976
  %v2991 = vpack.c.bf16 %v2979, %v2978
  %v2992 = vpack.c.bf16 %v2981, %v2980
  %v2993 = vpack.c.bf16 %v2983, %v2982
  %v2994 = vpack.c.bf16 %v2985, %v2984
  %v2995 = vpack.c.bf16 %v2987, %v2986
  %v2997 = vsel %vm747, %v2964, 0
  %v3000 = vsel %vm747, %v2965, 0
  %v3003 = vsel %vm747, %v2966, 0
  %v3006 = vsel %vm747, %v2967, 0
  %v3009 = vsel %vm747, %v2968, 0
  %v3012 = vsel %vm747, %v2969, 0
  %v3015 = vsel %vm747, %v2970, 0
  %v3018 = vsel %vm747, %v2971, 0
  %v3021 = vsel %vm747, %v2988, 0
  %v3024 = vsel %vm747, %v2989, 0
  %v3027 = vsel %vm747, %v2990, 0
  %v3030 = vsel %vm747, %v2991, 0
  %v3033 = vsel %vm747, %v2992, 0
  %v3036 = vsel %vm747, %v2993, 0
  %v3039 = vsel %vm747, %v2994, 0
  %v3042 = vsel %vm747, %v2995, 0
  %3044 = vmatpush.bf16.xpose.msra.mxu0 %v3042
  %3045 = vmatpush.bf16.xpose.msra.mxu0 %v3039
  %3046 = vmatpush.bf16.xpose.msra.mxu0 %v3036
  %3047 = vmatpush.bf16.xpose.msra.mxu0 %v3033
  %3048 = vmatpush.bf16.xpose.msra.mxu0 %v3030
  %3049 = vmatpush.bf16.xpose.msra.mxu0 %v3027
  %3050 = vmatpush.bf16.xpose.msra.mxu0 %v3024
  %3051 = vmatpush.bf16.xpose.msra.mxu0 %v3021
  %3052 = vmatmul.bf16.gmra.mxu0 %v2997
  %v3053 = vpop.f32.mrf.mxu0
  %v3054 = vadd.f32 0.0, %v3053
  %v3055 = vpop.f32.mrf.mxu0
  %v3056 = vadd.f32 0.0, %v3055
  %3057 = vmatmul.bf16.gmra.mxu0 %v3000
  %v3058 = vpop.f32.mrf.mxu0
  %v3059 = vadd.f32 0.0, %v3058
  %v3060 = vpop.f32.mrf.mxu0
  %v3061 = vadd.f32 0.0, %v3060
  %3062 = vmatmul.bf16.gmra.mxu0 %v3003
  %v3063 = vpop.f32.mrf.mxu0
  %v3064 = vadd.f32 0.0, %v3063
  %v3065 = vpop.f32.mrf.mxu0
  %v3066 = vadd.f32 0.0, %v3065
  %3067 = vmatmul.bf16.gmra.mxu0 %v3006
  %v3068 = vpop.f32.mrf.mxu0
  %v3069 = vadd.f32 0.0, %v3068
  %v3070 = vpop.f32.mrf.mxu0
  %v3071 = vadd.f32 0.0, %v3070
  %3072 = vmatmul.bf16.gmra.mxu0 %v3009
  %v3073 = vpop.f32.mrf.mxu0
  %v3074 = vadd.f32 0.0, %v3073
  %v3075 = vpop.f32.mrf.mxu0
  %v3076 = vadd.f32 0.0, %v3075
  %3077 = vmatmul.bf16.gmra.mxu0 %v3012
  %v3078 = vpop.f32.mrf.mxu0
  %v3079 = vadd.f32 0.0, %v3078
  %v3080 = vpop.f32.mrf.mxu0
  %v3081 = vadd.f32 0.0, %v3080
  %3082 = vmatmul.bf16.gmra.mxu0 %v3015
  %v3083 = vpop.f32.mrf.mxu0
  %v3084 = vadd.f32 0.0, %v3083
  %v3085 = vpop.f32.mrf.mxu0
  %v3086 = vadd.f32 0.0, %v3085
  %3087 = vmatmul.bf16.gmra.mxu0 %v3018
  %v3088 = vpop.f32.mrf.mxu0
  %v3089 = vadd.f32 0.0, %v3088
  %v3090 = vpop.f32.mrf.mxu0
  %v3091 = vadd.f32 0.0, %v3090
  %3092 = vdwg.mxu0
  %v3093 = vmax.f32 %v3054, %v3064
  %v3094 = vmax.f32 %v3056, %v3066
  %v3095 = vmax.f32 %v3059, %v3069
  %v3096 = vmax.f32 %v3061, %v3071
  %v3097 = vmax.f32 %v3093, %v3074
  %v3098 = vmax.f32 %v3094, %v3076
  %v3099 = vmax.f32 %v3095, %v3079
  %v3100 = vmax.f32 %v3096, %v3081
  %v3101 = vmax.f32 %v3097, %v3084
  %v3102 = vmax.f32 %v3098, %v3086
  %v3103 = vmax.f32 %v3099, %v3089
  %v3104 = vmax.f32 %v3100, %v3091
  %v3105 = vmax.f32 %v3101, %v3102
  %v3106 = vmax.f32 %v3103, %v3104
  %v3107 = vmax.f32 %v3105, %v3106
  %v3108 = vrot.slane %v3107, 4
  %v3109 = vmax.f32 %v3107, %v3108
  %v3110 = vrot.slane %v3109, 2
  %v3111 = vmax.f32 %v3109, %v3110
  %v3112 = vrot.slane %v3111, 1
  %v3113 = vmax.f32 %v3111, %v3112
  %v3114 = vsub.f32 %v3054, %v3113
  %v3115 = vsub.f32 %v3056, %v3113
  %v3116 = vsub.f32 %v3059, %v3113
  %v3117 = vsub.f32 %v3061, %v3113
  %v3118 = vsub.f32 %v3064, %v3113
  %v3119 = vsub.f32 %v3066, %v3113
  %v3120 = vsub.f32 %v3069, %v3113
  %v3121 = vsub.f32 %v3071, %v3113
  %v3122 = vsub.f32 %v3074, %v3113
  %v3123 = vsub.f32 %v3076, %v3113
  %v3124 = vsub.f32 %v3079, %v3113
  %v3125 = vsub.f32 %v3081, %v3113
  %v3126 = vsub.f32 %v3084, %v3113
  %v3127 = vsub.f32 %v3086, %v3113
  %v3128 = vsub.f32 %v3089, %v3113
  %v3129 = vsub.f32 %v3091, %v3113
  %v3130 = vmul.f32 %v3114, 1.442695
  %v3131 = vpow.pop %v3130
  %v3132 = vmul.f32 %v3115, 1.442695
  %v3133 = vpow.pop %v3132
  %v3134 = vmul.f32 %v3116, 1.442695
  %v3135 = vpow.pop %v3134
  %v3136 = vmul.f32 %v3117, 1.442695
  %v3137 = vpow.pop %v3136
  %v3138 = vmul.f32 %v3118, 1.442695
  %v3139 = vpow.pop %v3138
  %v3140 = vmul.f32 %v3119, 1.442695
  %v3141 = vpow.pop %v3140
  %v3142 = vmul.f32 %v3120, 1.442695
  %v3143 = vpow.pop %v3142
  %v3144 = vmul.f32 %v3121, 1.442695
  %v3145 = vpow.pop %v3144
  %v3146 = vmul.f32 %v3122, 1.442695
  %v3147 = vpow.pop %v3146
  %v3148 = vmul.f32 %v3123, 1.442695
  %v3149 = vpow.pop %v3148
  %v3150 = vmul.f32 %v3124, 1.442695
  %v3151 = vpow.pop %v3150
  %v3152 = vmul.f32 %v3125, 1.442695
  %v3153 = vpow.pop %v3152
  %v3154 = vmul.f32 %v3126, 1.442695
  %v3155 = vpow.pop %v3154
  %v3156 = vmul.f32 %v3127, 1.442695
  %v3157 = vpow.pop %v3156
  %v3158 = vmul.f32 %v3128, 1.442695
  %v3159 = vpow.pop %v3158
  %v3160 = vmul.f32 %v3129, 1.442695
  %v3161 = vpow.pop %v3160
  %v3162 = vadd.f32 %v3131, %v3133
  %v3163 = vadd.f32 %v3162, %v3135
  %v3164 = vadd.f32 %v3163, %v3137
  %v3165 = vadd.f32 %v3164, %v3139
  %v3166 = vadd.f32 %v3165, %v3141
  %v3167 = vadd.f32 %v3166, %v3143
  %v3168 = vadd.f32 %v3167, %v3145
  %v3169 = vadd.f32 %v3168, %v3147
  %v3170 = vadd.f32 %v3169, %v3149
  %v3171 = vadd.f32 %v3170, %v3151
  %v3172 = vadd.f32 %v3171, %v3153
  %v3173 = vadd.f32 %v3172, %v3155
  %v3174 = vadd.f32 %v3173, %v3157
  %v3175 = vadd.f32 %v3174, %v3159
  %v3176 = vadd.f32 %v3175, %v3161
  %v3177 = vrot.slane %v3176, 4
  %v3178 = vadd.f32 %v3176, %v3177
  %v3179 = vrot.slane %v3178, 2
  %v3180 = vadd.f32 %v3178, %v3179
  %v3181 = vrot.slane %v3180, 1
  %v3182 = vadd.f32 %v3180, %v3181
  %v3183 = vlog2.pop %v3182
  %v3184 = vmul.f32 %v3183, 0.6931472
  %v3185 = vadd.f32 %v3113, %v3184
  %3186 = vmax.xlane.f32.xlu0 %v3054
  %v3187 = vpop.xlane.xlu0 %3186
  %3188 = vmax.xlane.f32.xlu0 %v3056
  %v3189 = vpop.xlane.xlu0 %3188
  %3190 = vmax.xlane.f32.xlu0 %v3059
  %v3191 = vpop.xlane.xlu0 %3190
  %3192 = vmax.xlane.f32.xlu0 %v3061
  %v3193 = vpop.xlane.xlu0 %3192
  %3194 = vmax.xlane.f32.xlu0 %v3064
  %v3195 = vpop.xlane.xlu0 %3194
  %3196 = vmax.xlane.f32.xlu0 %v3066
  %v3197 = vpop.xlane.xlu0 %3196
  %3198 = vmax.xlane.f32.xlu0 %v3069
  %v3199 = vpop.xlane.xlu0 %3198
  %3200 = vmax.xlane.f32.xlu0 %v3071
  %v3201 = vpop.xlane.xlu0 %3200
  %3202 = vmax.xlane.f32.xlu0 %v3074
  %v3203 = vpop.xlane.xlu0 %3202
  %3204 = vmax.xlane.f32.xlu0 %v3076
  %v3205 = vpop.xlane.xlu0 %3204
  %3206 = vmax.xlane.f32.xlu0 %v3079
  %v3207 = vpop.xlane.xlu0 %3206
  %3208 = vmax.xlane.f32.xlu0 %v3081
  %v3209 = vpop.xlane.xlu0 %3208
  %3210 = vmax.xlane.f32.xlu0 %v3084
  %v3211 = vpop.xlane.xlu0 %3210
  %3212 = vmax.xlane.f32.xlu0 %v3086
  %v3213 = vpop.xlane.xlu0 %3212
  %3214 = vmax.xlane.f32.xlu0 %v3089
  %v3215 = vpop.xlane.xlu0 %3214
  %3216 = vmax.xlane.f32.xlu0 %v3091
  %v3217 = vpop.xlane.xlu0 %3216
  %v3218 = vsub.f32 %v3054, %v3187
  %v3219 = vsub.f32 %v3056, %v3189
  %v3220 = vsub.f32 %v3059, %v3191
  %v3221 = vsub.f32 %v3061, %v3193
  %v3222 = vsub.f32 %v3064, %v3195
  %v3223 = vsub.f32 %v3066, %v3197
  %v3224 = vsub.f32 %v3069, %v3199
  %v3225 = vsub.f32 %v3071, %v3201
  %v3226 = vsub.f32 %v3074, %v3203
  %v3227 = vsub.f32 %v3076, %v3205
  %v3228 = vsub.f32 %v3079, %v3207
  %v3229 = vsub.f32 %v3081, %v3209
  %v3230 = vsub.f32 %v3084, %v3211
  %v3231 = vsub.f32 %v3086, %v3213
  %v3232 = vsub.f32 %v3089, %v3215
  %v3233 = vsub.f32 %v3091, %v3217
  %v3234 = vmul.f32 %v3218, 1.442695
  %v3235 = vpow.pop %v3234
  %v3236 = vmul.f32 %v3219, 1.442695
  %v3237 = vpow.pop %v3236
  %v3238 = vmul.f32 %v3220, 1.442695
  %v3239 = vpow.pop %v3238
  %v3240 = vmul.f32 %v3221, 1.442695
  %v3241 = vpow.pop %v3240
  %v3242 = vmul.f32 %v3222, 1.442695
  %v3243 = vpow.pop %v3242
  %v3244 = vmul.f32 %v3223, 1.442695
  %v3245 = vpow.pop %v3244
  %v3246 = vmul.f32 %v3224, 1.442695
  %v3247 = vpow.pop %v3246
  %v3248 = vmul.f32 %v3225, 1.442695
  %v3249 = vpow.pop %v3248
  %v3250 = vmul.f32 %v3226, 1.442695
  %v3251 = vpow.pop %v3250
  %v3252 = vmul.f32 %v3227, 1.442695
  %v3253 = vpow.pop %v3252
  %v3254 = vmul.f32 %v3228, 1.442695
  %v3255 = vpow.pop %v3254
  %v3256 = vmul.f32 %v3229, 1.442695
  %v3257 = vpow.pop %v3256
  %v3258 = vmul.f32 %v3230, 1.442695
  %v3259 = vpow.pop %v3258
  %v3260 = vmul.f32 %v3231, 1.442695
  %v3261 = vpow.pop %v3260
  %v3262 = vmul.f32 %v3232, 1.442695
  %v3263 = vpow.pop %v3262
  %v3264 = vmul.f32 %v3233, 1.442695
  %v3265 = vpow.pop %v3264
  %3266 = vadd.xlane.f32.xlu0 %v3235
  %v3267 = vpop.xlane.xlu0 %3266
  %3268 = vadd.xlane.f32.xlu0 %v3237
  %v3269 = vpop.xlane.xlu0 %3268
  %3270 = vadd.xlane.f32.xlu0 %v3239
  %v3271 = vpop.xlane.xlu0 %3270
  %3272 = vadd.xlane.f32.xlu0 %v3241
  %v3273 = vpop.xlane.xlu0 %3272
  %3274 = vadd.xlane.f32.xlu0 %v3243
  %v3275 = vpop.xlane.xlu0 %3274
  %3276 = vadd.xlane.f32.xlu0 %v3245
  %v3277 = vpop.xlane.xlu0 %3276
  %3278 = vadd.xlane.f32.xlu0 %v3247
  %v3279 = vpop.xlane.xlu0 %3278
  %3280 = vadd.xlane.f32.xlu0 %v3249
  %v3281 = vpop.xlane.xlu0 %3280
  %3282 = vadd.xlane.f32.xlu0 %v3251
  %v3283 = vpop.xlane.xlu0 %3282
  %3284 = vadd.xlane.f32.xlu0 %v3253
  %v3285 = vpop.xlane.xlu0 %3284
  %3286 = vadd.xlane.f32.xlu0 %v3255
  %v3287 = vpop.xlane.xlu0 %3286
  %3288 = vadd.xlane.f32.xlu0 %v3257
  %v3289 = vpop.xlane.xlu0 %3288
  %3290 = vadd.xlane.f32.xlu0 %v3259
  %v3291 = vpop.xlane.xlu0 %3290
  %3292 = vadd.xlane.f32.xlu0 %v3261
  %v3293 = vpop.xlane.xlu0 %3292
  %3294 = vadd.xlane.f32.xlu0 %v3263
  %v3295 = vpop.xlane.xlu0 %3294
  %3296 = vadd.xlane.f32.xlu0 %v3265
  %v3297 = vpop.xlane.xlu0 %3296
  %v3298 = vlog2.pop %v3267
  %v3299 = vmul.f32 %v3298, 0.6931472
  %v3300 = vlog2.pop %v3269
  %v3301 = vmul.f32 %v3300, 0.6931472
  %v3302 = vlog2.pop %v3271
  %v3303 = vmul.f32 %v3302, 0.6931472
  %v3304 = vlog2.pop %v3273
  %v3305 = vmul.f32 %v3304, 0.6931472
  %v3306 = vlog2.pop %v3275
  %v3307 = vmul.f32 %v3306, 0.6931472
  %v3308 = vlog2.pop %v3277
  %v3309 = vmul.f32 %v3308, 0.6931472
  %v3310 = vlog2.pop %v3279
  %v3311 = vmul.f32 %v3310, 0.6931472
  %v3312 = vlog2.pop %v3281
  %v3313 = vmul.f32 %v3312, 0.6931472
  %v3314 = vlog2.pop %v3283
  %v3315 = vmul.f32 %v3314, 0.6931472
  %v3316 = vlog2.pop %v3285
  %v3317 = vmul.f32 %v3316, 0.6931472
  %v3318 = vlog2.pop %v3287
  %v3319 = vmul.f32 %v3318, 0.6931472
  %v3320 = vlog2.pop %v3289
  %v3321 = vmul.f32 %v3320, 0.6931472
  %v3322 = vlog2.pop %v3291
  %v3323 = vmul.f32 %v3322, 0.6931472
  %v3324 = vlog2.pop %v3293
  %v3325 = vmul.f32 %v3324, 0.6931472
  %v3326 = vlog2.pop %v3295
  %v3327 = vmul.f32 %v3326, 0.6931472
  %v3328 = vlog2.pop %v3297
  %v3329 = vmul.f32 %v3328, 0.6931472
  %v3330 = vadd.f32 %v3187, %v3299
  %v3331 = vadd.f32 %v3189, %v3301
  %v3332 = vadd.f32 %v3191, %v3303
  %v3333 = vadd.f32 %v3193, %v3305
  %v3334 = vadd.f32 %v3195, %v3307
  %v3335 = vadd.f32 %v3197, %v3309
  %v3336 = vadd.f32 %v3199, %v3311
  %v3337 = vadd.f32 %v3201, %v3313
  %v3338 = vadd.f32 %v3203, %v3315
  %v3339 = vadd.f32 %v3205, %v3317
  %v3340 = vadd.f32 %v3207, %v3319
  %v3341 = vadd.f32 %v3209, %v3321
  %v3342 = vadd.f32 %v3211, %v3323
  %v3343 = vadd.f32 %v3213, %v3325
  %v3344 = vadd.f32 %v3215, %v3327
  %v3345 = vadd.f32 %v3217, %v3329
  %v3346 = vsub.f32 %v3054, %v3185
  %v3347 = vsub.f32 %v3056, %v3185
  %v3348 = vsub.f32 %v3059, %v3185
  %v3349 = vsub.f32 %v3061, %v3185
  %v3350 = vsub.f32 %v3064, %v3185
  %v3351 = vsub.f32 %v3066, %v3185
  %v3352 = vsub.f32 %v3069, %v3185
  %v3353 = vsub.f32 %v3071, %v3185
  %v3354 = vsub.f32 %v3074, %v3185
  %v3355 = vsub.f32 %v3076, %v3185
  %v3356 = vsub.f32 %v3079, %v3185
  %v3357 = vsub.f32 %v3081, %v3185
  %v3358 = vsub.f32 %v3084, %v3185
  %v3359 = vsub.f32 %v3086, %v3185
  %v3360 = vsub.f32 %v3089, %v3185
  %v3361 = vsub.f32 %v3091, %v3185
  %v3362 = vsub.f32 %v3054, %v3330
  %v3363 = vsub.f32 %v3056, %v3331
  %v3364 = vsub.f32 %v3059, %v3332
  %v3365 = vsub.f32 %v3061, %v3333
  %v3366 = vsub.f32 %v3064, %v3334
  %v3367 = vsub.f32 %v3066, %v3335
  %v3368 = vsub.f32 %v3069, %v3336
  %v3369 = vsub.f32 %v3071, %v3337
  %v3370 = vsub.f32 %v3074, %v3338
  %v3371 = vsub.f32 %v3076, %v3339
  %v3372 = vsub.f32 %v3079, %v3340
  %v3373 = vsub.f32 %v3081, %v3341
  %v3374 = vsub.f32 %v3084, %v3342
  %v3375 = vsub.f32 %v3086, %v3343
  %v3376 = vsub.f32 %v3089, %v3344
  %v3377 = vsub.f32 %v3091, %v3345
  %v3378 = vadd.f32 %v3346, %v3362
  %v3379 = vadd.f32 %v3347, %v3363
  %v3380 = vadd.f32 %v3348, %v3364
  %v3381 = vadd.f32 %v3349, %v3365
  %v3382 = vadd.f32 %v3350, %v3366
  %v3383 = vadd.f32 %v3351, %v3367
  %v3384 = vadd.f32 %v3352, %v3368
  %v3385 = vadd.f32 %v3353, %v3369
  %v3386 = vadd.f32 %v3354, %v3370
  %v3387 = vadd.f32 %v3355, %v3371
  %v3388 = vadd.f32 %v3356, %v3372
  %v3389 = vadd.f32 %v3357, %v3373
  %v3390 = vadd.f32 %v3358, %v3374
  %v3391 = vadd.f32 %v3359, %v3375
  %v3392 = vadd.f32 %v3360, %v3376
  %v3393 = vadd.f32 %v3361, %v3377
  %v3394 = vmul.f32 %v2370, %v3378
  %v3395 = vmul.f32 %v2371, %v3379
  %v3396 = vmul.f32 %v2372, %v3380
  %v3397 = vmul.f32 %v2373, %v3381
  %v3398 = vmul.f32 %v2374, %v3382
  %v3399 = vmul.f32 %v2375, %v3383
  %v3400 = vmul.f32 %v2376, %v3384
  %v3401 = vmul.f32 %v2377, %v3385
  %v3402 = vmul.f32 %v2378, %v3386
  %v3403 = vmul.f32 %v2379, %v3387
  %v3404 = vmul.f32 %v2380, %v3388
  %v3405 = vmul.f32 %v2381, %v3389
  %v3406 = vmul.f32 %v2382, %v3390
  %v3407 = vmul.f32 %v2383, %v3391
  %v3408 = vmul.f32 %v2384, %v3392
  %v3409 = vmul.f32 %v2385, %v3393
  %v3410 = vadd.f32 %v3394, %v3395
  %v3411 = vadd.f32 %v3410, %v3396
  %v3412 = vadd.f32 %v3411, %v3397
  %v3413 = vadd.f32 %v3412, %v3398
  %v3414 = vadd.f32 %v3413, %v3399
  %v3415 = vadd.f32 %v3414, %v3400
  %v3416 = vadd.f32 %v3415, %v3401
  %v3417 = vadd.f32 %v3416, %v3402
  %v3418 = vadd.f32 %v3417, %v3403
  %v3419 = vadd.f32 %v3418, %v3404
  %v3420 = vadd.f32 %v3419, %v3405
  %v3421 = vadd.f32 %v3420, %v3406
  %v3422 = vadd.f32 %v3421, %v3407
  %v3423 = vadd.f32 %v3422, %v3408
  %v3424 = vadd.f32 %v3423, %v3409
  %v3425 = vrot.slane %v3424, 4
  %v3426 = vadd.f32 %v3424, %v3425
  %v3427 = vrot.slane %v3426, 2
  %v3428 = vadd.f32 %v3426, %v3427
  %v3429 = vrot.slane %v3428, 1
  %v3430 = vadd.f32 %v3428, %v3429
  %v3431 = vadd.f32 %v1711, %v3430
  %v3432 = vadd.f32 %v2370, %v2371
  %v3433 = vadd.f32 %v3432, %v2372
  %v3434 = vadd.f32 %v3433, %v2373
  %v3435 = vadd.f32 %v3434, %v2374
  %v3436 = vadd.f32 %v3435, %v2375
  %v3437 = vadd.f32 %v3436, %v2376
  %v3438 = vadd.f32 %v3437, %v2377
  %v3439 = vadd.f32 %v3438, %v2378
  %v3440 = vadd.f32 %v3439, %v2379
  %v3441 = vadd.f32 %v3440, %v2380
  %v3442 = vadd.f32 %v3441, %v2381
  %v3443 = vadd.f32 %v3442, %v2382
  %v3444 = vadd.f32 %v3443, %v2383
  %v3445 = vadd.f32 %v3444, %v2384
  %v3446 = vadd.f32 %v3445, %v2385
  %v3447 = vrot.slane %v3446, 4
  %v3448 = vadd.f32 %v3446, %v3447
  %v3449 = vrot.slane %v3448, 2
  %v3450 = vadd.f32 %v3448, %v3449
  %v3451 = vrot.slane %v3450, 1
  %v3452 = vadd.f32 %v3450, %v3451
  %v3453 = vadd.f32 %v1733, %v3452
  %v3454 = vlaneseq
  %v3455 = vshrl.u32 %v3454, 7
  %vm3456 = vcmp.eq.s32.totalorder %v3455, 0
  %vm3457 = vcmp.eq.s32.totalorder %v3455, 1
  %v3458 = vsel %vm3457, %v3453, 0.0
  %v3459 = vsel %vm3456, %v3431, %v3458
  %3460 = vst [vmem:[%s4] sm:$0xff] %v3459
  // Predicated region
  $region18: #{descriptor_loss_forward.1} parent=0 // pred_check
    _
  $region19: #{descriptor_loss_forward.1} parent=0 // pred_check_branch
    %3462 = sbr.rel (0) target = $region21
  $region20: #{descriptor_loss_forward.1} parent=0 // pred_region
    _
  $region21: #{descriptor_loss_forward.1} parent=0 // pred_fallthru
    _
  // Predicated region
  $region22: #{descriptor_loss_forward.1} parent=0 // pred_check
    _
  $region23: #{descriptor_loss_forward.1} parent=0 // pred_check_branch
    %3464 = sbr.rel (0) target = $region25
  $region24: #{descriptor_loss_forward.1} parent=0 // pred_region
    _
  $region25: #{descriptor_loss_forward.1} parent=0 // pred_fallthru
    _

</llo_original>
